<compile_context>
chip_gen: v5e
topology: v5e:2x2
jax: 0.10.0
libtpu: 0.0.40
codegen_flags: <defaults>
</compile_context>

<pallas_src>
import math
import functools

import jax
import jax.numpy as jnp
from jax import lax
from jax.experimental import pallas as pl

EPS = 1e-5
NEG = -1e30


# --------------------------------------------------------------------------
# Fused Pallas kernel: projections + coefnet (x & y fused) + prediction path
# --------------------------------------------------------------------------

def _basisformer_kernel(
    # data (row-stacked in the wrapper)
    dataL_ref,      # (B*C + B*N, L)   = [fx ; rm1]
    dataP_ref,      # (B*C + B*N, P)   = [fy ; rm2]
    # weights (pre-transposed to (in, out) and pre-packed at init)
    wL_ref,         # (L, 2d)          = [p1 | p2]
    wP_ref,         # (P, 2d)          = [p3 | p4]
    cw_sq_ref,      # (3*blocks+2, d, d)   per block [Wq1, Wo1, Wo2] + [Wqc, Wkc]
    cw_rect_ref,    # (2*blocks, d, 3d)    per block [k1|v1|q2] and [k2|v2|0]
    mlp_w_ref,      # (4, P, P)        zero-padded MLP_y / MLP_sy weights
    bias_ref,       # (4+12*blocks+6, max(d,P))  all biases / LN params
    addm_ref,       # packed additive cross-group masks (0 / -1e30)
    headm_ref,      # packed multiplicative head-lane masks (hl, hlpp)
    # outputs
    out_ref,        # (B*C, P)
    p1_ref,         # (heads*G*N, G*C)   last-block attn (bases -> channels)
    ps_ref,         # (heads*G*C, 2*G*N) [ last-block attn2 | masked score ]
    *, B, C, P, N, heads, d, dk, pp, blocks,
    add1_off, add2_off, hl_off, hlpp_off):

    f32 = jnp.float32
    G = 2 * B                       # groups = (x/y side) x batch
    BC = B * C
    BN = B * N
    scale = 1.0 / math.sqrt(dk)

    # ---- constant masks: static slices of the two packed slabs -------------
    add1 = addm_ref[add1_off:add1_off + heads * G * N, 0:G * C]
    add2 = addm_ref[add2_off:add2_off + heads * G * C, 0:G * N]
    hl = headm_ref[hl_off:hl_off + heads, 0:d]
    hlpp = headm_ref[hlpp_off:hlpp_off + heads, 0:heads * pp]
    grp2 = jnp.where(add2 > -1.0, 1.0, 0.0).astype(f32)     # 1 within group

    def bias(i, w):
        return bias_ref[i:i + 1, 0:w]

    def dot(a, b):
        return jnp.dot(a, b, preferred_element_type=f32)

    def layer_norm(x, gi):
        mu = jnp.mean(x, axis=-1, keepdims=True)
        var = jnp.mean((x - mu) ** 2, axis=-1, keepdims=True)
        return (x - mu) * lax.rsqrt(var + 1e-5) * bias(gi, d) + bias(gi + 1, d)

    def rep_heads(q):
        # (R, d) -> (heads*R, d), head-major rows, lanes masked to each head.
        R = q.shape[0]
        return (q[None, :, :] * hl[:, None, :]).reshape(heads * R, d)

    def head_merge(x, m):
        # (heads*R, W) -> (R, W): keep head h's lane block, sum over heads.
        R = x.shape[0] // heads
        return (x.reshape(heads, R, x.shape[1]) * m[:, None, :]).sum(axis=0)

    def mha(q, k, v, addmask):
        # q:(Rq,d)  k,v:(Rk,d); all groups & heads in two matmuls.
        qb = rep_heads(q)                                        # (h*Rq, d)
        s = lax.dot_general(qb, k, (((1,), (1,)), ((), ())),
                            preferred_element_type=f32) * scale + addmask
        s = s - jnp.max(s, axis=-1, keepdims=True)
        e = jnp.exp(s)                                           # cross-group -> 0
        p = e / jnp.sum(e, axis=-1, keepdims=True)
        ctx = head_merge(dot(p, v), hl)                          # (Rq, d)
        return ctx, p

    # ---- input projections: two row-stacked, lane-stacked matmuls ----------
    projL = dot(dataL_ref[...], wL_ref[...])                     # (BC+BN, 2d)
    projP = dot(dataP_ref[...], wP_ref[...])                     # (BC+BN, 2d)
    feature_x = projL[0:BC, 0:d] + bias(0, d)
    m1 = projL[BC:BC + BN, d:2 * d] + bias(1, d)
    feature_y = projP[0:BC, 0:d] + bias(2, d)
    m2 = projP[BC:BC + BN, d:2 * d] + bias(3, d)

    base = jnp.concatenate([m1, m2], axis=0)                     # (G*N, d)
    feat = jnp.concatenate([feature_x, feature_y], axis=0)       # (G*C, d)

    # ---- coefnet (x & y sides and all batches fused; blocks unrolled) ------
    # TODO(synk): Coefnet body reconstructed (not in the provided snippet).
    p1 = p2 = None
    for blk in range(blocks):
        sq = 3 * blk
        bb = 4 + 12 * blk
        # bases attend to series channels
        q1 = dot(base, cw_sq_ref[sq + 0]) + bias(bb + 0, d)
        fpr = dot(feat, cw_rect_ref[2 * blk + 0])                # (G*C, 3d)
        k1 = fpr[:, 0:d] + bias(bb + 1, d)
        v1 = fpr[:, d:2 * d] + bias(bb + 2, d)
        q2 = fpr[:, 2 * d:3 * d] + bias(bb + 3, d)
        ctx1, p1 = mha(q1, k1, v1, add1)
        base = layer_norm(base + dot(ctx1, cw_sq_ref[sq + 1]) + bias(bb + 6, d),
                          bb + 8)
        # series channels attend to (updated) bases
        bpr = dot(base, cw_rect_ref[2 * blk + 1])                # (G*N, 3d)
        k2 = bpr[:, 0:d] + bias(bb + 4, d)
        v2 = bpr[:, d:2 * d] + bias(bb + 5, d)
        ctx2, p2 = mha(q2, k2, v2, add2)
        feat = layer_norm(feat + dot(ctx2, cw_sq_ref[sq + 2]) + bias(bb + 7, d),
                          bb + 10)

    T0 = 4 + 12 * blocks
    qc = dot(feat, cw_sq_ref[3 * blocks + 0]) + bias(T0 + 0, d)  # (G*C, d)
    kc = dot(base, cw_sq_ref[3 * blocks + 1]) + bias(T0 + 1, d)  # (G*N, d)
    sc = lax.dot_general(rep_heads(qc), kc, (((1,), (1,)), ((), ())),
                         preferred_element_type=f32) * scale     # (h*G*C, G*N)
    sc = sc * grp2                                               # zero cross-group

    # ---- prediction path: MLP_y -> per-head coefficient mix -> MLP_sy ------
    rm2 = dataP_ref[BC:BC + BN, :]                               # (B*N, P)
    h1 = jnp.maximum(dot(rm2, mlp_w_ref[0]) + bias(T0 + 2, P), 0.0)
    bflat = (dot(h1, mlp_w_ref[1]) + bias(T0 + 3, P))[:, 0:heads * pp]
    pred = dot(sc[:, 0:BN], bflat)                               # (h*G*C, h*pp)
    out_x = head_merge(pred, hlpp)[0:BC, :]                      # (B*C, h*pp)
    h2 = jnp.maximum(dot(out_x, mlp_w_ref[2][0:heads * pp, :]) + bias(T0 + 4, P),
                     0.0)
    out_cp = dot(h2, mlp_w_ref[3]) + bias(T0 + 5, P)             # (B*C, P)

    out_ref[...] = out_cp
    p1_ref[...] = p1
    ps_ref[...] = jnp.concatenate([p2, sc], axis=1)


# --------------------------------------------------------------------------
# mask slabs (constant, shape depends on batch size -> built in the wrapper)
# --------------------------------------------------------------------------

def _round8(n):
    return ((n + 7) // 8) * 8


def _mask_slabs(B, C, N, heads, d, dk, pp):
    G = 2 * B
    hGN, hGC = heads * G * N, heads * G * C

    # additive cross-group masks (0 within group, -1e30 across groups)
    rg1 = (jnp.arange(hGN) // N) % G
    cg1 = jnp.arange(G * C) // C
    a1 = jnp.where(rg1[:, None] == cg1[None, :], 0.0, NEG).astype(jnp.float32)
    rg2 = (jnp.arange(hGC) // C) % G
    cg2 = jnp.arange(G * N) // N
    a2 = jnp.where(rg2[:, None] == cg2[None, :], 0.0, NEG).astype(jnp.float32)

    add1_off = 0
    add2_off = _round8(hGN)
    rows = add2_off + _round8(hGC)
    wm = max(G * C, G * N)
    addm = jnp.zeros((rows, wm), jnp.float32)
    addm = addm.at[0:hGN, 0:G * C].set(a1)
    addm = addm.at[add2_off:add2_off + hGC, 0:G * N].set(a2)

    # multiplicative head-lane masks
    hl = (jnp.arange(heads)[:, None]
          == (jnp.arange(d) // dk)[None, :]).astype(jnp.float32)
    hlpp = (jnp.arange(heads)[:, None]
            == (jnp.arange(heads * pp) // pp)[None, :]).astype(jnp.float32)
    hl_off = 0
    hlpp_off = _round8(heads)
    wh = max(d, heads * pp)
    headm = jnp.zeros((hlpp_off + _round8(heads), wh), jnp.float32)
    headm = headm.at[0:heads, 0:d].set(hl)
    headm = headm.at[hlpp_off:hlpp_off + heads, 0:heads * pp].set(hlpp)

    offs = dict(add1_off=add1_off, add2_off=add2_off,
                hl_off=hl_off, hlpp_off=hlpp_off)
    return addm, headm, offs


# --------------------------------------------------------------------------
# JAX wrapper (normalisation, map_MLP, losses, reshapes, de-norm: XLA glue)
# --------------------------------------------------------------------------

def basisformer_forward(params, x, mark, y, cfg, train=True):
    L, P = cfg["seq_len"], cfg["pred_len"]
    N, heads, d = cfg["N"], cfg["heads"], cfg["d_model"]
    blocks, tau = cfg["block_nums"], cfg["tau"]
    B, _, C = x.shape
    dk = d // heads
    pp = P // heads
    G = 2 * B

    x = jnp.asarray(x, jnp.float32)
    y = jnp.asarray(y, jnp.float32)
    mark = jnp.asarray(mark, jnp.float32)

    mean_x = jnp.mean(x, axis=1, keepdims=True)
    std_x = jnp.std(x, axis=1, keepdims=True, ddof=1)           # torch unbiased
    fx = jnp.transpose((x - mean_x) / (std_x + EPS), (0, 2, 1)).reshape(B * C, L)

    mean_y = jnp.mean(y, axis=1, keepdims=True)
    std_y = jnp.std(y, axis=1, keepdims=True, ddof=1)
    fy = jnp.transpose((y - mean_y) / (std_y + EPS), (0, 2, 1)).reshape(B * C, P)

    # map_MLP + basis normalisation: a few hundred FLOPs -> plain XLA glue.
    mark0 = mark[:, 0:1]
    hmid = jax.nn.relu(mark0 @ params["map_w1t"] + params["map_b1"])
    m = (hmid @ params["map_w2t"] + params["map_b2"]).reshape(B, L + P, N)
    m = m / jnp.sqrt(jnp.sum(m ** 2, axis=1, keepdims=True) + EPS)
    rm1 = jnp.transpose(m[:, :L], (0, 2, 1)).reshape(B * N, L)
    rm2 = jnp.transpose(m[:, L:], (0, 2, 1)).reshape(B * N, P)

    data_L = jnp.concatenate([fx, rm1], axis=0)
    data_P = jnp.concatenate([fy, rm2], axis=0)

    addm, headm, offs = _mask_slabs(B, C, N, heads, d, dk, pp)

    kern = functools.partial(_basisformer_kernel, B=B, C=C, P=P, N=N,
                             heads=heads, d=d, dk=dk, pp=pp, blocks=blocks,
                             **offs)
    f32 = jnp.float32
    out_shapes = (
        jax.ShapeDtypeStruct((B * C, P), f32),
        jax.ShapeDtypeStruct((heads * G * N, G * C), f32),
        jax.ShapeDtypeStruct((heads * G * C, 2 * G * N), f32),
    )
    # Single invocation, full-array VMEM blocks (no grid): everything resident.
    out_cp, p1_full, ps = pl.pallas_call(kern, out_shape=out_shapes)(
        data_L, data_P, params["wL"], params["wP"], params["cw_sq"],
        params["cw_rect"], params["mlp_w"], params["bias"], addm, headm)

    p2_full = ps[:, :G * N]
    score_full = ps[:, G * N:]

    # de-normalise + reshape (XLA fuses this with the output copy)
    stdp = jnp.transpose(std_x + EPS, (0, 2, 1)).reshape(B * C, 1)
    meanx = jnp.transpose(mean_x, (0, 2, 1)).reshape(B * C, 1)
    output = (out_cp * stdp + meanx).reshape(B, C, P).transpose(0, 2, 1)

    # extract per-group (side x batch) blocks from the fused slabs
    idx = jnp.arange(G)
    diag1 = p1_full.reshape(heads, G, N, G, C)[:, idx, :, idx, :]   # (G,h,N,C)
    diag2 = p2_full.reshape(heads, G, C, G, N)[:, idx, :, idx, :]   # (G,h,C,N)
    diags = score_full.reshape(heads, G, C, G, N)[:, idx, :, idx, :]
    attn_x1, attn_y1 = diag1[:B], diag1[B:]
    attn_x2, attn_y2 = diag2[:B], diag2[B:]
    score, score_y = diags[:B], diags[B:]

    if train:
        l_smooth = jnp.mean(jnp.abs(
            jnp.einsum('xl,bln->xbn', params["smooth_arr"], m)))
        logit_q = score.transpose(0, 2, 3, 1).reshape(B * C, N, heads)
        logit_k = score_y.transpose(0, 2, 3, 1).reshape(B * C, N, heads)
        l_neg = jnp.einsum('gnh,gmh->gnm', logit_q, logit_k) / tau
        logp = jax.nn.log_softmax(l_neg, axis=-1)
        l_entropy = -jnp.mean(jnp.diagonal(logp, axis1=1, axis2=2))
        return output, l_entropy, l_smooth, attn_x1, attn_x2, attn_y1, attn_y2
    else:
        return output, m, attn_x1, attn_x2, attn_y1, attn_y2


# --------------------------------------------------------------------------
# Deterministic parameter init (weights stored pre-transposed & pre-packed)
# --------------------------------------------------------------------------

def make_smooth_arr(L, P):
    X = L + P - 2
    arr = jnp.zeros((X, L + P), jnp.float32)
    i = jnp.arange(X)
    arr = arr.at[i, i].set(-1.0).at[i, i + 1].set(2.0).at[i, i + 2].set(-1.0)
    return arr


def init_params(key, cfg):
    L, P, d, h = cfg["seq_len"], cfg["pred_len"], cfg["d_model"], cfg["heads"]
    N, blocks = cfg["N"], cfg["block_nums"]
    bottle, mb = cfg["bottle"], cfg["map_bottleneck"]
    pp = P // h
    pbn = P // bottle
    WB = max(d, P)
    keys = iter(jax.random.split(key, 1024))

    def lin_t(in_dim, out_dim, scale=0.1):
        kw, kb = jax.random.split(next(keys))
        w_t = scale * jax.random.normal(kw, (in_dim, out_dim), jnp.float32)
        b = scale * jax.random.normal(kb, (out_dim,), jnp.float32)
        return w_t, b

    def pad_w(w, rows, cols):
        return jnp.zeros((rows, cols), jnp.float32).at[:w.shape[0],
                                                       :w.shape[1]].set(w)

    bias_rows = []

    def brow(vec):
        bias_rows.append(jnp.zeros((WB,), jnp.float32).at[:vec.shape[0]].set(vec))

    p = {}
    p1w, p1b = lin_t(L, d)
    p2w, p2b = lin_t(L, d)
    p3w, p3b = lin_t(P, d)
    p4w, p4b = lin_t(P, d)
    p["wL"] = jnp.concatenate([p1w, p2w], axis=1)                 # (L, 2d)
    p["wP"] = jnp.concatenate([p3w, p4w], axis=1)                 # (P, 2d)
    brow(p1b); brow(p2b); brow(p3b); brow(p4b)

    # TODO(synk): MLP_bottle reconstructed as Linear-ReLU-Linear bottleneck.
    y1w, y1b = lin_t(P, pbn)
    y2w, y2b = lin_t(pbn, h * pp)
    s1w, s1b = lin_t(h * pp, pbn)
    s2w, s2b = lin_t(pbn, P)
    p["mlp_w"] = jnp.stack([pad_w(y1w, P, P), pad_w(y2w, P, P),
                            pad_w(s1w, P, P), pad_w(s2w, P, P)], axis=0)

    mw1, mb1 = lin_t(1, mb)
    mw2, mb2 = lin_t(mb, N * (L + P))
    p["map_w1t"], p["map_b1"] = mw1, mb1.reshape(1, mb)
    p["map_w2t"], p["map_b2"] = mw2, mb2.reshape(1, N * (L + P))

    sq_list, rect_list = [], []
    for _ in range(blocks):
        wq1, bq1 = lin_t(d, d); wk1, bk1 = lin_t(d, d); wv1, bv1 = lin_t(d, d)
        wq2, bq2 = lin_t(d, d); wk2, bk2 = lin_t(d, d); wv2, bv2 = lin_t(d, d)
        wo1, bo1 = lin_t(d, d); wo2, bo2 = lin_t(d, d)
        sq_list += [wq1, wo1, wo2]
        rect_list.append(jnp.concatenate([wk1, wv1, wq2], axis=1))
        rect_list.append(jnp.concatenate([wk2, wv2,
                                          jnp.zeros((d, d), jnp.float32)], axis=1))
        brow(bq1); brow(bk1); brow(bv1); brow(bq2); brow(bk2); brow(bv2)
        brow(bo1); brow(bo2)
        brow(jnp.ones((d,), jnp.float32)); brow(jnp.zeros((d,), jnp.float32))
        brow(jnp.ones((d,), jnp.float32)); brow(jnp.zeros((d,), jnp.float32))

    wqc, bqc = lin_t(d, d)
    wkc, bkc = lin_t(d, d)
    sq_list += [wqc, wkc]
    brow(bqc); brow(bkc)
    brow(y1b); brow(y2b); brow(s1b); brow(s2b)

    p["cw_sq"] = jnp.stack(sq_list, axis=0)        # (3*blocks+2, d, d)
    p["cw_rect"] = jnp.stack(rect_list, axis=0)    # (2*blocks, d, 3d)
    p["bias"] = jnp.stack(bias_rows, axis=0)       # (4+12*blocks+6, max(d,P))
    p["smooth_arr"] = make_smooth_arr(L, P)
    return p


# --------------------------------------------------------------------------
# Demo
# --------------------------------------------------------------------------

if __name__ == "__main__":
    cfg = dict(seq_len=16, pred_len=16, d_model=32, heads=4, N=8,
               block_nums=2, bottle=4, map_bottleneck=16, tau=0.1)

    params = init_params(jax.random.PRNGKey(42), cfg)

    key = jax.random.PRNGKey(0)
    kx, km, ky = jax.random.split(key, 3)
    B, C = 2, 4
    x = jax.random.normal(kx, (B, cfg["seq_len"], C), jnp.float32)
    mark = jax.random.uniform(km, (B, cfg["seq_len"]), jnp.float32)
    y = jax.random.normal(ky, (B, cfg["pred_len"], C), jnp.float32)

    fwd = jax.jit(functools.partial(basisformer_forward, cfg=cfg, train=True))
    outs = jax.block_until_ready(fwd(params, x, mark, y))

    output, l_entropy, l_smooth, a_x1, a_x2, a_y1, a_y2 = outs
    assert output.shape == (B, cfg["pred_len"], C)
    assert a_x1.shape == (B, cfg["heads"], cfg["N"], C)
    assert a_x2.shape == (B, cfg["heads"], C, cfg["N"])
    assert a_y1.shape == (B, cfg["heads"], cfg["N"], C)
    assert a_y2.shape == (B, cfg["heads"], C, cfg["N"])
    assert all(bool(jnp.all(jnp.isfinite(o))) for o in
               (output, l_entropy, l_smooth, a_x1, a_x2, a_y1, a_y2))
    print("KERNEL_OK")
</pallas_src>

<mosaic_0001>
module attributes {stable_mosaic.version = 11 : i64} {
  func.func @_basisformer_kernel(%arg0: memref<24x16xf32, #tpu.memory_space<vmem>>, %arg1: memref<24x16xf32, #tpu.memory_space<vmem>>, %arg2: memref<16x64xf32, #tpu.memory_space<vmem>>, %arg3: memref<16x64xf32, #tpu.memory_space<vmem>>, %arg4: memref<8x32x32xf32, #tpu.memory_space<vmem>>, %arg5: memref<4x32x96xf32, #tpu.memory_space<vmem>>, %arg6: memref<4x16x16xf32, #tpu.memory_space<vmem>>, %arg7: memref<34x32xf32, #tpu.memory_space<vmem>>, %arg8: memref<192x32xf32, #tpu.memory_space<vmem>>, %arg9: memref<16x32xf32, #tpu.memory_space<vmem>>, %arg10: memref<8x16xf32, #tpu.memory_space<vmem>>, %arg11: memref<128x16xf32, #tpu.memory_space<vmem>>, %arg12: memref<64x64xf32, #tpu.memory_space<vmem>>) attributes {dimension_semantics = [], scalar_prefetch = 0 : i64, scratch_operands = 0 : i64, tpu.core_type = #tpu.core_type<tc>} {
    %c0 = arith.constant 0 : index
    %c0_0 = arith.constant 0 : index
    %0 = vector.load %arg8[%c0, %c0_0] : memref<192x32xf32, #tpu.memory_space<vmem>>, vector<128x16xf32>
    %c128 = arith.constant 128 : index
    %c0_1 = arith.constant 0 : index
    %1 = vector.load %arg8[%c128, %c0_1] : memref<192x32xf32, #tpu.memory_space<vmem>>, vector<64x32xf32>
    %c0_2 = arith.constant 0 : index
    %c0_3 = arith.constant 0 : index
    %2 = vector.load %arg9[%c0_2, %c0_3] : memref<16x32xf32, #tpu.memory_space<vmem>>, vector<4x32xf32>
    %c8 = arith.constant 8 : index
    %c0_4 = arith.constant 0 : index
    %3 = vector.load %arg9[%c8, %c0_4] : memref<16x32xf32, #tpu.memory_space<vmem>>, vector<4x16xf32>
    %cst = arith.constant -1.000000e+00 : f32
    %4 = vector.broadcast %cst : f32 to vector<64x32xf32>
    %5 = arith.cmpf ogt, %1, %4 : vector<64x32xf32>
    %cst_5 = arith.constant 1.000000e+00 : f32
    %cst_6 = arith.constant 0.000000e+00 : f32
    %6 = vector.broadcast %cst_5 : f32 to vector<64x32xf32>
    %7 = vector.broadcast %cst_6 : f32 to vector<64x32xf32>
    %8 = arith.select %5, %6, %7 : vector<64x32xi1>, vector<64x32xf32>
    %c0_7 = arith.constant 0 : index
    %c0_8 = arith.constant 0 : index
    %9 = vector.load %arg0[%c0_7, %c0_8] : memref<24x16xf32, #tpu.memory_space<vmem>>, vector<24x16xf32>
    %c0_9 = arith.constant 0 : index
    %c0_10 = arith.constant 0 : index
    %10 = vector.load %arg2[%c0_9, %c0_10] : memref<16x64xf32, #tpu.memory_space<vmem>>, vector<16x64xf32>
    %cst_11 = arith.constant dense<0.000000e+00> : vector<24x64xf32>
    %11 = tpu.matmul %9, %10, %cst_11 {dimension_numbers = #tpu.dot_dimension_numbers<[1], [0], [0], [1], [0, 0, 1, 1], [], []>} : vector<24x16xf32>, vector<16x64xf32>, vector<24x64xf32> -> vector<24x64xf32>
    %c0_12 = arith.constant 0 : index
    %c0_13 = arith.constant 0 : index
    %12 = vector.load %arg1[%c0_12, %c0_13] : memref<24x16xf32, #tpu.memory_space<vmem>>, vector<24x16xf32>
    %c0_14 = arith.constant 0 : index
    %c0_15 = arith.constant 0 : index
    %13 = vector.load %arg3[%c0_14, %c0_15] : memref<16x64xf32, #tpu.memory_space<vmem>>, vector<16x64xf32>
    %cst_16 = arith.constant dense<0.000000e+00> : vector<24x64xf32>
    %14 = tpu.matmul %12, %13, %cst_16 {dimension_numbers = #tpu.dot_dimension_numbers<[1], [0], [0], [1], [0, 0, 1, 1], [], []>} : vector<24x16xf32>, vector<16x64xf32>, vector<24x64xf32> -> vector<24x64xf32>
    %15 = vector.extract_strided_slice %11 {offsets = [0, 0], sizes = [8, 32], strides = [1, 1]} : vector<24x64xf32> to vector<8x32xf32>
    %c0_17 = arith.constant 0 : index
    %c0_18 = arith.constant 0 : index
    %16 = vector.load %arg7[%c0_17, %c0_18] : memref<34x32xf32, #tpu.memory_space<vmem>>, vector<1x32xf32>
    %17 = vector.broadcast %16 : vector<1x32xf32> to vector<8x32xf32>
    %18 = arith.addf %15, %17 : vector<8x32xf32>
    %19 = vector.extract_strided_slice %11 {offsets = [8, 32], sizes = [16, 32], strides = [1, 1]} : vector<24x64xf32> to vector<16x32xf32>
    %c1 = arith.constant 1 : index
    %c0_19 = arith.constant 0 : index
    %20 = vector.load %arg7[%c1, %c0_19] : memref<34x32xf32, #tpu.memory_space<vmem>>, vector<1x32xf32>
    %21 = vector.broadcast %20 : vector<1x32xf32> to vector<16x32xf32>
    %22 = arith.addf %19, %21 : vector<16x32xf32>
    %23 = vector.extract_strided_slice %14 {offsets = [0, 0], sizes = [8, 32], strides = [1, 1]} : vector<24x64xf32> to vector<8x32xf32>
    %c2 = arith.constant 2 : index
    %c0_20 = arith.constant 0 : index
    %24 = vector.load %arg7[%c2, %c0_20] : memref<34x32xf32, #tpu.memory_space<vmem>>, vector<1x32xf32>
    %25 = vector.broadcast %24 : vector<1x32xf32> to vector<8x32xf32>
    %26 = arith.addf %23, %25 : vector<8x32xf32>
    %27 = vector.extract_strided_slice %14 {offsets = [8, 32], sizes = [16, 32], strides = [1, 1]} : vector<24x64xf32> to vector<16x32xf32>
    %c3 = arith.constant 3 : index
    %c0_21 = arith.constant 0 : index
    %28 = vector.load %arg7[%c3, %c0_21] : memref<34x32xf32, #tpu.memory_space<vmem>>, vector<1x32xf32>
    %29 = vector.broadcast %28 : vector<1x32xf32> to vector<16x32xf32>
    %30 = arith.addf %27, %29 : vector<16x32xf32>
    %31 = tpu.concatenate %22, %30 in 0 : vector<16x32xf32>, vector<16x32xf32> -> vector<32x32xf32>
    %32 = tpu.concatenate %18, %26 in 0 : vector<8x32xf32>, vector<8x32xf32> -> vector<16x32xf32>
    %c0_22 = arith.constant 0 : index
    %c0_23 = arith.constant 0 : index
    %c0_24 = arith.constant 0 : index
    %33 = vector.load %arg4[%c0_22, %c0_23, %c0_24] : memref<8x32x32xf32, #tpu.memory_space<vmem>>, vector<1x32x32xf32>
    %34 = vector.shape_cast %33 : vector<1x32x32xf32> to vector<32x32xf32>
    %cst_25 = arith.constant dense<0.000000e+00> : vector<32x32xf32>
    %35 = tpu.matmul %31, %34, %cst_25 {dimension_numbers = #tpu.dot_dimension_numbers<[1], [0], [0], [1], [0, 0, 1, 1], [], []>} : vector<32x32xf32>, vector<32x32xf32>, vector<32x32xf32> -> vector<32x32xf32>
    %c4 = arith.constant 4 : index
    %c0_26 = arith.constant 0 : index
    %36 = vector.load %arg7[%c4, %c0_26] : memref<34x32xf32, #tpu.memory_space<vmem>>, vector<1x32xf32>
    %37 = vector.broadcast %36 : vector<1x32xf32> to vector<32x32xf32>
    %38 = arith.addf %35, %37 : vector<32x32xf32>
    %c0_27 = arith.constant 0 : index
    %c0_28 = arith.constant 0 : index
    %c0_29 = arith.constant 0 : index
    %39 = vector.load %arg5[%c0_27, %c0_28, %c0_29] : memref<4x32x96xf32, #tpu.memory_space<vmem>>, vector<1x32x96xf32>
    %40 = vector.shape_cast %39 : vector<1x32x96xf32> to vector<32x96xf32>
    %cst_30 = arith.constant dense<0.000000e+00> : vector<16x96xf32>
    %41 = tpu.matmul %32, %40, %cst_30 {dimension_numbers = #tpu.dot_dimension_numbers<[1], [0], [0], [1], [0, 0, 1, 1], [], []>} : vector<16x32xf32>, vector<32x96xf32>, vector<16x96xf32> -> vector<16x96xf32>
    %42 = vector.extract_strided_slice %41 {offsets = [0, 0], sizes = [16, 32], strides = [1, 1]} : vector<16x96xf32> to vector<16x32xf32>
    %c5 = arith.constant 5 : index
    %c0_31 = arith.constant 0 : index
    %43 = vector.load %arg7[%c5, %c0_31] : memref<34x32xf32, #tpu.memory_space<vmem>>, vector<1x32xf32>
    %44 = vector.broadcast %43 : vector<1x32xf32> to vector<16x32xf32>
    %45 = arith.addf %42, %44 : vector<16x32xf32>
    %46 = vector.extract_strided_slice %41 {offsets = [0, 32], sizes = [16, 32], strides = [1, 1]} : vector<16x96xf32> to vector<16x32xf32>
    %c6 = arith.constant 6 : index
    %c0_32 = arith.constant 0 : index
    %47 = vector.load %arg7[%c6, %c0_32] : memref<34x32xf32, #tpu.memory_space<vmem>>, vector<1x32xf32>
    %48 = vector.broadcast %47 : vector<1x32xf32> to vector<16x32xf32>
    %49 = arith.addf %46, %48 : vector<16x32xf32>
    %50 = vector.extract_strided_slice %41 {offsets = [0, 64], sizes = [16, 32], strides = [1, 1]} : vector<16x96xf32> to vector<16x32xf32>
    %c7 = arith.constant 7 : index
    %c0_33 = arith.constant 0 : index
    %51 = vector.load %arg7[%c7, %c0_33] : memref<34x32xf32, #tpu.memory_space<vmem>>, vector<1x32xf32>
    %52 = vector.broadcast %51 : vector<1x32xf32> to vector<16x32xf32>
    %53 = arith.addf %50, %52 : vector<16x32xf32>
    %54 = vector.shape_cast %38 : vector<32x32xf32> to vector<1x32x32xf32>
    %55 = vector.shape_cast %2 : vector<4x32xf32> to vector<4x1x32xf32>
    %56 = vector.broadcast %54 : vector<1x32x32xf32> to vector<4x32x32xf32>
    %57 = vector.broadcast %55 : vector<4x1x32xf32> to vector<4x32x32xf32>
    %58 = arith.mulf %56, %57 : vector<4x32x32xf32>
    %59 = vector.shape_cast %58 : vector<4x32x32xf32> to vector<128x32xf32>
    %cst_34 = arith.constant dense<0.000000e+00> : vector<128x16xf32>
    %60 = tpu.matmul %59, %45, %cst_34 {dimension_numbers = #tpu.dot_dimension_numbers<[1], [1], [0], [0], [0, 0, 1, 0], [], []>} : vector<128x32xf32>, vector<16x32xf32>, vector<128x16xf32> -> vector<128x16xf32>
    %cst_35 = arith.constant 0.353553385 : f32
    %61 = vector.broadcast %cst_35 : f32 to vector<128x16xf32>
    %62 = arith.mulf %60, %61 : vector<128x16xf32>
    %63 = arith.addf %62, %0 : vector<128x16xf32>
    %cst_36 = arith.constant dense<0xFF800000> : vector<128xf32>
    %64 = vector.multi_reduction <maximumf>, %63, %cst_36 [1] : vector<128x16xf32> to vector<128xf32>
    %65 = vector.shape_cast %64 : vector<128xf32> to vector<128x1xf32>
    %66 = vector.broadcast %65 : vector<128x1xf32> to vector<128x16xf32>
    %67 = arith.subf %63, %66 : vector<128x16xf32>
    %68 = math.exp %67 : vector<128x16xf32>
    %cst_37 = arith.constant dense<0.000000e+00> : vector<128xf32>
    %69 = vector.multi_reduction <add>, %68, %cst_37 [1] : vector<128x16xf32> to vector<128xf32>
    %70 = vector.shape_cast %69 : vector<128xf32> to vector<128x1xf32>
    %71 = vector.broadcast %70 : vector<128x1xf32> to vector<128x16xf32>
    %72 = arith.divf %68, %71 : vector<128x16xf32>
    %cst_38 = arith.constant dense<0.000000e+00> : vector<128x32xf32>
    %73 = tpu.matmul %72, %49, %cst_38 {dimension_numbers = #tpu.dot_dimension_numbers<[1], [0], [0], [1], [0, 0, 1, 1], [], []>} : vector<128x16xf32>, vector<16x32xf32>, vector<128x32xf32> -> vector<128x32xf32>
    %74 = vector.shape_cast %73 : vector<128x32xf32> to vector<4x32x32xf32>
    %75 = vector.shape_cast %2 : vector<4x32xf32> to vector<4x1x32xf32>
    %76 = vector.broadcast %75 : vector<4x1x32xf32> to vector<4x32x32xf32>
    %77 = arith.mulf %74, %76 : vector<4x32x32xf32>
    %cst_39 = arith.constant dense<0.000000e+00> : vector<32x32xf32>
    %78 = vector.multi_reduction <add>, %77, %cst_39 [0] : vector<4x32x32xf32> to vector<32x32xf32>
    %c1_40 = arith.constant 1 : index
    %c0_41 = arith.constant 0 : index
    %c0_42 = arith.constant 0 : index
    %79 = vector.load %arg4[%c1_40, %c0_41, %c0_42] : memref<8x32x32xf32, #tpu.memory_space<vmem>>, vector<1x32x32xf32>
    %80 = vector.shape_cast %79 : vector<1x32x32xf32> to vector<32x32xf32>
    %cst_43 = arith.constant dense<0.000000e+00> : vector<32x32xf32>
    %81 = tpu.matmul %78, %80, %cst_43 {dimension_numbers = #tpu.dot_dimension_numbers<[1], [0], [0], [1], [0, 0, 1, 1], [], []>} : vector<32x32xf32>, vector<32x32xf32>, vector<32x32xf32> -> vector<32x32xf32>
    %82 = arith.addf %31, %81 : vector<32x32xf32>
    %c10 = arith.constant 10 : index
    %c0_44 = arith.constant 0 : index
    %83 = vector.load %arg7[%c10, %c0_44] : memref<34x32xf32, #tpu.memory_space<vmem>>, vector<1x32xf32>
    %84 = vector.broadcast %83 : vector<1x32xf32> to vector<32x32xf32>
    %85 = arith.addf %82, %84 : vector<32x32xf32>
    %cst_45 = arith.constant dense<0.000000e+00> : vector<32xf32>
    %86 = vector.multi_reduction <add>, %85, %cst_45 [1] : vector<32x32xf32> to vector<32xf32>
    %87 = vector.shape_cast %86 : vector<32xf32> to vector<32x1xf32>
    %cst_46 = arith.constant 3.200000e+01 : f32
    %88 = vector.broadcast %cst_46 : f32 to vector<32x1xf32>
    %89 = arith.divf %87, %88 : vector<32x1xf32>
    %90 = vector.broadcast %89 : vector<32x1xf32> to vector<32x32xf32>
    %91 = arith.subf %85, %90 : vector<32x32xf32>
    %92 = arith.mulf %91, %91 : vector<32x32xf32>
    %cst_47 = arith.constant dense<0.000000e+00> : vector<32xf32>
    %93 = vector.multi_reduction <add>, %92, %cst_47 [1] : vector<32x32xf32> to vector<32xf32>
    %94 = vector.shape_cast %93 : vector<32xf32> to vector<32x1xf32>
    %cst_48 = arith.constant 3.200000e+01 : f32
    %95 = vector.broadcast %cst_48 : f32 to vector<32x1xf32>
    %96 = arith.divf %94, %95 : vector<32x1xf32>
    %97 = vector.broadcast %89 : vector<32x1xf32> to vector<32x32xf32>
    %98 = arith.subf %85, %97 : vector<32x32xf32>
    %cst_49 = arith.constant 9.99999974E-6 : f32
    %99 = vector.broadcast %cst_49 : f32 to vector<32x1xf32>
    %100 = arith.addf %96, %99 : vector<32x1xf32>
    %101 = math.rsqrt %100 : vector<32x1xf32>
    %102 = vector.broadcast %101 : vector<32x1xf32> to vector<32x32xf32>
    %103 = arith.mulf %98, %102 : vector<32x32xf32>
    %c12 = arith.constant 12 : index
    %c0_50 = arith.constant 0 : index
    %104 = vector.load %arg7[%c12, %c0_50] : memref<34x32xf32, #tpu.memory_space<vmem>>, vector<1x32xf32>
    %105 = vector.broadcast %104 : vector<1x32xf32> to vector<32x32xf32>
    %106 = arith.mulf %103, %105 : vector<32x32xf32>
    %c13 = arith.constant 13 : index
    %c0_51 = arith.constant 0 : index
    %107 = vector.load %arg7[%c13, %c0_51] : memref<34x32xf32, #tpu.memory_space<vmem>>, vector<1x32xf32>
    %108 = vector.broadcast %107 : vector<1x32xf32> to vector<32x32xf32>
    %109 = arith.addf %106, %108 : vector<32x32xf32>
    %c1_52 = arith.constant 1 : index
    %c0_53 = arith.constant 0 : index
    %c0_54 = arith.constant 0 : index
    %110 = vector.load %arg5[%c1_52, %c0_53, %c0_54] : memref<4x32x96xf32, #tpu.memory_space<vmem>>, vector<1x32x96xf32>
    %111 = vector.shape_cast %110 : vector<1x32x96xf32> to vector<32x96xf32>
    %cst_55 = arith.constant dense<0.000000e+00> : vector<32x96xf32>
    %112 = tpu.matmul %109, %111, %cst_55 {dimension_numbers = #tpu.dot_dimension_numbers<[1], [0], [0], [1], [0, 0, 1, 1], [], []>} : vector<32x32xf32>, vector<32x96xf32>, vector<32x96xf32> -> vector<32x96xf32>
    %113 = vector.extract_strided_slice %112 {offsets = [0, 0], sizes = [32, 32], strides = [1, 1]} : vector<32x96xf32> to vector<32x32xf32>
    %c8_56 = arith.constant 8 : index
    %c0_57 = arith.constant 0 : index
    %114 = vector.load %arg7[%c8_56, %c0_57] : memref<34x32xf32, #tpu.memory_space<vmem>>, vector<1x32xf32>
    %115 = vector.broadcast %114 : vector<1x32xf32> to vector<32x32xf32>
    %116 = arith.addf %113, %115 : vector<32x32xf32>
    %117 = vector.extract_strided_slice %112 {offsets = [0, 32], sizes = [32, 32], strides = [1, 1]} : vector<32x96xf32> to vector<32x32xf32>
    %c9 = arith.constant 9 : index
    %c0_58 = arith.constant 0 : index
    %118 = vector.load %arg7[%c9, %c0_58] : memref<34x32xf32, #tpu.memory_space<vmem>>, vector<1x32xf32>
    %119 = vector.broadcast %118 : vector<1x32xf32> to vector<32x32xf32>
    %120 = arith.addf %117, %119 : vector<32x32xf32>
    %121 = vector.shape_cast %53 : vector<16x32xf32> to vector<1x16x32xf32>
    %122 = vector.shape_cast %2 : vector<4x32xf32> to vector<4x1x32xf32>
    %123 = vector.broadcast %121 : vector<1x16x32xf32> to vector<4x16x32xf32>
    %124 = vector.broadcast %122 : vector<4x1x32xf32> to vector<4x16x32xf32>
    %125 = arith.mulf %123, %124 : vector<4x16x32xf32>
    %126 = vector.shape_cast %125 : vector<4x16x32xf32> to vector<64x32xf32>
    %cst_59 = arith.constant dense<0.000000e+00> : vector<64x32xf32>
    %127 = tpu.matmul %126, %116, %cst_59 {dimension_numbers = #tpu.dot_dimension_numbers<[1], [1], [0], [0], [0, 0, 1, 0], [], []>} : vector<64x32xf32>, vector<32x32xf32>, vector<64x32xf32> -> vector<64x32xf32>
    %cst_60 = arith.constant 0.353553385 : f32
    %128 = vector.broadcast %cst_60 : f32 to vector<64x32xf32>
    %129 = arith.mulf %127, %128 : vector<64x32xf32>
    %130 = arith.addf %129, %1 : vector<64x32xf32>
    %cst_61 = arith.constant dense<0xFF800000> : vector<64xf32>
    %131 = vector.multi_reduction <maximumf>, %130, %cst_61 [1] : vector<64x32xf32> to vector<64xf32>
    %132 = vector.shape_cast %131 : vector<64xf32> to vector<64x1xf32>
    %133 = vector.broadcast %132 : vector<64x1xf32> to vector<64x32xf32>
    %134 = arith.subf %130, %133 : vector<64x32xf32>
    %135 = math.exp %134 : vector<64x32xf32>
    %cst_62 = arith.constant dense<0.000000e+00> : vector<64xf32>
    %136 = vector.multi_reduction <add>, %135, %cst_62 [1] : vector<64x32xf32> to vector<64xf32>
    %137 = vector.shape_cast %136 : vector<64xf32> to vector<64x1xf32>
    %138 = vector.broadcast %137 : vector<64x1xf32> to vector<64x32xf32>
    %139 = arith.divf %135, %138 : vector<64x32xf32>
    %cst_63 = arith.constant dense<0.000000e+00> : vector<64x32xf32>
    %140 = tpu.matmul %139, %120, %cst_63 {dimension_numbers = #tpu.dot_dimension_numbers<[1], [0], [0], [1], [0, 0, 1, 1], [], []>} : vector<64x32xf32>, vector<32x32xf32>, vector<64x32xf32> -> vector<64x32xf32>
    %141 = vector.shape_cast %140 : vector<64x32xf32> to vector<4x16x32xf32>
    %142 = vector.shape_cast %2 : vector<4x32xf32> to vector<4x1x32xf32>
    %143 = vector.broadcast %142 : vector<4x1x32xf32> to vector<4x16x32xf32>
    %144 = arith.mulf %141, %143 : vector<4x16x32xf32>
    %cst_64 = arith.constant dense<0.000000e+00> : vector<16x32xf32>
    %145 = vector.multi_reduction <add>, %144, %cst_64 [0] : vector<4x16x32xf32> to vector<16x32xf32>
    %c2_65 = arith.constant 2 : index
    %c0_66 = arith.constant 0 : index
    %c0_67 = arith.constant 0 : index
    %146 = vector.load %arg4[%c2_65, %c0_66, %c0_67] : memref<8x32x32xf32, #tpu.memory_space<vmem>>, vector<1x32x32xf32>
    %147 = vector.shape_cast %146 : vector<1x32x32xf32> to vector<32x32xf32>
    %cst_68 = arith.constant dense<0.000000e+00> : vector<16x32xf32>
    %148 = tpu.matmul %145, %147, %cst_68 {dimension_numbers = #tpu.dot_dimension_numbers<[1], [0], [0], [1], [0, 0, 1, 1], [], []>} : vector<16x32xf32>, vector<32x32xf32>, vector<16x32xf32> -> vector<16x32xf32>
    %149 = arith.addf %32, %148 : vector<16x32xf32>
    %c11 = arith.constant 11 : index
    %c0_69 = arith.constant 0 : index
    %150 = vector.load %arg7[%c11, %c0_69] : memref<34x32xf32, #tpu.memory_space<vmem>>, vector<1x32xf32>
    %151 = vector.broadcast %150 : vector<1x32xf32> to vector<16x32xf32>
    %152 = arith.addf %149, %151 : vector<16x32xf32>
    %cst_70 = arith.constant dense<0.000000e+00> : vector<16xf32>
    %153 = vector.multi_reduction <add>, %152, %cst_70 [1] : vector<16x32xf32> to vector<16xf32>
    %154 = vector.shape_cast %153 : vector<16xf32> to vector<16x1xf32>
    %cst_71 = arith.constant 3.200000e+01 : f32
    %155 = vector.broadcast %cst_71 : f32 to vector<16x1xf32>
    %156 = arith.divf %154, %155 : vector<16x1xf32>
    %157 = vector.broadcast %156 : vector<16x1xf32> to vector<16x32xf32>
    %158 = arith.subf %152, %157 : vector<16x32xf32>
    %159 = arith.mulf %158, %158 : vector<16x32xf32>
    %cst_72 = arith.constant dense<0.000000e+00> : vector<16xf32>
    %160 = vector.multi_reduction <add>, %159, %cst_72 [1] : vector<16x32xf32> to vector<16xf32>
    %161 = vector.shape_cast %160 : vector<16xf32> to vector<16x1xf32>
    %cst_73 = arith.constant 3.200000e+01 : f32
    %162 = vector.broadcast %cst_73 : f32 to vector<16x1xf32>
    %163 = arith.divf %161, %162 : vector<16x1xf32>
    %164 = vector.broadcast %156 : vector<16x1xf32> to vector<16x32xf32>
    %165 = arith.subf %152, %164 : vector<16x32xf32>
    %cst_74 = arith.constant 9.99999974E-6 : f32
    %166 = vector.broadcast %cst_74 : f32 to vector<16x1xf32>
    %167 = arith.addf %163, %166 : vector<16x1xf32>
    %168 = math.rsqrt %167 : vector<16x1xf32>
    %169 = vector.broadcast %168 : vector<16x1xf32> to vector<16x32xf32>
    %170 = arith.mulf %165, %169 : vector<16x32xf32>
    %c14 = arith.constant 14 : index
    %c0_75 = arith.constant 0 : index
    %171 = vector.load %arg7[%c14, %c0_75] : memref<34x32xf32, #tpu.memory_space<vmem>>, vector<1x32xf32>
    %172 = vector.broadcast %171 : vector<1x32xf32> to vector<16x32xf32>
    %173 = arith.mulf %170, %172 : vector<16x32xf32>
    %c15 = arith.constant 15 : index
    %c0_76 = arith.constant 0 : index
    %174 = vector.load %arg7[%c15, %c0_76] : memref<34x32xf32, #tpu.memory_space<vmem>>, vector<1x32xf32>
    %175 = vector.broadcast %174 : vector<1x32xf32> to vector<16x32xf32>
    %176 = arith.addf %173, %175 : vector<16x32xf32>
    %c3_77 = arith.constant 3 : index
    %c0_78 = arith.constant 0 : index
    %c0_79 = arith.constant 0 : index
    %177 = vector.load %arg4[%c3_77, %c0_78, %c0_79] : memref<8x32x32xf32, #tpu.memory_space<vmem>>, vector<1x32x32xf32>
    %178 = vector.shape_cast %177 : vector<1x32x32xf32> to vector<32x32xf32>
    %cst_80 = arith.constant dense<0.000000e+00> : vector<32x32xf32>
    %179 = tpu.matmul %109, %178, %cst_80 {dimension_numbers = #tpu.dot_dimension_numbers<[1], [0], [0], [1], [0, 0, 1, 1], [], []>} : vector<32x32xf32>, vector<32x32xf32>, vector<32x32xf32> -> vector<32x32xf32>
    %c16 = arith.constant 16 : index
    %c0_81 = arith.constant 0 : index
    %180 = vector.load %arg7[%c16, %c0_81] : memref<34x32xf32, #tpu.memory_space<vmem>>, vector<1x32xf32>
    %181 = vector.broadcast %180 : vector<1x32xf32> to vector<32x32xf32>
    %182 = arith.addf %179, %181 : vector<32x32xf32>
    %c2_82 = arith.constant 2 : index
    %c0_83 = arith.constant 0 : index
    %c0_84 = arith.constant 0 : index
    %183 = vector.load %arg5[%c2_82, %c0_83, %c0_84] : memref<4x32x96xf32, #tpu.memory_space<vmem>>, vector<1x32x96xf32>
    %184 = vector.shape_cast %183 : vector<1x32x96xf32> to vector<32x96xf32>
    %cst_85 = arith.constant dense<0.000000e+00> : vector<16x96xf32>
    %185 = tpu.matmul %176, %184, %cst_85 {dimension_numbers = #tpu.dot_dimension_numbers<[1], [0], [0], [1], [0, 0, 1, 1], [], []>} : vector<16x32xf32>, vector<32x96xf32>, vector<16x96xf32> -> vector<16x96xf32>
    %186 = vector.extract_strided_slice %185 {offsets = [0, 0], sizes = [16, 32], strides = [1, 1]} : vector<16x96xf32> to vector<16x32xf32>
    %c17 = arith.constant 17 : index
    %c0_86 = arith.constant 0 : index
    %187 = vector.load %arg7[%c17, %c0_86] : memref<34x32xf32, #tpu.memory_space<vmem>>, vector<1x32xf32>
    %188 = vector.broadcast %187 : vector<1x32xf32> to vector<16x32xf32>
    %189 = arith.addf %186, %188 : vector<16x32xf32>
    %190 = vector.extract_strided_slice %185 {offsets = [0, 32], sizes = [16, 32], strides = [1, 1]} : vector<16x96xf32> to vector<16x32xf32>
    %c18 = arith.constant 18 : index
    %c0_87 = arith.constant 0 : index
    %191 = vector.load %arg7[%c18, %c0_87] : memref<34x32xf32, #tpu.memory_space<vmem>>, vector<1x32xf32>
    %192 = vector.broadcast %191 : vector<1x32xf32> to vector<16x32xf32>
    %193 = arith.addf %190, %192 : vector<16x32xf32>
    %194 = vector.extract_strided_slice %185 {offsets = [0, 64], sizes = [16, 32], strides = [1, 1]} : vector<16x96xf32> to vector<16x32xf32>
    %c19 = arith.constant 19 : index
    %c0_88 = arith.constant 0 : index
    %195 = vector.load %arg7[%c19, %c0_88] : memref<34x32xf32, #tpu.memory_space<vmem>>, vector<1x32xf32>
    %196 = vector.broadcast %195 : vector<1x32xf32> to vector<16x32xf32>
    %197 = arith.addf %194, %196 : vector<16x32xf32>
    %198 = vector.shape_cast %182 : vector<32x32xf32> to vector<1x32x32xf32>
    %199 = vector.shape_cast %2 : vector<4x32xf32> to vector<4x1x32xf32>
    %200 = vector.broadcast %198 : vector<1x32x32xf32> to vector<4x32x32xf32>
    %201 = vector.broadcast %199 : vector<4x1x32xf32> to vector<4x32x32xf32>
    %202 = arith.mulf %200, %201 : vector<4x32x32xf32>
    %203 = vector.shape_cast %202 : vector<4x32x32xf32> to vector<128x32xf32>
    %cst_89 = arith.constant dense<0.000000e+00> : vector<128x16xf32>
    %204 = tpu.matmul %203, %189, %cst_89 {dimension_numbers = #tpu.dot_dimension_numbers<[1], [1], [0], [0], [0, 0, 1, 0], [], []>} : vector<128x32xf32>, vector<16x32xf32>, vector<128x16xf32> -> vector<128x16xf32>
    %cst_90 = arith.constant 0.353553385 : f32
    %205 = vector.broadcast %cst_90 : f32 to vector<128x16xf32>
    %206 = arith.mulf %204, %205 : vector<128x16xf32>
    %207 = arith.addf %206, %0 : vector<128x16xf32>
    %cst_91 = arith.constant dense<0xFF800000> : vector<128xf32>
    %208 = vector.multi_reduction <maximumf>, %207, %cst_91 [1] : vector<128x16xf32> to vector<128xf32>
    %209 = vector.shape_cast %208 : vector<128xf32> to vector<128x1xf32>
    %210 = vector.broadcast %209 : vector<128x1xf32> to vector<128x16xf32>
    %211 = arith.subf %207, %210 : vector<128x16xf32>
    %212 = math.exp %211 : vector<128x16xf32>
    %cst_92 = arith.constant dense<0.000000e+00> : vector<128xf32>
    %213 = vector.multi_reduction <add>, %212, %cst_92 [1] : vector<128x16xf32> to vector<128xf32>
    %214 = vector.shape_cast %213 : vector<128xf32> to vector<128x1xf32>
    %215 = vector.broadcast %214 : vector<128x1xf32> to vector<128x16xf32>
    %216 = arith.divf %212, %215 : vector<128x16xf32>
    %cst_93 = arith.constant dense<0.000000e+00> : vector<128x32xf32>
    %217 = tpu.matmul %216, %193, %cst_93 {dimension_numbers = #tpu.dot_dimension_numbers<[1], [0], [0], [1], [0, 0, 1, 1], [], []>} : vector<128x16xf32>, vector<16x32xf32>, vector<128x32xf32> -> vector<128x32xf32>
    %218 = vector.shape_cast %217 : vector<128x32xf32> to vector<4x32x32xf32>
    %219 = vector.shape_cast %2 : vector<4x32xf32> to vector<4x1x32xf32>
    %220 = vector.broadcast %219 : vector<4x1x32xf32> to vector<4x32x32xf32>
    %221 = arith.mulf %218, %220 : vector<4x32x32xf32>
    %cst_94 = arith.constant dense<0.000000e+00> : vector<32x32xf32>
    %222 = vector.multi_reduction <add>, %221, %cst_94 [0] : vector<4x32x32xf32> to vector<32x32xf32>
    %c4_95 = arith.constant 4 : index
    %c0_96 = arith.constant 0 : index
    %c0_97 = arith.constant 0 : index
    %223 = vector.load %arg4[%c4_95, %c0_96, %c0_97] : memref<8x32x32xf32, #tpu.memory_space<vmem>>, vector<1x32x32xf32>
    %224 = vector.shape_cast %223 : vector<1x32x32xf32> to vector<32x32xf32>
    %cst_98 = arith.constant dense<0.000000e+00> : vector<32x32xf32>
    %225 = tpu.matmul %222, %224, %cst_98 {dimension_numbers = #tpu.dot_dimension_numbers<[1], [0], [0], [1], [0, 0, 1, 1], [], []>} : vector<32x32xf32>, vector<32x32xf32>, vector<32x32xf32> -> vector<32x32xf32>
    %226 = arith.addf %109, %225 : vector<32x32xf32>
    %c22 = arith.constant 22 : index
    %c0_99 = arith.constant 0 : index
    %227 = vector.load %arg7[%c22, %c0_99] : memref<34x32xf32, #tpu.memory_space<vmem>>, vector<1x32xf32>
    %228 = vector.broadcast %227 : vector<1x32xf32> to vector<32x32xf32>
    %229 = arith.addf %226, %228 : vector<32x32xf32>
    %cst_100 = arith.constant dense<0.000000e+00> : vector<32xf32>
    %230 = vector.multi_reduction <add>, %229, %cst_100 [1] : vector<32x32xf32> to vector<32xf32>
    %231 = vector.shape_cast %230 : vector<32xf32> to vector<32x1xf32>
    %cst_101 = arith.constant 3.200000e+01 : f32
    %232 = vector.broadcast %cst_101 : f32 to vector<32x1xf32>
    %233 = arith.divf %231, %232 : vector<32x1xf32>
    %234 = vector.broadcast %233 : vector<32x1xf32> to vector<32x32xf32>
    %235 = arith.subf %229, %234 : vector<32x32xf32>
    %236 = arith.mulf %235, %235 : vector<32x32xf32>
    %cst_102 = arith.constant dense<0.000000e+00> : vector<32xf32>
    %237 = vector.multi_reduction <add>, %236, %cst_102 [1] : vector<32x32xf32> to vector<32xf32>
    %238 = vector.shape_cast %237 : vector<32xf32> to vector<32x1xf32>
    %cst_103 = arith.constant 3.200000e+01 : f32
    %239 = vector.broadcast %cst_103 : f32 to vector<32x1xf32>
    %240 = arith.divf %238, %239 : vector<32x1xf32>
    %241 = vector.broadcast %233 : vector<32x1xf32> to vector<32x32xf32>
    %242 = arith.subf %229, %241 : vector<32x32xf32>
    %cst_104 = arith.constant 9.99999974E-6 : f32
    %243 = vector.broadcast %cst_104 : f32 to vector<32x1xf32>
    %244 = arith.addf %240, %243 : vector<32x1xf32>
    %245 = math.rsqrt %244 : vector<32x1xf32>
    %246 = vector.broadcast %245 : vector<32x1xf32> to vector<32x32xf32>
    %247 = arith.mulf %242, %246 : vector<32x32xf32>
    %c24 = arith.constant 24 : index
    %c0_105 = arith.constant 0 : index
    %248 = vector.load %arg7[%c24, %c0_105] : memref<34x32xf32, #tpu.memory_space<vmem>>, vector<1x32xf32>
    %249 = vector.broadcast %248 : vector<1x32xf32> to vector<32x32xf32>
    %250 = arith.mulf %247, %249 : vector<32x32xf32>
    %c25 = arith.constant 25 : index
    %c0_106 = arith.constant 0 : index
    %251 = vector.load %arg7[%c25, %c0_106] : memref<34x32xf32, #tpu.memory_space<vmem>>, vector<1x32xf32>
    %252 = vector.broadcast %251 : vector<1x32xf32> to vector<32x32xf32>
    %253 = arith.addf %250, %252 : vector<32x32xf32>
    %c3_107 = arith.constant 3 : index
    %c0_108 = arith.constant 0 : index
    %c0_109 = arith.constant 0 : index
    %254 = vector.load %arg5[%c3_107, %c0_108, %c0_109] : memref<4x32x96xf32, #tpu.memory_space<vmem>>, vector<1x32x96xf32>
    %255 = vector.shape_cast %254 : vector<1x32x96xf32> to vector<32x96xf32>
    %cst_110 = arith.constant dense<0.000000e+00> : vector<32x96xf32>
    %256 = tpu.matmul %253, %255, %cst_110 {dimension_numbers = #tpu.dot_dimension_numbers<[1], [0], [0], [1], [0, 0, 1, 1], [], []>} : vector<32x32xf32>, vector<32x96xf32>, vector<32x96xf32> -> vector<32x96xf32>
    %257 = vector.extract_strided_slice %256 {offsets = [0, 0], sizes = [32, 32], strides = [1, 1]} : vector<32x96xf32> to vector<32x32xf32>
    %c20 = arith.constant 20 : index
    %c0_111 = arith.constant 0 : index
    %258 = vector.load %arg7[%c20, %c0_111] : memref<34x32xf32, #tpu.memory_space<vmem>>, vector<1x32xf32>
    %259 = vector.broadcast %258 : vector<1x32xf32> to vector<32x32xf32>
    %260 = arith.addf %257, %259 : vector<32x32xf32>
    %261 = vector.extract_strided_slice %256 {offsets = [0, 32], sizes = [32, 32], strides = [1, 1]} : vector<32x96xf32> to vector<32x32xf32>
    %c21 = arith.constant 21 : index
    %c0_112 = arith.constant 0 : index
    %262 = vector.load %arg7[%c21, %c0_112] : memref<34x32xf32, #tpu.memory_space<vmem>>, vector<1x32xf32>
    %263 = vector.broadcast %262 : vector<1x32xf32> to vector<32x32xf32>
    %264 = arith.addf %261, %263 : vector<32x32xf32>
    %265 = vector.shape_cast %197 : vector<16x32xf32> to vector<1x16x32xf32>
    %266 = vector.shape_cast %2 : vector<4x32xf32> to vector<4x1x32xf32>
    %267 = vector.broadcast %265 : vector<1x16x32xf32> to vector<4x16x32xf32>
    %268 = vector.broadcast %266 : vector<4x1x32xf32> to vector<4x16x32xf32>
    %269 = arith.mulf %267, %268 : vector<4x16x32xf32>
    %270 = vector.shape_cast %269 : vector<4x16x32xf32> to vector<64x32xf32>
    %cst_113 = arith.constant dense<0.000000e+00> : vector<64x32xf32>
    %271 = tpu.matmul %270, %260, %cst_113 {dimension_numbers = #tpu.dot_dimension_numbers<[1], [1], [0], [0], [0, 0, 1, 0], [], []>} : vector<64x32xf32>, vector<32x32xf32>, vector<64x32xf32> -> vector<64x32xf32>
    %cst_114 = arith.constant 0.353553385 : f32
    %272 = vector.broadcast %cst_114 : f32 to vector<64x32xf32>
    %273 = arith.mulf %271, %272 : vector<64x32xf32>
    %274 = arith.addf %273, %1 : vector<64x32xf32>
    %cst_115 = arith.constant dense<0xFF800000> : vector<64xf32>
    %275 = vector.multi_reduction <maximumf>, %274, %cst_115 [1] : vector<64x32xf32> to vector<64xf32>
    %276 = vector.shape_cast %275 : vector<64xf32> to vector<64x1xf32>
    %277 = vector.broadcast %276 : vector<64x1xf32> to vector<64x32xf32>
    %278 = arith.subf %274, %277 : vector<64x32xf32>
    %279 = math.exp %278 : vector<64x32xf32>
    %cst_116 = arith.constant dense<0.000000e+00> : vector<64xf32>
    %280 = vector.multi_reduction <add>, %279, %cst_116 [1] : vector<64x32xf32> to vector<64xf32>
    %281 = vector.shape_cast %280 : vector<64xf32> to vector<64x1xf32>
    %282 = vector.broadcast %281 : vector<64x1xf32> to vector<64x32xf32>
    %283 = arith.divf %279, %282 : vector<64x32xf32>
    %cst_117 = arith.constant dense<0.000000e+00> : vector<64x32xf32>
    %284 = tpu.matmul %283, %264, %cst_117 {dimension_numbers = #tpu.dot_dimension_numbers<[1], [0], [0], [1], [0, 0, 1, 1], [], []>} : vector<64x32xf32>, vector<32x32xf32>, vector<64x32xf32> -> vector<64x32xf32>
    %285 = vector.shape_cast %284 : vector<64x32xf32> to vector<4x16x32xf32>
    %286 = vector.shape_cast %2 : vector<4x32xf32> to vector<4x1x32xf32>
    %287 = vector.broadcast %286 : vector<4x1x32xf32> to vector<4x16x32xf32>
    %288 = arith.mulf %285, %287 : vector<4x16x32xf32>
    %cst_118 = arith.constant dense<0.000000e+00> : vector<16x32xf32>
    %289 = vector.multi_reduction <add>, %288, %cst_118 [0] : vector<4x16x32xf32> to vector<16x32xf32>
    %c5_119 = arith.constant 5 : index
    %c0_120 = arith.constant 0 : index
    %c0_121 = arith.constant 0 : index
    %290 = vector.load %arg4[%c5_119, %c0_120, %c0_121] : memref<8x32x32xf32, #tpu.memory_space<vmem>>, vector<1x32x32xf32>
    %291 = vector.shape_cast %290 : vector<1x32x32xf32> to vector<32x32xf32>
    %cst_122 = arith.constant dense<0.000000e+00> : vector<16x32xf32>
    %292 = tpu.matmul %289, %291, %cst_122 {dimension_numbers = #tpu.dot_dimension_numbers<[1], [0], [0], [1], [0, 0, 1, 1], [], []>} : vector<16x32xf32>, vector<32x32xf32>, vector<16x32xf32> -> vector<16x32xf32>
    %293 = arith.addf %176, %292 : vector<16x32xf32>
    %c23 = arith.constant 23 : index
    %c0_123 = arith.constant 0 : index
    %294 = vector.load %arg7[%c23, %c0_123] : memref<34x32xf32, #tpu.memory_space<vmem>>, vector<1x32xf32>
    %295 = vector.broadcast %294 : vector<1x32xf32> to vector<16x32xf32>
    %296 = arith.addf %293, %295 : vector<16x32xf32>
    %cst_124 = arith.constant dense<0.000000e+00> : vector<16xf32>
    %297 = vector.multi_reduction <add>, %296, %cst_124 [1] : vector<16x32xf32> to vector<16xf32>
    %298 = vector.shape_cast %297 : vector<16xf32> to vector<16x1xf32>
    %cst_125 = arith.constant 3.200000e+01 : f32
    %299 = vector.broadcast %cst_125 : f32 to vector<16x1xf32>
    %300 = arith.divf %298, %299 : vector<16x1xf32>
    %301 = vector.broadcast %300 : vector<16x1xf32> to vector<16x32xf32>
    %302 = arith.subf %296, %301 : vector<16x32xf32>
    %303 = arith.mulf %302, %302 : vector<16x32xf32>
    %cst_126 = arith.constant dense<0.000000e+00> : vector<16xf32>
    %304 = vector.multi_reduction <add>, %303, %cst_126 [1] : vector<16x32xf32> to vector<16xf32>
    %305 = vector.shape_cast %304 : vector<16xf32> to vector<16x1xf32>
    %cst_127 = arith.constant 3.200000e+01 : f32
    %306 = vector.broadcast %cst_127 : f32 to vector<16x1xf32>
    %307 = arith.divf %305, %306 : vector<16x1xf32>
    %308 = vector.broadcast %300 : vector<16x1xf32> to vector<16x32xf32>
    %309 = arith.subf %296, %308 : vector<16x32xf32>
    %cst_128 = arith.constant 9.99999974E-6 : f32
    %310 = vector.broadcast %cst_128 : f32 to vector<16x1xf32>
    %311 = arith.addf %307, %310 : vector<16x1xf32>
    %312 = math.rsqrt %311 : vector<16x1xf32>
    %313 = vector.broadcast %312 : vector<16x1xf32> to vector<16x32xf32>
    %314 = arith.mulf %309, %313 : vector<16x32xf32>
    %c26 = arith.constant 26 : index
    %c0_129 = arith.constant 0 : index
    %315 = vector.load %arg7[%c26, %c0_129] : memref<34x32xf32, #tpu.memory_space<vmem>>, vector<1x32xf32>
    %316 = vector.broadcast %315 : vector<1x32xf32> to vector<16x32xf32>
    %317 = arith.mulf %314, %316 : vector<16x32xf32>
    %c27 = arith.constant 27 : index
    %c0_130 = arith.constant 0 : index
    %318 = vector.load %arg7[%c27, %c0_130] : memref<34x32xf32, #tpu.memory_space<vmem>>, vector<1x32xf32>
    %319 = vector.broadcast %318 : vector<1x32xf32> to vector<16x32xf32>
    %320 = arith.addf %317, %319 : vector<16x32xf32>
    %c6_131 = arith.constant 6 : index
    %c0_132 = arith.constant 0 : index
    %c0_133 = arith.constant 0 : index
    %321 = vector.load %arg4[%c6_131, %c0_132, %c0_133] : memref<8x32x32xf32, #tpu.memory_space<vmem>>, vector<1x32x32xf32>
    %322 = vector.shape_cast %321 : vector<1x32x32xf32> to vector<32x32xf32>
    %cst_134 = arith.constant dense<0.000000e+00> : vector<16x32xf32>
    %323 = tpu.matmul %320, %322, %cst_134 {dimension_numbers = #tpu.dot_dimension_numbers<[1], [0], [0], [1], [0, 0, 1, 1], [], []>} : vector<16x32xf32>, vector<32x32xf32>, vector<16x32xf32> -> vector<16x32xf32>
    %c28 = arith.constant 28 : index
    %c0_135 = arith.constant 0 : index
    %324 = vector.load %arg7[%c28, %c0_135] : memref<34x32xf32, #tpu.memory_space<vmem>>, vector<1x32xf32>
    %325 = vector.broadcast %324 : vector<1x32xf32> to vector<16x32xf32>
    %326 = arith.addf %323, %325 : vector<16x32xf32>
    %c7_136 = arith.constant 7 : index
    %c0_137 = arith.constant 0 : index
    %c0_138 = arith.constant 0 : index
    %327 = vector.load %arg4[%c7_136, %c0_137, %c0_138] : memref<8x32x32xf32, #tpu.memory_space<vmem>>, vector<1x32x32xf32>
    %328 = vector.shape_cast %327 : vector<1x32x32xf32> to vector<32x32xf32>
    %cst_139 = arith.constant dense<0.000000e+00> : vector<32x32xf32>
    %329 = tpu.matmul %253, %328, %cst_139 {dimension_numbers = #tpu.dot_dimension_numbers<[1], [0], [0], [1], [0, 0, 1, 1], [], []>} : vector<32x32xf32>, vector<32x32xf32>, vector<32x32xf32> -> vector<32x32xf32>
    %c29 = arith.constant 29 : index
    %c0_140 = arith.constant 0 : index
    %330 = vector.load %arg7[%c29, %c0_140] : memref<34x32xf32, #tpu.memory_space<vmem>>, vector<1x32xf32>
    %331 = vector.broadcast %330 : vector<1x32xf32> to vector<32x32xf32>
    %332 = arith.addf %329, %331 : vector<32x32xf32>
    %333 = vector.shape_cast %326 : vector<16x32xf32> to vector<1x16x32xf32>
    %334 = vector.shape_cast %2 : vector<4x32xf32> to vector<4x1x32xf32>
    %335 = vector.broadcast %333 : vector<1x16x32xf32> to vector<4x16x32xf32>
    %336 = vector.broadcast %334 : vector<4x1x32xf32> to vector<4x16x32xf32>
    %337 = arith.mulf %335, %336 : vector<4x16x32xf32>
    %338 = vector.shape_cast %337 : vector<4x16x32xf32> to vector<64x32xf32>
    %cst_141 = arith.constant dense<0.000000e+00> : vector<64x32xf32>
    %339 = tpu.matmul %338, %332, %cst_141 {dimension_numbers = #tpu.dot_dimension_numbers<[1], [1], [0], [0], [0, 0, 1, 0], [], []>} : vector<64x32xf32>, vector<32x32xf32>, vector<64x32xf32> -> vector<64x32xf32>
    %cst_142 = arith.constant 0.353553385 : f32
    %340 = vector.broadcast %cst_142 : f32 to vector<64x32xf32>
    %341 = arith.mulf %339, %340 : vector<64x32xf32>
    %342 = arith.mulf %341, %8 : vector<64x32xf32>
    %c8_143 = arith.constant 8 : index
    %c0_144 = arith.constant 0 : index
    %343 = vector.load %arg1[%c8_143, %c0_144] : memref<24x16xf32, #tpu.memory_space<vmem>>, vector<16x16xf32>
    %c0_145 = arith.constant 0 : index
    %c0_146 = arith.constant 0 : index
    %c0_147 = arith.constant 0 : index
    %344 = vector.load %arg6[%c0_145, %c0_146, %c0_147] : memref<4x16x16xf32, #tpu.memory_space<vmem>>, vector<1x16x16xf32>
    %345 = vector.shape_cast %344 : vector<1x16x16xf32> to vector<16x16xf32>
    %cst_148 = arith.constant dense<0.000000e+00> : vector<16x16xf32>
    %346 = tpu.matmul %343, %345, %cst_148 {dimension_numbers = #tpu.dot_dimension_numbers<[1], [0], [0], [1], [0, 0, 1, 1], [], []>} : vector<16x16xf32>, vector<16x16xf32>, vector<16x16xf32> -> vector<16x16xf32>
    %c30 = arith.constant 30 : index
    %c0_149 = arith.constant 0 : index
    %347 = vector.load %arg7[%c30, %c0_149] : memref<34x32xf32, #tpu.memory_space<vmem>>, vector<1x16xf32>
    %348 = vector.broadcast %347 : vector<1x16xf32> to vector<16x16xf32>
    %349 = arith.addf %346, %348 : vector<16x16xf32>
    %cst_150 = arith.constant 0.000000e+00 : f32
    %350 = vector.broadcast %cst_150 : f32 to vector<16x16xf32>
    %351 = arith.maximumf %349, %350 : vector<16x16xf32>
    %c1_151 = arith.constant 1 : index
    %c0_152 = arith.constant 0 : index
    %c0_153 = arith.constant 0 : index
    %352 = vector.load %arg6[%c1_151, %c0_152, %c0_153] : memref<4x16x16xf32, #tpu.memory_space<vmem>>, vector<1x16x16xf32>
    %353 = vector.shape_cast %352 : vector<1x16x16xf32> to vector<16x16xf32>
    %cst_154 = arith.constant dense<0.000000e+00> : vector<16x16xf32>
    %354 = tpu.matmul %351, %353, %cst_154 {dimension_numbers = #tpu.dot_dimension_numbers<[1], [0], [0], [1], [0, 0, 1, 1], [], []>} : vector<16x16xf32>, vector<16x16xf32>, vector<16x16xf32> -> vector<16x16xf32>
    %c31 = arith.constant 31 : index
    %c0_155 = arith.constant 0 : index
    %355 = vector.load %arg7[%c31, %c0_155] : memref<34x32xf32, #tpu.memory_space<vmem>>, vector<1x16xf32>
    %356 = vector.broadcast %355 : vector<1x16xf32> to vector<16x16xf32>
    %357 = arith.addf %354, %356 : vector<16x16xf32>
    %358 = vector.extract_strided_slice %342 {offsets = [0, 0], sizes = [64, 16], strides = [1, 1]} : vector<64x32xf32> to vector<64x16xf32>
    %cst_156 = arith.constant dense<0.000000e+00> : vector<64x16xf32>
    %359 = tpu.matmul %358, %357, %cst_156 {dimension_numbers = #tpu.dot_dimension_numbers<[1], [0], [0], [1], [0, 0, 1, 1], [], []>} : vector<64x16xf32>, vector<16x16xf32>, vector<64x16xf32> -> vector<64x16xf32>
    %360 = vector.shape_cast %359 : vector<64x16xf32> to vector<4x16x16xf32>
    %361 = vector.shape_cast %3 : vector<4x16xf32> to vector<4x1x16xf32>
    %362 = vector.broadcast %361 : vector<4x1x16xf32> to vector<4x16x16xf32>
    %363 = arith.mulf %360, %362 : vector<4x16x16xf32>
    %cst_157 = arith.constant dense<0.000000e+00> : vector<16x16xf32>
    %364 = vector.multi_reduction <add>, %363, %cst_157 [0] : vector<4x16x16xf32> to vector<16x16xf32>
    %365 = vector.extract_strided_slice %364 {offsets = [0, 0], sizes = [8, 16], strides = [1, 1]} : vector<16x16xf32> to vector<8x16xf32>
    %c2_158 = arith.constant 2 : index
    %c0_159 = arith.constant 0 : index
    %c0_160 = arith.constant 0 : index
    %366 = vector.load %arg6[%c2_158, %c0_159, %c0_160] : memref<4x16x16xf32, #tpu.memory_space<vmem>>, vector<1x16x16xf32>
    %367 = vector.shape_cast %366 : vector<1x16x16xf32> to vector<16x16xf32>
    %cst_161 = arith.constant dense<0.000000e+00> : vector<8x16xf32>
    %368 = tpu.matmul %365, %367, %cst_161 {dimension_numbers = #tpu.dot_dimension_numbers<[1], [0], [0], [1], [0, 0, 1, 1], [], []>} : vector<8x16xf32>, vector<16x16xf32>, vector<8x16xf32> -> vector<8x16xf32>
    %c32 = arith.constant 32 : index
    %c0_162 = arith.constant 0 : index
    %369 = vector.load %arg7[%c32, %c0_162] : memref<34x32xf32, #tpu.memory_space<vmem>>, vector<1x16xf32>
    %370 = vector.broadcast %369 : vector<1x16xf32> to vector<8x16xf32>
    %371 = arith.addf %368, %370 : vector<8x16xf32>
    %cst_163 = arith.constant 0.000000e+00 : f32
    %372 = vector.broadcast %cst_163 : f32 to vector<8x16xf32>
    %373 = arith.maximumf %371, %372 : vector<8x16xf32>
    %c3_164 = arith.constant 3 : index
    %c0_165 = arith.constant 0 : index
    %c0_166 = arith.constant 0 : index
    %374 = vector.load %arg6[%c3_164, %c0_165, %c0_166] : memref<4x16x16xf32, #tpu.memory_space<vmem>>, vector<1x16x16xf32>
    %375 = vector.shape_cast %374 : vector<1x16x16xf32> to vector<16x16xf32>
    %cst_167 = arith.constant dense<0.000000e+00> : vector<8x16xf32>
    %376 = tpu.matmul %373, %375, %cst_167 {dimension_numbers = #tpu.dot_dimension_numbers<[1], [0], [0], [1], [0, 0, 1, 1], [], []>} : vector<8x16xf32>, vector<16x16xf32>, vector<8x16xf32> -> vector<8x16xf32>
    %c33 = arith.constant 33 : index
    %c0_168 = arith.constant 0 : index
    %377 = vector.load %arg7[%c33, %c0_168] : memref<34x32xf32, #tpu.memory_space<vmem>>, vector<1x16xf32>
    %378 = vector.broadcast %377 : vector<1x16xf32> to vector<8x16xf32>
    %379 = arith.addf %376, %378 : vector<8x16xf32>
    %c0_169 = arith.constant 0 : index
    %c0_170 = arith.constant 0 : index
    %380 = vector.load %arg10[%c0_169, %c0_170] : memref<8x16xf32, #tpu.memory_space<vmem>>, vector<8x16xf32>
    tpu.vector_store %arg10[%c0_169, %c0_170], %379 {strides = array<i32>} : memref<8x16xf32, #tpu.memory_space<vmem>>, vector<8x16xf32>,
    %c0_171 = arith.constant 0 : index
    %c0_172 = arith.constant 0 : index
    %381 = vector.load %arg11[%c0_171, %c0_172] : memref<128x16xf32, #tpu.memory_space<vmem>>, vector<128x16xf32>
    tpu.vector_store %arg11[%c0_171, %c0_172], %216 {strides = array<i32>} : memref<128x16xf32, #tpu.memory_space<vmem>>, vector<128x16xf32>,
    %382 = tpu.concatenate %283, %342 in 1 : vector<64x32xf32>, vector<64x32xf32> -> vector<64x64xf32>
    %c0_173 = arith.constant 0 : index
    %c0_174 = arith.constant 0 : index
    %383 = vector.load %arg12[%c0_173, %c0_174] : memref<64x64xf32, #tpu.memory_space<vmem>>, vector<64x64xf32>
    tpu.vector_store %arg12[%c0_173, %c0_174], %382 {strides = array<i32>} : memref<64x64xf32, #tpu.memory_space<vmem>>, vector<64x64xf32>,
    return
  }
}

</mosaic_0001>

<llo_original>
// kernel: mul.5
$region0: #{mul.5}
  %s0 = inlined_call_operand.vmem [shape: f32[2,1,4], index: 0, kind: input, shape index: {}]
  %s1 = inlined_call_operand.vmem [shape: f32[8], index: 1, kind: output, shape index: {}]
  $region1: #{mul.5} parent=0
    #allocation0 [shape = 'u8[4096]{0}', space=vmem, size = 0x1000, scoped, tag = 'scoped mem for output reshape']
    #allocation1 [shape = 'u8[4096]{0}', space=vmem, size = 0x1000, scoped, tag = 'scoped mem for input reshape']
    %s3 = ssub.s32 4, 1
    %v4 = vld [vmem:[%s0] sm:%s3]
    %5 = vst [vmem:[#allocation1] sm:%s3] %v4
    %v6 = vld [vmem:[#allocation1] sm:$0x1]
    %vm7 = vcmask 31744
    %8 = vst.msk [vmem:[#allocation0] sm:$0x1] %vm7, %v6
    %s9 = scalar_lea.vmem [#allocation1], 1
    %v10 = vld [vmem:[%s9] sm:$0x1]
    %11 = vrot.lane.b32.xlu0 %v10, 4
    %v12 = vpop.permute.xlu0 %11
    %vm13 = vcmask 64544
    %14 = vst.msk [vmem:[#allocation0] sm:$0x1] %vm13, %v12
    %s16 = ssub.s32 2, 1
    %v17 = vld [vmem:[#allocation0] sm:%s16]
    %s19 = ssub.s32 2, 1
    %20 = vst [vmem:[%s1] sm:%s19] %v17

// kernel: basisformer_forward.1
$region0: #{basisformer_forward.1}
  #allocation0 [shape = 'u32[]', space=smem, size = 0x4, offset = 0x4, fixed_abs, tag = 'smem constant byte address 0x4 - core index']
  #allocation1 [shape = 'u32[72,128]{1,0:T(1,128)}', space=vmem, size = 0x9000, scoped, tag = 'internal scratch']
  %s0 = inlined_call_operand.vmem [shape: f32[24,16], index: 0, kind: input, shape index: {}]
  %s1 = inlined_call_operand.vmem [shape: f32[24,16], index: 1, kind: input, shape index: {}]
  %s2 = inlined_call_operand.vmem [shape: f32[16,64], index: 2, kind: input, shape index: {}]
  %s3 = inlined_call_operand.vmem [shape: f32[16,64], index: 3, kind: input, shape index: {}]
  %s4 = inlined_call_operand.vmem [shape: f32[8,32,32], index: 4, kind: input, shape index: {}]
  %s5 = inlined_call_operand.vmem [shape: f32[4,32,96], index: 5, kind: input, shape index: {}]
  %s6 = inlined_call_operand.vmem [shape: f32[4,16,16], index: 6, kind: input, shape index: {}]
  %s7 = inlined_call_operand.vmem [shape: f32[34,32], index: 7, kind: input, shape index: {}]
  %s8 = inlined_call_operand.vmem [shape: f32[192,32], index: 8, kind: input, shape index: {}]
  %s9 = inlined_call_operand.vmem [shape: f32[16,32], index: 9, kind: input, shape index: {}]
  %s10 = inlined_call_operand.vmem [shape: f32[8,16], index: 10, kind: output, shape index: {0}]
  %s11 = inlined_call_operand.vmem [shape: f32[128,16], index: 11, kind: output, shape index: {1}]
  %s12 = inlined_call_operand.vmem [shape: f32[64,64], index: 12, kind: output, shape index: {2}]
  %13 = xla_tuple %s10, %s11, %s12
  %s14 = sld [smem:[#allocation0]]
  $region66: #{basisformer_forward.1} parent=0
    _
  %s16 = ssub.s32 1, %s14
  %s17 = scalar_select 0, %s16, %s14
  // Predicated region
  $region2: #{basisformer_forward.1} parent=0 // pred_check
    _
  $region3: #{basisformer_forward.1} parent=0 // pred_check_branch
    %19 = sbr.rel (0) target = $region5
  $region4: #{basisformer_forward.1} parent=0 // pred_region
    _
  $region5: #{basisformer_forward.1} parent=0 // pred_fallthru
    _
  // Predicated region
  $region6: #{basisformer_forward.1} parent=0 // pred_check
    _
  $region7: #{basisformer_forward.1} parent=0 // pred_check_branch
    %21 = sbr.rel (0) target = $region9
  $region8: #{basisformer_forward.1} parent=0 // pred_region
    _
  $region9: #{basisformer_forward.1} parent=0 // pred_fallthru
    _
  // Predicated region
  $region10: #{basisformer_forward.1} parent=0 // pred_check
    _
  $region11: #{basisformer_forward.1} parent=0 // pred_check_branch
    %23 = sbr.rel (0) target = $region13
  $region12: #{basisformer_forward.1} parent=0 // pred_region
    _
  $region13: #{basisformer_forward.1} parent=0 // pred_fallthru
    _
  // Predicated region
  $region14: #{basisformer_forward.1} parent=0 // pred_check
    _
  $region15: #{basisformer_forward.1} parent=0 // pred_check_branch
    %25 = sbr.rel (0) target = $region17
  $region16: #{basisformer_forward.1} parent=0 // pred_region
    _
  $region17: #{basisformer_forward.1} parent=0 // pred_fallthru
    _
  // Predicated region
  $region18: #{basisformer_forward.1} parent=0 // pred_check
    _
  $region19: #{basisformer_forward.1} parent=0 // pred_check_branch
    %27 = sbr.rel (0) target = $region21
  $region20: #{basisformer_forward.1} parent=0 // pred_region
    _
  $region21: #{basisformer_forward.1} parent=0 // pred_fallthru
    _
  // Predicated region
  $region22: #{basisformer_forward.1} parent=0 // pred_check
    _
  $region23: #{basisformer_forward.1} parent=0 // pred_check_branch
    %29 = sbr.rel (0) target = $region25
  $region24: #{basisformer_forward.1} parent=0 // pred_region
    _
  $region25: #{basisformer_forward.1} parent=0 // pred_fallthru
    _
  // Predicated region
  $region26: #{basisformer_forward.1} parent=0 // pred_check
    _
  $region27: #{basisformer_forward.1} parent=0 // pred_check_branch
    %31 = sbr.rel (0) target = $region29
  $region28: #{basisformer_forward.1} parent=0 // pred_region
    _
  $region29: #{basisformer_forward.1} parent=0 // pred_fallthru
    _
  // Predicated region
  $region30: #{basisformer_forward.1} parent=0 // pred_check
    _
  $region31: #{basisformer_forward.1} parent=0 // pred_check_branch
    %33 = sbr.rel (0) target = $region33
  $region32: #{basisformer_forward.1} parent=0 // pred_region
    _
  $region33: #{basisformer_forward.1} parent=0 // pred_fallthru
    _
  // Predicated region
  $region34: #{basisformer_forward.1} parent=0 // pred_check
    _
  $region35: #{basisformer_forward.1} parent=0 // pred_check_branch
    %35 = sbr.rel (0) target = $region37
  $region36: #{basisformer_forward.1} parent=0 // pred_region
    _
  $region37: #{basisformer_forward.1} parent=0 // pred_fallthru
    _
  // Predicated region
  $region38: #{basisformer_forward.1} parent=0 // pred_check
    _
  $region39: #{basisformer_forward.1} parent=0 // pred_check_branch
    %37 = sbr.rel (0) target = $region41
  $region40: #{basisformer_forward.1} parent=0 // pred_region
    _
  $region41: #{basisformer_forward.1} parent=0 // pred_fallthru
    _
  %v38 = vld [vmem:[%s8] sm:$0xff]
  %v39 = vld [vmem:[%s8 + $0x8] sm:$0xff]
  %v40 = vld [vmem:[%s8 + $0x10] sm:$0xff]
  %v41 = vld [vmem:[%s8 + $0x18] sm:$0xff]
  %v42 = vld [vmem:[%s8 + $0x20] sm:$0xff]
  %v43 = vld [vmem:[%s8 + $0x28] sm:$0xff]
  %v44 = vld [vmem:[%s8 + $0x30] sm:$0xff]
  %v45 = vld [vmem:[%s8 + $0x38] sm:$0xff]
  %v46 = vld [vmem:[%s8 + $0x40] sm:$0xff]
  %v47 = vld [vmem:[%s8 + $0x48] sm:$0xff]
  %v48 = vld [vmem:[%s8 + $0x50] sm:$0xff]
  %v49 = vld [vmem:[%s8 + $0x58] sm:$0xff]
  %v50 = vld [vmem:[%s8 + $0x60] sm:$0xff]
  %v51 = vld [vmem:[%s8 + $0x68] sm:$0xff]
  %v52 = vld [vmem:[%s8 + $0x70] sm:$0xff]
  %v53 = vld [vmem:[%s8 + $0x78] sm:$0xff]
  %v54 = vld [vmem:[%s8 + $0x80] sm:$0xff]
  %v55 = vld [vmem:[%s8 + $0x88] sm:$0xff]
  %v56 = vld [vmem:[%s8 + $0x90] sm:$0xff]
  %v57 = vld [vmem:[%s8 + $0x98] sm:$0xff]
  %v58 = vld [vmem:[%s8 + $0xa0] sm:$0xff]
  %v59 = vld [vmem:[%s8 + $0xa8] sm:$0xff]
  %v60 = vld [vmem:[%s8 + $0xb0] sm:$0xff]
  %v61 = vld [vmem:[%s8 + $0xb8] sm:$0xff]
  %v62 = vld [vmem:[%s9] sm:$0xf]
  %v63 = vld [vmem:[%s9 + $0x8] sm:$0xf]
  %vm64 = vcmp.gt.f32.partialorder %v54, -1.0
  %vm65 = vcmp.gt.f32.partialorder %v55, -1.0
  %vm66 = vcmp.gt.f32.partialorder %v56, -1.0
  %vm67 = vcmp.gt.f32.partialorder %v57, -1.0
  %vm68 = vcmp.gt.f32.partialorder %v58, -1.0
  %vm69 = vcmp.gt.f32.partialorder %v59, -1.0
  %vm70 = vcmp.gt.f32.partialorder %v60, -1.0
  %vm71 = vcmp.gt.f32.partialorder %v61, -1.0
  %v72 = vsel %vm64, 1.0, 0.0
  %v73 = vsel %vm65, 1.0, 0.0
  %v74 = vsel %vm66, 1.0, 0.0
  %v75 = vsel %vm67, 1.0, 0.0
  %v76 = vsel %vm68, 1.0, 0.0
  %v77 = vsel %vm69, 1.0, 0.0
  %v78 = vsel %vm70, 1.0, 0.0
  %v79 = vsel %vm71, 1.0, 0.0
  %v80 = vld [vmem:[%s0] sm:$0xff]
  %v81 = vld [vmem:[%s0 + $0x8] sm:$0xff]
  %v82 = vld [vmem:[%s0 + $0x10] sm:$0xff]
  %v83 = vld [vmem:[%s2] sm:$0xff]
  %v84 = vld [vmem:[%s2 + $0x8] sm:$0xff]
  %vm85 = vcmask 130048
  %v87 = vsel %vm85, %v80, 0
  %v90 = vsel %vm85, %v81, 0
  %v93 = vsel %vm85, %v82, 0
  %95 = vmatpush.msra.mxu0 0.0
  %96 = vmatpush.msra.mxu0 0.0
  %97 = vmatpush.msra.mxu0 0.0
  %98 = vmatpush.msra.mxu0 0.0
  %99 = vmatpush.msra.mxu0 0.0
  %100 = vmatpush.msra.mxu0 0.0
  %101 = vmatpush.msra.mxu0 0.0
  %102 = vmatpush.msra.mxu0 0.0
  %103 = vmatpush.msra.mxu0 0.0
  %104 = vmatpush.msra.mxu0 0.0
  %105 = vmatpush.msra.mxu0 0.0
  %106 = vmatpush.msra.mxu0 0.0
  %107 = vmatpush.msra.mxu0 0.0
  %108 = vmatpush.msra.mxu0 0.0
  %109 = vmatpush.msra.mxu0 %v84
  %110 = vmatpush.msra.mxu0 %v83
  %111 = vmatmul.f32.gmra.mxu0 %v87
  %v112 = vpop.f32.mrf.mxu0
  %v113 = vadd.f32 0.0, %v112
  %114 = vmatmul.f32.gmra.mxu0 %v90
  %v115 = vpop.f32.mrf.mxu0
  %v116 = vadd.f32 0.0, %v115
  %117 = vmatmul.f32.gmra.mxu0 %v93
  %v118 = vpop.f32.mrf.mxu0
  %v119 = vadd.f32 0.0, %v118
  %120 = vdwg.mxu0
  %v121 = vld [vmem:[%s1] sm:$0xff]
  %v122 = vld [vmem:[%s1 + $0x8] sm:$0xff]
  %v123 = vld [vmem:[%s1 + $0x10] sm:$0xff]
  %v124 = vld [vmem:[%s3] sm:$0xff]
  %v125 = vld [vmem:[%s3 + $0x8] sm:$0xff]
  %v127 = vsel %vm85, %v121, 0
  %v130 = vsel %vm85, %v122, 0
  %v133 = vsel %vm85, %v123, 0
  %135 = vmatpush.msra.mxu0 0.0
  %136 = vmatpush.msra.mxu0 0.0
  %137 = vmatpush.msra.mxu0 0.0
  %138 = vmatpush.msra.mxu0 0.0
  %139 = vmatpush.msra.mxu0 0.0
  %140 = vmatpush.msra.mxu0 0.0
  %141 = vmatpush.msra.mxu0 0.0
  %142 = vmatpush.msra.mxu0 0.0
  %143 = vmatpush.msra.mxu0 0.0
  %144 = vmatpush.msra.mxu0 0.0
  %145 = vmatpush.msra.mxu0 0.0
  %146 = vmatpush.msra.mxu0 0.0
  %147 = vmatpush.msra.mxu0 0.0
  %148 = vmatpush.msra.mxu0 0.0
  %149 = vmatpush.msra.mxu0 %v125
  %150 = vmatpush.msra.mxu0 %v124
  %151 = vmatmul.f32.gmra.mxu0 %v127
  %v152 = vpop.f32.mrf.mxu0
  %v153 = vadd.f32 0.0, %v152
  %154 = vmatmul.f32.gmra.mxu0 %v130
  %v155 = vpop.f32.mrf.mxu0
  %v156 = vadd.f32 0.0, %v155
  %157 = vmatmul.f32.gmra.mxu0 %v133
  %v158 = vpop.f32.mrf.mxu0
  %v159 = vadd.f32 0.0, %v158
  %160 = vdwg.mxu0
  %v161 = vld [vmem:[%s7] sm:$0x1]
  %v162 = vperm.slane %v161, 0
  %v163 = vadd.f32 %v113, %v162
  %v164 = vld [vmem:[%s7 + $0x1] sm:$0x1]
  %v165 = vperm.slane %v164, 0
  %167 = vrot.lane.b32.xlu0 %v165, 32
  %v168 = vpop.permute.xlu0 %167
  %v170 = vadd.f32 %v116, %v168
  %v171 = vadd.f32 %v119, %v168
  %v172 = vld [vmem:[%s7 + $0x2] sm:$0x1]
  %v173 = vperm.slane %v172, 0
  %v174 = vadd.f32 %v153, %v173
  %v175 = vld [vmem:[%s7 + $0x3] sm:$0x1]
  %v176 = vperm.slane %v175, 0
  %178 = vrot.lane.b32.xlu0 %v176, 32
  %v179 = vpop.permute.xlu0 %178
  %v181 = vadd.f32 %v156, %v179
  %v182 = vadd.f32 %v159, %v179
  %v183 = vld [vmem:[%s4] sm:$0xff]
  %v184 = vld [vmem:[%s4 + $0x8] sm:$0xff]
  %v185 = vld [vmem:[%s4 + $0x10] sm:$0xff]
  %v186 = vld [vmem:[%s4 + $0x18] sm:$0xff]
  %v187 = vld [vmem:[%s7 + $0x4] sm:$0x1]
  %v188 = vperm.slane %v187, 0
  %193 = vrot.lane.b32.xlu0 %v170, 96
  %v194 = vpop.permute.xlu0 %193
  %195 = vrot.lane.b32.xlu0 %v171, 96
  %v196 = vpop.permute.xlu0 %195
  %197 = vrot.lane.b32.xlu0 %v181, 96
  %v198 = vpop.permute.xlu0 %197
  %199 = vrot.lane.b32.xlu0 %v182, 96
  %v200 = vpop.permute.xlu0 %199
  %vm201 = vcmask 261120
  %v202 = vsel %vm201, %v194, 0
  %v204 = vsel %vm201, %v196, 0
  %v206 = vsel %vm201, %v198, 0
  %v208 = vsel %vm201, %v200, 0
  %210 = vmatpush.msra.mxu0 0.0
  %211 = vmatpush.msra.mxu0 0.0
  %212 = vmatpush.msra.mxu0 0.0
  %213 = vmatpush.msra.mxu0 0.0
  %214 = vmatpush.msra.mxu0 0.0
  %215 = vmatpush.msra.mxu0 0.0
  %216 = vmatpush.msra.mxu0 0.0
  %217 = vmatpush.msra.mxu0 0.0
  %218 = vmatpush.msra.mxu0 0.0
  %219 = vmatpush.msra.mxu0 0.0
  %220 = vmatpush.msra.mxu0 0.0
  %221 = vmatpush.msra.mxu0 0.0
  %222 = vmatpush.msra.mxu0 %v186
  %223 = vmatpush.msra.mxu0 %v185
  %224 = vmatpush.msra.mxu0 %v184
  %225 = vmatpush.msra.mxu0 %v183
  %226 = vmatmul.f32.gmra.mxu0 %v202
  %v227 = vpop.f32.mrf.mxu0
  %v228 = vadd.f32 %v188, %v227
  %229 = vmatmul.f32.gmra.mxu0 %v204
  %v230 = vpop.f32.mrf.mxu0
  %v231 = vadd.f32 %v188, %v230
  %232 = vmatmul.f32.gmra.mxu0 %v206
  %v233 = vpop.f32.mrf.mxu0
  %v234 = vadd.f32 %v188, %v233
  %235 = vmatmul.f32.gmra.mxu0 %v208
  %v236 = vpop.f32.mrf.mxu0
  %v237 = vadd.f32 %v188, %v236
  %238 = vdwg.mxu0
  %v239 = vld [vmem:[%s5] sm:$0xff]
  %v240 = vld [vmem:[%s5 + $0x8] sm:$0xff]
  %v241 = vld [vmem:[%s5 + $0x10] sm:$0xff]
  %v242 = vld [vmem:[%s5 + $0x18] sm:$0xff]
  %v244 = vsel %vm201, %v163, 0
  %v247 = vsel %vm201, %v174, 0
  %249 = vmatpush.msra.mxu0 0.0
  %250 = vmatpush.msra.mxu0 0.0
  %251 = vmatpush.msra.mxu0 0.0
  %252 = vmatpush.msra.mxu0 0.0
  %253 = vmatpush.msra.mxu0 0.0
  %254 = vmatpush.msra.mxu0 0.0
  %255 = vmatpush.msra.mxu0 0.0
  %256 = vmatpush.msra.mxu0 0.0
  %257 = vmatpush.msra.mxu0 0.0
  %258 = vmatpush.msra.mxu0 0.0
  %259 = vmatpush.msra.mxu0 0.0
  %260 = vmatpush.msra.mxu0 0.0
  %261 = vmatpush.msra.mxu0 %v242
  %262 = vmatpush.msra.mxu0 %v241
  %263 = vmatpush.msra.mxu0 %v240
  %264 = vmatpush.msra.mxu0 %v239
  %265 = vmatmul.f32.gmra.mxu0 %v244
  %v266 = vpop.f32.mrf.mxu0
  %v267 = vadd.f32 0.0, %v266
  %268 = vmatmul.f32.gmra.mxu0 %v247
  %v269 = vpop.f32.mrf.mxu0
  %v270 = vadd.f32 0.0, %v269
  %271 = vdwg.mxu0
  %v272 = vld [vmem:[%s7 + $0x5] sm:$0x1]
  %v273 = vperm.slane %v272, 0
  %v274 = vadd.f32 %v267, %v273
  %v275 = vadd.f32 %v270, %v273
  %v276 = vld [vmem:[%s7 + $0x6] sm:$0x1]
  %v277 = vperm.slane %v276, 0
  %279 = vrot.lane.b32.xlu0 %v277, 32
  %v280 = vpop.permute.xlu0 %279
  %v282 = vadd.f32 %v267, %v280
  %v283 = vadd.f32 %v270, %v280
  %v284 = vld [vmem:[%s7 + $0x7] sm:$0x1]
  %v285 = vperm.slane %v284, 0
  %287 = vrot.lane.b32.xlu0 %v285, 64
  %v288 = vpop.permute.xlu0 %287
  %v290 = vadd.f32 %v267, %v288
  %v291 = vadd.f32 %v270, %v288
  %v293 = vrot.slane %v62, 1
  %v294 = vrot.slane %v62, 2
  %v295 = vrot.slane %v62, 3
  %v296 = vperm.slane %v62, 0
  %v297 = vperm.slane %v293, 0
  %v298 = vperm.slane %v294, 0
  %v299 = vperm.slane %v295, 0
  %v304 = vmul.f32 %v228, %v296
  %v305 = vmul.f32 %v231, %v296
  %v306 = vmul.f32 %v234, %v296
  %v307 = vmul.f32 %v237, %v296
  %v308 = vmul.f32 %v228, %v297
  %v309 = vmul.f32 %v231, %v297
  %v310 = vmul.f32 %v234, %v297
  %v311 = vmul.f32 %v237, %v297
  %v312 = vmul.f32 %v228, %v298
  %v313 = vmul.f32 %v231, %v298
  %v314 = vmul.f32 %v234, %v298
  %v315 = vmul.f32 %v237, %v298
  %v316 = vmul.f32 %v228, %v299
  %v317 = vmul.f32 %v231, %v299
  %v318 = vmul.f32 %v234, %v299
  %v319 = vmul.f32 %v237, %v299
  %v321 = vsel %vm201, %v304, 0
  %v324 = vsel %vm201, %v305, 0
  %v327 = vsel %vm201, %v306, 0
  %v330 = vsel %vm201, %v307, 0
  %v333 = vsel %vm201, %v308, 0
  %v336 = vsel %vm201, %v309, 0
  %v339 = vsel %vm201, %v310, 0
  %v342 = vsel %vm201, %v311, 0
  %v345 = vsel %vm201, %v312, 0
  %v348 = vsel %vm201, %v313, 0
  %v351 = vsel %vm201, %v314, 0
  %v354 = vsel %vm201, %v315, 0
  %v357 = vsel %vm201, %v316, 0
  %v360 = vsel %vm201, %v317, 0
  %v363 = vsel %vm201, %v318, 0
  %v366 = vsel %vm201, %v319, 0
  %v369 = vsel %vm201, %v274, 0
  %v372 = vsel %vm201, %v275, 0
  %374 = vmatpush.xpose.msra.mxu0 0.0
  %375 = vmatpush.xpose.msra.mxu0 0.0
  %376 = vmatpush.xpose.msra.mxu0 0.0
  %377 = vmatpush.xpose.msra.mxu0 0.0
  %378 = vmatpush.xpose.msra.mxu0 0.0
  %379 = vmatpush.xpose.msra.mxu0 0.0
  %380 = vmatpush.xpose.msra.mxu0 0.0
  %381 = vmatpush.xpose.msra.mxu0 0.0
  %382 = vmatpush.xpose.msra.mxu0 0.0
  %383 = vmatpush.xpose.msra.mxu0 0.0
  %384 = vmatpush.xpose.msra.mxu0 0.0
  %385 = vmatpush.xpose.msra.mxu0 0.0
  %386 = vmatpush.xpose.msra.mxu0 0.0
  %387 = vmatpush.xpose.msra.mxu0 0.0
  %388 = vmatpush.xpose.msra.mxu0 %v372
  %389 = vmatpush.xpose.msra.mxu0 %v369
  %390 = vmatmul.f32.gmra.mxu0 %v321
  %v391 = vpop.f32.mrf.mxu0
  %v392 = vadd.f32 0.0, %v391
  %393 = vmatmul.f32.gmra.mxu0 %v324
  %v394 = vpop.f32.mrf.mxu0
  %v395 = vadd.f32 0.0, %v394
  %396 = vmatmul.f32.gmra.mxu0 %v327
  %v397 = vpop.f32.mrf.mxu0
  %v398 = vadd.f32 0.0, %v397
  %399 = vmatmul.f32.gmra.mxu0 %v330
  %v400 = vpop.f32.mrf.mxu0
  %v401 = vadd.f32 0.0, %v400
  %402 = vmatmul.f32.gmra.mxu0 %v333
  %v403 = vpop.f32.mrf.mxu0
  %v404 = vadd.f32 0.0, %v403
  %405 = vmatmul.f32.gmra.mxu0 %v336
  %v406 = vpop.f32.mrf.mxu0
  %v407 = vadd.f32 0.0, %v406
  %408 = vmatmul.f32.gmra.mxu0 %v339
  %v409 = vpop.f32.mrf.mxu0
  %v410 = vadd.f32 0.0, %v409
  %411 = vmatmul.f32.gmra.mxu0 %v342
  %v412 = vpop.f32.mrf.mxu0
  %v413 = vadd.f32 0.0, %v412
  %414 = vmatmul.f32.gmra.mxu0 %v345
  %v415 = vpop.f32.mrf.mxu0
  %v416 = vadd.f32 0.0, %v415
  %417 = vmatmul.f32.gmra.mxu0 %v348
  %v418 = vpop.f32.mrf.mxu0
  %v419 = vadd.f32 0.0, %v418
  %420 = vmatmul.f32.gmra.mxu0 %v351
  %v421 = vpop.f32.mrf.mxu0
  %v422 = vadd.f32 0.0, %v421
  %423 = vmatmul.f32.gmra.mxu0 %v354
  %v424 = vpop.f32.mrf.mxu0
  %v425 = vadd.f32 0.0, %v424
  %426 = vmatmul.f32.gmra.mxu0 %v357
  %v427 = vpop.f32.mrf.mxu0
  %v428 = vadd.f32 0.0, %v427
  %429 = vmatmul.f32.gmra.mxu0 %v360
  %v430 = vpop.f32.mrf.mxu0
  %v431 = vadd.f32 0.0, %v430
  %432 = vmatmul.f32.gmra.mxu0 %v363
  %v433 = vpop.f32.mrf.mxu0
  %v434 = vadd.f32 0.0, %v433
  %435 = vmatmul.f32.gmra.mxu0 %v366
  %v436 = vpop.f32.mrf.mxu0
  %v437 = vadd.f32 0.0, %v436
  %438 = vdwg.mxu0
  %v439 = vmul.f32 %v392, 0.35355338
  %v440 = vmul.f32 %v395, 0.35355338
  %v441 = vmul.f32 %v398, 0.35355338
  %v442 = vmul.f32 %v401, 0.35355338
  %v443 = vmul.f32 %v404, 0.35355338
  %v444 = vmul.f32 %v407, 0.35355338
  %v445 = vmul.f32 %v410, 0.35355338
  %v446 = vmul.f32 %v413, 0.35355338
  %v447 = vmul.f32 %v416, 0.35355338
  %v448 = vmul.f32 %v419, 0.35355338
  %v449 = vmul.f32 %v422, 0.35355338
  %v450 = vmul.f32 %v425, 0.35355338
  %v451 = vmul.f32 %v428, 0.35355338
  %v452 = vmul.f32 %v431, 0.35355338
  %v453 = vmul.f32 %v434, 0.35355338
  %v454 = vmul.f32 %v437, 0.35355338
  %v455 = vadd.f32 %v439, %v38
  %v456 = vadd.f32 %v440, %v39
  %v457 = vadd.f32 %v441, %v40
  %v458 = vadd.f32 %v442, %v41
  %v459 = vadd.f32 %v443, %v42
  %v460 = vadd.f32 %v444, %v43
  %v461 = vadd.f32 %v445, %v44
  %v462 = vadd.f32 %v446, %v45
  %v463 = vadd.f32 %v447, %v46
  %v464 = vadd.f32 %v448, %v47
  %v465 = vadd.f32 %v449, %v48
  %v466 = vadd.f32 %v450, %v49
  %v467 = vadd.f32 %v451, %v50
  %v468 = vadd.f32 %v452, %v51
  %v469 = vadd.f32 %v453, %v52
  %v470 = vadd.f32 %v454, %v53
  %v471 = vsel %vm85, %v455, -inf
  %472 = vmax.xlane.f32.xlu0 %v471
  %v473 = vpop.xlane.xlu0 %472
  %v474 = vsel %vm85, %v456, -inf
  %475 = vmax.xlane.f32.xlu0 %v474
  %v476 = vpop.xlane.xlu0 %475
  %v477 = vsel %vm85, %v457, -inf
  %478 = vmax.xlane.f32.xlu0 %v477
  %v479 = vpop.xlane.xlu0 %478
  %v480 = vsel %vm85, %v458, -inf
  %481 = vmax.xlane.f32.xlu0 %v480
  %v482 = vpop.xlane.xlu0 %481
  %v483 = vsel %vm85, %v459, -inf
  %484 = vmax.xlane.f32.xlu0 %v483
  %v485 = vpop.xlane.xlu0 %484
  %v486 = vsel %vm85, %v460, -inf
  %487 = vmax.xlane.f32.xlu0 %v486
  %v488 = vpop.xlane.xlu0 %487
  %v489 = vsel %vm85, %v461, -inf
  %490 = vmax.xlane.f32.xlu0 %v489
  %v491 = vpop.xlane.xlu0 %490
  %v492 = vsel %vm85, %v462, -inf
  %493 = vmax.xlane.f32.xlu0 %v492
  %v494 = vpop.xlane.xlu0 %493
  %v495 = vsel %vm85, %v463, -inf
  %496 = vmax.xlane.f32.xlu0 %v495
  %v497 = vpop.xlane.xlu0 %496
  %v498 = vsel %vm85, %v464, -inf
  %499 = vmax.xlane.f32.xlu0 %v498
  %v500 = vpop.xlane.xlu0 %499
  %v501 = vsel %vm85, %v465, -inf
  %502 = vmax.xlane.f32.xlu0 %v501
  %v503 = vpop.xlane.xlu0 %502
  %v504 = vsel %vm85, %v466, -inf
  %505 = vmax.xlane.f32.xlu0 %v504
  %v506 = vpop.xlane.xlu0 %505
  %v507 = vsel %vm85, %v467, -inf
  %508 = vmax.xlane.f32.xlu0 %v507
  %v509 = vpop.xlane.xlu0 %508
  %v510 = vsel %vm85, %v468, -inf
  %511 = vmax.xlane.f32.xlu0 %v510
  %v512 = vpop.xlane.xlu0 %511
  %v513 = vsel %vm85, %v469, -inf
  %514 = vmax.xlane.f32.xlu0 %v513
  %v515 = vpop.xlane.xlu0 %514
  %v516 = vsel %vm85, %v470, -inf
  %517 = vmax.xlane.f32.xlu0 %v516
  %v518 = vpop.xlane.xlu0 %517
  %v519 = vsub.f32 %v455, %v473
  %v520 = vsub.f32 %v456, %v476
  %v521 = vsub.f32 %v457, %v479
  %v522 = vsub.f32 %v458, %v482
  %v523 = vsub.f32 %v459, %v485
  %v524 = vsub.f32 %v460, %v488
  %v525 = vsub.f32 %v461, %v491
  %v526 = vsub.f32 %v462, %v494
  %v527 = vsub.f32 %v463, %v497
  %v528 = vsub.f32 %v464, %v500
  %v529 = vsub.f32 %v465, %v503
  %v530 = vsub.f32 %v466, %v506
  %v531 = vsub.f32 %v467, %v509
  %v532 = vsub.f32 %v468, %v512
  %v533 = vsub.f32 %v469, %v515
  %v534 = vsub.f32 %v470, %v518
  %v535 = vmul.f32 %v519, 1.442695
  %v536 = vpow.pop %v535
  %v537 = vmul.f32 %v520, 1.442695
  %v538 = vpow.pop %v537
  %v539 = vmul.f32 %v521, 1.442695
  %v540 = vpow.pop %v539
  %v541 = vmul.f32 %v522, 1.442695
  %v542 = vpow.pop %v541
  %v543 = vmul.f32 %v523, 1.442695
  %v544 = vpow.pop %v543
  %v545 = vmul.f32 %v524, 1.442695
  %v546 = vpow.pop %v545
  %v547 = vmul.f32 %v525, 1.442695
  %v548 = vpow.pop %v547
  %v549 = vmul.f32 %v526, 1.442695
  %v550 = vpow.pop %v549
  %v551 = vmul.f32 %v527, 1.442695
  %v552 = vpow.pop %v551
  %v553 = vmul.f32 %v528, 1.442695
  %v554 = vpow.pop %v553
  %v555 = vmul.f32 %v529, 1.442695
  %v556 = vpow.pop %v555
  %v557 = vmul.f32 %v530, 1.442695
  %v558 = vpow.pop %v557
  %v559 = vmul.f32 %v531, 1.442695
  %v560 = vpow.pop %v559
  %v561 = vmul.f32 %v532, 1.442695
  %v562 = vpow.pop %v561
  %v563 = vmul.f32 %v533, 1.442695
  %v564 = vpow.pop %v563
  %v565 = vmul.f32 %v534, 1.442695
  %v566 = vpow.pop %v565
  %v567 = vsel %vm85, %v536, 0.0
  %568 = vadd.xlane.f32.xlu0 %v567
  %v569 = vpop.xlane.xlu0 %568
  %v570 = vsel %vm85, %v538, 0.0
  %571 = vadd.xlane.f32.xlu0 %v570
  %v572 = vpop.xlane.xlu0 %571
  %v573 = vsel %vm85, %v540, 0.0
  %574 = vadd.xlane.f32.xlu0 %v573
  %v575 = vpop.xlane.xlu0 %574
  %v576 = vsel %vm85, %v542, 0.0
  %577 = vadd.xlane.f32.xlu0 %v576
  %v578 = vpop.xlane.xlu0 %577
  %v579 = vsel %vm85, %v544, 0.0
  %580 = vadd.xlane.f32.xlu0 %v579
  %v581 = vpop.xlane.xlu0 %580
  %v582 = vsel %vm85, %v546, 0.0
  %583 = vadd.xlane.f32.xlu0 %v582
  %v584 = vpop.xlane.xlu0 %583
  %v585 = vsel %vm85, %v548, 0.0
  %586 = vadd.xlane.f32.xlu0 %v585
  %v587 = vpop.xlane.xlu0 %586
  %v588 = vsel %vm85, %v550, 0.0
  %589 = vadd.xlane.f32.xlu0 %v588
  %v590 = vpop.xlane.xlu0 %589
  %v591 = vsel %vm85, %v552, 0.0
  %592 = vadd.xlane.f32.xlu0 %v591
  %v593 = vpop.xlane.xlu0 %592
  %v594 = vsel %vm85, %v554, 0.0
  %595 = vadd.xlane.f32.xlu0 %v594
  %v596 = vpop.xlane.xlu0 %595
  %v597 = vsel %vm85, %v556, 0.0
  %598 = vadd.xlane.f32.xlu0 %v597
  %v599 = vpop.xlane.xlu0 %598
  %v600 = vsel %vm85, %v558, 0.0
  %601 = vadd.xlane.f32.xlu0 %v600
  %v602 = vpop.xlane.xlu0 %601
  %v603 = vsel %vm85, %v560, 0.0
  %604 = vadd.xlane.f32.xlu0 %v603
  %v605 = vpop.xlane.xlu0 %604
  %v606 = vsel %vm85, %v562, 0.0
  %607 = vadd.xlane.f32.xlu0 %v606
  %v608 = vpop.xlane.xlu0 %607
  %v609 = vsel %vm85, %v564, 0.0
  %610 = vadd.xlane.f32.xlu0 %v609
  %v611 = vpop.xlane.xlu0 %610
  %v612 = vsel %vm85, %v566, 0.0
  %613 = vadd.xlane.f32.xlu0 %v612
  %v614 = vpop.xlane.xlu0 %613
  %v615 = vrcp.pop %v569
  %v616 = vmul.f32 %v569, %v615
  %v617 = vsub.f32 1.0, %v616
  %v618 = vmul.f32 %v615, %v617
  %v619 = vadd.f32 %v615, %v618
  %vm620 = vweird.f32 %v569
  %vm621 = vweird.f32 %v615
  %vm622 = vmor %vm620, %vm621
  %v623 = vsel %vm622, %v615, %v619
  %v624 = vand.u32 2147483647, %v569
  %vm625 = vcmp.eq.f32.partialorder %v624, 8.507059e+37
  %v626 = vand.u32 %v569, 2147483648
  %v627 = vor.u32 1.1754944e-38, %v626
  %v628 = vsel %vm625, %v627, %v623
  %v629 = vmul.f32 %v536, %v628
  %v630 = vrcp.pop %v572
  %v631 = vmul.f32 %v572, %v630
  %v632 = vsub.f32 1.0, %v631
  %v633 = vmul.f32 %v630, %v632
  %v634 = vadd.f32 %v630, %v633
  %vm635 = vweird.f32 %v572
  %vm636 = vweird.f32 %v630
  %vm637 = vmor %vm635, %vm636
  %v638 = vsel %vm637, %v630, %v634
  %v639 = vand.u32 2147483647, %v572
  %vm640 = vcmp.eq.f32.partialorder %v639, 8.507059e+37
  %v641 = vand.u32 %v572, 2147483648
  %v642 = vor.u32 1.1754944e-38, %v641
  %v643 = vsel %vm640, %v642, %v638
  %v644 = vmul.f32 %v538, %v643
  %v645 = vrcp.pop %v575
  %v646 = vmul.f32 %v575, %v645
  %v647 = vsub.f32 1.0, %v646
  %v648 = vmul.f32 %v645, %v647
  %v649 = vadd.f32 %v645, %v648
  %vm650 = vweird.f32 %v575
  %vm651 = vweird.f32 %v645
  %vm652 = vmor %vm650, %vm651
  %v653 = vsel %vm652, %v645, %v649
  %v654 = vand.u32 2147483647, %v575
  %vm655 = vcmp.eq.f32.partialorder %v654, 8.507059e+37
  %v656 = vand.u32 %v575, 2147483648
  %v657 = vor.u32 1.1754944e-38, %v656
  %v658 = vsel %vm655, %v657, %v653
  %v659 = vmul.f32 %v540, %v658
  %v660 = vrcp.pop %v578
  %v661 = vmul.f32 %v578, %v660
  %v662 = vsub.f32 1.0, %v661
  %v663 = vmul.f32 %v660, %v662
  %v664 = vadd.f32 %v660, %v663
  %vm665 = vweird.f32 %v578
  %vm666 = vweird.f32 %v660
  %vm667 = vmor %vm665, %vm666
  %v668 = vsel %vm667, %v660, %v664
  %v669 = vand.u32 2147483647, %v578
  %vm670 = vcmp.eq.f32.partialorder %v669, 8.507059e+37
  %v671 = vand.u32 %v578, 2147483648
  %v672 = vor.u32 1.1754944e-38, %v671
  %v673 = vsel %vm670, %v672, %v668
  %v674 = vmul.f32 %v542, %v673
  %v675 = vrcp.pop %v581
  %v676 = vmul.f32 %v581, %v675
  %v677 = vsub.f32 1.0, %v676
  %v678 = vmul.f32 %v675, %v677
  %v679 = vadd.f32 %v675, %v678
  %vm680 = vweird.f32 %v581
  %vm681 = vweird.f32 %v675
  %vm682 = vmor %vm680, %vm681
  %v683 = vsel %vm682, %v675, %v679
  %v684 = vand.u32 2147483647, %v581
  %vm685 = vcmp.eq.f32.partialorder %v684, 8.507059e+37
  %v686 = vand.u32 %v581, 2147483648
  %v687 = vor.u32 1.1754944e-38, %v686
  %v688 = vsel %vm685, %v687, %v683
  %v689 = vmul.f32 %v544, %v688
  %v690 = vrcp.pop %v584
  %v691 = vmul.f32 %v584, %v690
  %v692 = vsub.f32 1.0, %v691
  %v693 = vmul.f32 %v690, %v692
  %v694 = vadd.f32 %v690, %v693
  %vm695 = vweird.f32 %v584
  %vm696 = vweird.f32 %v690
  %vm697 = vmor %vm695, %vm696
  %v698 = vsel %vm697, %v690, %v694
  %v699 = vand.u32 2147483647, %v584
  %vm700 = vcmp.eq.f32.partialorder %v699, 8.507059e+37
  %v701 = vand.u32 %v584, 2147483648
  %v702 = vor.u32 1.1754944e-38, %v701
  %v703 = vsel %vm700, %v702, %v698
  %v704 = vmul.f32 %v546, %v703
  %v705 = vrcp.pop %v587
  %v706 = vmul.f32 %v587, %v705
  %v707 = vsub.f32 1.0, %v706
  %v708 = vmul.f32 %v705, %v707
  %v709 = vadd.f32 %v705, %v708
  %vm710 = vweird.f32 %v587
  %vm711 = vweird.f32 %v705
  %vm712 = vmor %vm710, %vm711
  %v713 = vsel %vm712, %v705, %v709
  %v714 = vand.u32 2147483647, %v587
  %vm715 = vcmp.eq.f32.partialorder %v714, 8.507059e+37
  %v716 = vand.u32 %v587, 2147483648
  %v717 = vor.u32 1.1754944e-38, %v716
  %v718 = vsel %vm715, %v717, %v713
  %v719 = vmul.f32 %v548, %v718
  %v720 = vrcp.pop %v590
  %v721 = vmul.f32 %v590, %v720
  %v722 = vsub.f32 1.0, %v721
  %v723 = vmul.f32 %v720, %v722
  %v724 = vadd.f32 %v720, %v723
  %vm725 = vweird.f32 %v590
  %vm726 = vweird.f32 %v720
  %vm727 = vmor %vm725, %vm726
  %v728 = vsel %vm727, %v720, %v724
  %v729 = vand.u32 2147483647, %v590
  %vm730 = vcmp.eq.f32.partialorder %v729, 8.507059e+37
  %v731 = vand.u32 %v590, 2147483648
  %v732 = vor.u32 1.1754944e-38, %v731
  %v733 = vsel %vm730, %v732, %v728
  %v734 = vmul.f32 %v550, %v733
  %v735 = vrcp.pop %v593
  %v736 = vmul.f32 %v593, %v735
  %v737 = vsub.f32 1.0, %v736
  %v738 = vmul.f32 %v735, %v737
  %v739 = vadd.f32 %v735, %v738
  %vm740 = vweird.f32 %v593
  %vm741 = vweird.f32 %v735
  %vm742 = vmor %vm740, %vm741
  %v743 = vsel %vm742, %v735, %v739
  %v744 = vand.u32 2147483647, %v593
  %vm745 = vcmp.eq.f32.partialorder %v744, 8.507059e+37
  %v746 = vand.u32 %v593, 2147483648
  %v747 = vor.u32 1.1754944e-38, %v746
  %v748 = vsel %vm745, %v747, %v743
  %v749 = vmul.f32 %v552, %v748
  %v750 = vrcp.pop %v596
  %v751 = vmul.f32 %v596, %v750
  %v752 = vsub.f32 1.0, %v751
  %v753 = vmul.f32 %v750, %v752
  %v754 = vadd.f32 %v750, %v753
  %vm755 = vweird.f32 %v596
  %vm756 = vweird.f32 %v750
  %vm757 = vmor %vm755, %vm756
  %v758 = vsel %vm757, %v750, %v754
  %v759 = vand.u32 2147483647, %v596
  %vm760 = vcmp.eq.f32.partialorder %v759, 8.507059e+37
  %v761 = vand.u32 %v596, 2147483648
  %v762 = vor.u32 1.1754944e-38, %v761
  %v763 = vsel %vm760, %v762, %v758
  %v764 = vmul.f32 %v554, %v763
  %v765 = vrcp.pop %v599
  %v766 = vmul.f32 %v599, %v765
  %v767 = vsub.f32 1.0, %v766
  %v768 = vmul.f32 %v765, %v767
  %v769 = vadd.f32 %v765, %v768
  %vm770 = vweird.f32 %v599
  %vm771 = vweird.f32 %v765
  %vm772 = vmor %vm770, %vm771
  %v773 = vsel %vm772, %v765, %v769
  %v774 = vand.u32 2147483647, %v599
  %vm775 = vcmp.eq.f32.partialorder %v774, 8.507059e+37
  %v776 = vand.u32 %v599, 2147483648
  %v777 = vor.u32 1.1754944e-38, %v776
  %v778 = vsel %vm775, %v777, %v773
  %v779 = vmul.f32 %v556, %v778
  %v780 = vrcp.pop %v602
  %v781 = vmul.f32 %v602, %v780
  %v782 = vsub.f32 1.0, %v781
  %v783 = vmul.f32 %v780, %v782
  %v784 = vadd.f32 %v780, %v783
  %vm785 = vweird.f32 %v602
  %vm786 = vweird.f32 %v780
  %vm787 = vmor %vm785, %vm786
  %v788 = vsel %vm787, %v780, %v784
  %v789 = vand.u32 2147483647, %v602
  %vm790 = vcmp.eq.f32.partialorder %v789, 8.507059e+37
  %v791 = vand.u32 %v602, 2147483648
  %v792 = vor.u32 1.1754944e-38, %v791
  %v793 = vsel %vm790, %v792, %v788
  %v794 = vmul.f32 %v558, %v793
  %v795 = vrcp.pop %v605
  %v796 = vmul.f32 %v605, %v795
  %v797 = vsub.f32 1.0, %v796
  %v798 = vmul.f32 %v795, %v797
  %v799 = vadd.f32 %v795, %v798
  %vm800 = vweird.f32 %v605
  %vm801 = vweird.f32 %v795
  %vm802 = vmor %vm800, %vm801
  %v803 = vsel %vm802, %v795, %v799
  %v804 = vand.u32 2147483647, %v605
  %vm805 = vcmp.eq.f32.partialorder %v804, 8.507059e+37
  %v806 = vand.u32 %v605, 2147483648
  %v807 = vor.u32 1.1754944e-38, %v806
  %v808 = vsel %vm805, %v807, %v803
  %v809 = vmul.f32 %v560, %v808
  %v810 = vrcp.pop %v608
  %v811 = vmul.f32 %v608, %v810
  %v812 = vsub.f32 1.0, %v811
  %v813 = vmul.f32 %v810, %v812
  %v814 = vadd.f32 %v810, %v813
  %vm815 = vweird.f32 %v608
  %vm816 = vweird.f32 %v810
  %vm817 = vmor %vm815, %vm816
  %v818 = vsel %vm817, %v810, %v814
  %v819 = vand.u32 2147483647, %v608
  %vm820 = vcmp.eq.f32.partialorder %v819, 8.507059e+37
  %v821 = vand.u32 %v608, 2147483648
  %v822 = vor.u32 1.1754944e-38, %v821
  %v823 = vsel %vm820, %v822, %v818
  %v824 = vmul.f32 %v562, %v823
  %v825 = vrcp.pop %v611
  %v826 = vmul.f32 %v611, %v825
  %v827 = vsub.f32 1.0, %v826
  %v828 = vmul.f32 %v825, %v827
  %v829 = vadd.f32 %v825, %v828
  %vm830 = vweird.f32 %v611
  %vm831 = vweird.f32 %v825
  %vm832 = vmor %vm830, %vm831
  %v833 = vsel %vm832, %v825, %v829
  %v834 = vand.u32 2147483647, %v611
  %vm835 = vcmp.eq.f32.partialorder %v834, 8.507059e+37
  %v836 = vand.u32 %v611, 2147483648
  %v837 = vor.u32 1.1754944e-38, %v836
  %v838 = vsel %vm835, %v837, %v833
  %v839 = vmul.f32 %v564, %v838
  %v840 = vrcp.pop %v614
  %v841 = vmul.f32 %v614, %v840
  %v842 = vsub.f32 1.0, %v841
  %v843 = vmul.f32 %v840, %v842
  %v844 = vadd.f32 %v840, %v843
  %vm845 = vweird.f32 %v614
  %vm846 = vweird.f32 %v840
  %vm847 = vmor %vm845, %vm846
  %v848 = vsel %vm847, %v840, %v844
  %v849 = vand.u32 2147483647, %v614
  %vm850 = vcmp.eq.f32.partialorder %v849, 8.507059e+37
  %v851 = vand.u32 %v614, 2147483648
  %v852 = vor.u32 1.1754944e-38, %v851
  %v853 = vsel %vm850, %v852, %v848
  %v854 = vmul.f32 %v566, %v853
  %857 = vrot.lane.b32.xlu0 %v282, 96
  %v858 = vpop.permute.xlu0 %857
  %859 = vrot.lane.b32.xlu0 %v283, 96
  %v860 = vpop.permute.xlu0 %859
  %v864 = vsel %vm85, %v629, 0
  %v867 = vsel %vm85, %v644, 0
  %v870 = vsel %vm85, %v659, 0
  %v873 = vsel %vm85, %v674, 0
  %v876 = vsel %vm85, %v689, 0
  %v879 = vsel %vm85, %v704, 0
  %v882 = vsel %vm85, %v719, 0
  %v885 = vsel %vm85, %v734, 0
  %v888 = vsel %vm85, %v749, 0
  %v891 = vsel %vm85, %v764, 0
  %v894 = vsel %vm85, %v779, 0
  %v897 = vsel %vm85, %v794, 0
  %v900 = vsel %vm85, %v809, 0
  %v903 = vsel %vm85, %v824, 0
  %v906 = vsel %vm85, %v839, 0
  %v909 = vsel %vm85, %v854, 0
  %911 = vmatpush.msra.mxu0 0.0
  %912 = vmatpush.msra.mxu0 0.0
  %913 = vmatpush.msra.mxu0 0.0
  %914 = vmatpush.msra.mxu0 0.0
  %915 = vmatpush.msra.mxu0 0.0
  %916 = vmatpush.msra.mxu0 0.0
  %917 = vmatpush.msra.mxu0 0.0
  %918 = vmatpush.msra.mxu0 0.0
  %919 = vmatpush.msra.mxu0 0.0
  %920 = vmatpush.msra.mxu0 0.0
  %921 = vmatpush.msra.mxu0 0.0
  %922 = vmatpush.msra.mxu0 0.0
  %923 = vmatpush.msra.mxu0 0.0
  %924 = vmatpush.msra.mxu0 0.0
  %925 = vmatpush.msra.mxu0 %v860
  %926 = vmatpush.msra.mxu0 %v858
  %927 = vmatmul.f32.gmra.mxu0 %v864
  %v928 = vpop.f32.mrf.mxu0
  %v929 = vadd.f32 0.0, %v928
  %930 = vmatmul.f32.gmra.mxu0 %v867
  %v931 = vpop.f32.mrf.mxu0
  %v932 = vadd.f32 0.0, %v931
  %933 = vmatmul.f32.gmra.mxu0 %v870
  %v934 = vpop.f32.mrf.mxu0
  %v935 = vadd.f32 0.0, %v934
  %936 = vmatmul.f32.gmra.mxu0 %v873
  %v937 = vpop.f32.mrf.mxu0
  %v938 = vadd.f32 0.0, %v937
  %939 = vmatmul.f32.gmra.mxu0 %v876
  %v940 = vpop.f32.mrf.mxu0
  %v941 = vadd.f32 0.0, %v940
  %942 = vmatmul.f32.gmra.mxu0 %v879
  %v943 = vpop.f32.mrf.mxu0
  %v944 = vadd.f32 0.0, %v943
  %945 = vmatmul.f32.gmra.mxu0 %v882
  %v946 = vpop.f32.mrf.mxu0
  %v947 = vadd.f32 0.0, %v946
  %948 = vmatmul.f32.gmra.mxu0 %v885
  %v949 = vpop.f32.mrf.mxu0
  %v950 = vadd.f32 0.0, %v949
  %951 = vmatmul.f32.gmra.mxu0 %v888
  %v952 = vpop.f32.mrf.mxu0
  %v953 = vadd.f32 0.0, %v952
  %954 = vmatmul.f32.gmra.mxu0 %v891
  %v955 = vpop.f32.mrf.mxu0
  %v956 = vadd.f32 0.0, %v955
  %957 = vmatmul.f32.gmra.mxu0 %v894
  %v958 = vpop.f32.mrf.mxu0
  %v959 = vadd.f32 0.0, %v958
  %960 = vmatmul.f32.gmra.mxu0 %v897
  %v961 = vpop.f32.mrf.mxu0
  %v962 = vadd.f32 0.0, %v961
  %963 = vmatmul.f32.gmra.mxu0 %v900
  %v964 = vpop.f32.mrf.mxu0
  %v965 = vadd.f32 0.0, %v964
  %966 = vmatmul.f32.gmra.mxu0 %v903
  %v967 = vpop.f32.mrf.mxu0
  %v968 = vadd.f32 0.0, %v967
  %969 = vmatmul.f32.gmra.mxu0 %v906
  %v970 = vpop.f32.mrf.mxu0
  %v971 = vadd.f32 0.0, %v970
  %972 = vmatmul.f32.gmra.mxu0 %v909
  %v973 = vpop.f32.mrf.mxu0
  %v974 = vadd.f32 0.0, %v973
  %975 = vdwg.mxu0
  %v976 = vmul.f32 %v929, %v296
  %v977 = vmul.f32 %v932, %v296
  %v978 = vmul.f32 %v935, %v296
  %v979 = vmul.f32 %v938, %v296
  %v980 = vmul.f32 %v941, %v297
  %v981 = vmul.f32 %v944, %v297
  %v982 = vmul.f32 %v947, %v297
  %v983 = vmul.f32 %v950, %v297
  %v984 = vmul.f32 %v953, %v298
  %v985 = vmul.f32 %v956, %v298
  %v986 = vmul.f32 %v959, %v298
  %v987 = vmul.f32 %v962, %v298
  %v988 = vmul.f32 %v965, %v299
  %v989 = vmul.f32 %v968, %v299
  %v990 = vmul.f32 %v971, %v299
  %v991 = vmul.f32 %v974, %v299
  %v992 = vsel %vm201, %v976, 0.0
  %v993 = vsel %vm201, %v980, 0.0
  %v994 = vadd.f32 %v992, %v993
  %v995 = vsel %vm201, %v984, 0.0
  %v996 = vadd.f32 %v994, %v995
  %v997 = vsel %vm201, %v988, 0.0
  %v998 = vadd.f32 %v996, %v997
  %v999 = vsel %vm201, %v977, 0.0
  %v1000 = vsel %vm201, %v981, 0.0
  %v1001 = vadd.f32 %v999, %v1000
  %v1002 = vsel %vm201, %v985, 0.0
  %v1003 = vadd.f32 %v1001, %v1002
  %v1004 = vsel %vm201, %v989, 0.0
  %v1005 = vadd.f32 %v1003, %v1004
  %v1006 = vsel %vm201, %v978, 0.0
  %v1007 = vsel %vm201, %v982, 0.0
  %v1008 = vadd.f32 %v1006, %v1007
  %v1009 = vsel %vm201, %v986, 0.0
  %v1010 = vadd.f32 %v1008, %v1009
  %v1011 = vsel %vm201, %v990, 0.0
  %v1012 = vadd.f32 %v1010, %v1011
  %v1013 = vsel %vm201, %v979, 0.0
  %v1014 = vsel %vm201, %v983, 0.0
  %v1015 = vadd.f32 %v1013, %v1014
  %v1016 = vsel %vm201, %v987, 0.0
  %v1017 = vadd.f32 %v1015, %v1016
  %v1018 = vsel %vm201, %v991, 0.0
  %v1019 = vadd.f32 %v1017, %v1018
  %s1020 = scalar_lea.vmem %s4, 32
  %v1021 = vld [vmem:[%s1020] sm:$0xff]
  %v1022 = vld [vmem:[%s1020 + $0x8] sm:$0xff]
  %v1023 = vld [vmem:[%s1020 + $0x10] sm:$0xff]
  %v1024 = vld [vmem:[%s1020 + $0x18] sm:$0xff]
  %v1026 = vsel %vm201, %v998, 0
  %v1029 = vsel %vm201, %v1005, 0
  %v1032 = vsel %vm201, %v1012, 0
  %v1035 = vsel %vm201, %v1019, 0
  %1037 = vmatpush.msra.mxu0 0.0
  %1038 = vmatpush.msra.mxu0 0.0
  %1039 = vmatpush.msra.mxu0 0.0
  %1040 = vmatpush.msra.mxu0 0.0
  %1041 = vmatpush.msra.mxu0 0.0
  %1042 = vmatpush.msra.mxu0 0.0
  %1043 = vmatpush.msra.mxu0 0.0
  %1044 = vmatpush.msra.mxu0 0.0
  %1045 = vmatpush.msra.mxu0 0.0
  %1046 = vmatpush.msra.mxu0 0.0
  %1047 = vmatpush.msra.mxu0 0.0
  %1048 = vmatpush.msra.mxu0 0.0
  %1049 = vmatpush.msra.mxu0 %v1024
  %1050 = vmatpush.msra.mxu0 %v1023
  %1051 = vmatpush.msra.mxu0 %v1022
  %1052 = vmatpush.msra.mxu0 %v1021
  %1053 = vmatmul.f32.gmra.mxu0 %v1026
  %v1054 = vpop.f32.mrf.mxu0
  %v1055 = vadd.f32 0.0, %v1054
  %1056 = vmatmul.f32.gmra.mxu0 %v1029
  %v1057 = vpop.f32.mrf.mxu0
  %v1058 = vadd.f32 0.0, %v1057
  %1059 = vmatmul.f32.gmra.mxu0 %v1032
  %v1060 = vpop.f32.mrf.mxu0
  %v1061 = vadd.f32 0.0, %v1060
  %1062 = vmatmul.f32.gmra.mxu0 %v1035
  %v1063 = vpop.f32.mrf.mxu0
  %v1064 = vadd.f32 0.0, %v1063
  %1065 = vdwg.mxu0
  %1070 = vrot.lane.b32.xlu0 %v1055, 32
  %v1071 = vpop.permute.xlu0 %1070
  %1072 = vrot.lane.b32.xlu0 %v1058, 32
  %v1073 = vpop.permute.xlu0 %1072
  %1074 = vrot.lane.b32.xlu0 %v1061, 32
  %v1075 = vpop.permute.xlu0 %1074
  %1076 = vrot.lane.b32.xlu0 %v1064, 32
  %v1077 = vpop.permute.xlu0 %1076
  %v1082 = vadd.f32 %v170, %v1071
  %v1083 = vadd.f32 %v171, %v1073
  %v1084 = vadd.f32 %v181, %v1075
  %v1085 = vadd.f32 %v182, %v1077
  %v1086 = vld [vmem:[%s7 + $0xa] sm:$0x1]
  %v1087 = vperm.slane %v1086, 0
  %1089 = vrot.lane.b32.xlu0 %v1087, 32
  %v1090 = vpop.permute.xlu0 %1089
  %v1092 = vadd.f32 %v1082, %v1090
  %v1093 = vadd.f32 %v1083, %v1090
  %v1094 = vadd.f32 %v1084, %v1090
  %v1095 = vadd.f32 %v1085, %v1090
  %1100 = vrot.lane.b32.xlu0 %v1092, 96
  %v1101 = vpop.permute.xlu0 %1100
  %1102 = vrot.lane.b32.xlu0 %v1093, 96
  %v1103 = vpop.permute.xlu0 %1102
  %1104 = vrot.lane.b32.xlu0 %v1094, 96
  %v1105 = vpop.permute.xlu0 %1104
  %1106 = vrot.lane.b32.xlu0 %v1095, 96
  %v1107 = vpop.permute.xlu0 %1106
  %v1112 = vsel %vm201, %v1101, 0.0
  %1113 = vadd.xlane.f32.xlu0 %v1112
  %v1114 = vpop.xlane.xlu0 %1113
  %v1115 = vsel %vm201, %v1103, 0.0
  %1116 = vadd.xlane.f32.xlu0 %v1115
  %v1117 = vpop.xlane.xlu0 %1116
  %v1118 = vsel %vm201, %v1105, 0.0
  %1119 = vadd.xlane.f32.xlu0 %v1118
  %v1120 = vpop.xlane.xlu0 %1119
  %v1121 = vsel %vm201, %v1107, 0.0
  %1122 = vadd.xlane.f32.xlu0 %v1121
  %v1123 = vpop.xlane.xlu0 %1122
  %v1124 = vrcp.pop 32.0
  %v1125 = vmul.f32 32.0, %v1124
  %v1126 = vsub.f32 1.0, %v1125
  %v1127 = vmul.f32 %v1124, %v1126
  %v1128 = vadd.f32 %v1124, %v1127
  %vm1129 = vweird.f32 %v1124
  %v1130 = vsel %vm1129, %v1124, %v1128
  %v1131 = vmul.f32 %v1114, %v1130
  %v1132 = vmul.f32 %v1117, %v1130
  %v1133 = vmul.f32 %v1120, %v1130
  %v1134 = vmul.f32 %v1123, %v1130
  %v1135 = vsub.f32 %v1092, %v1131
  %v1136 = vsub.f32 %v1093, %v1132
  %v1137 = vsub.f32 %v1094, %v1133
  %v1138 = vsub.f32 %v1095, %v1134
  %v1139 = vmul.f32 %v1135, %v1135
  %v1140 = vmul.f32 %v1136, %v1136
  %v1141 = vmul.f32 %v1137, %v1137
  %v1142 = vmul.f32 %v1138, %v1138
  %1147 = vrot.lane.b32.xlu0 %v1139, 96
  %v1148 = vpop.permute.xlu0 %1147
  %1149 = vrot.lane.b32.xlu0 %v1140, 96
  %v1150 = vpop.permute.xlu0 %1149
  %1151 = vrot.lane.b32.xlu0 %v1141, 96
  %v1152 = vpop.permute.xlu0 %1151
  %1153 = vrot.lane.b32.xlu0 %v1142, 96
  %v1154 = vpop.permute.xlu0 %1153
  %v1159 = vsel %vm201, %v1148, 0.0
  %1160 = vadd.xlane.f32.xlu0 %v1159
  %v1161 = vpop.xlane.xlu0 %1160
  %v1162 = vsel %vm201, %v1150, 0.0
  %1163 = vadd.xlane.f32.xlu0 %v1162
  %v1164 = vpop.xlane.xlu0 %1163
  %v1165 = vsel %vm201, %v1152, 0.0
  %1166 = vadd.xlane.f32.xlu0 %v1165
  %v1167 = vpop.xlane.xlu0 %1166
  %v1168 = vsel %vm201, %v1154, 0.0
  %1169 = vadd.xlane.f32.xlu0 %v1168
  %v1170 = vpop.xlane.xlu0 %1169
  %v1171 = vmul.f32 %v1161, %v1130
  %v1172 = vmul.f32 %v1164, %v1130
  %v1173 = vmul.f32 %v1167, %v1130
  %v1174 = vmul.f32 %v1170, %v1130
  %v1175 = vadd.f32 %v1171, 1e-05
  %v1176 = vadd.f32 %v1172, 1e-05
  %v1177 = vadd.f32 %v1173, 1e-05
  %v1178 = vadd.f32 %v1174, 1e-05
  %v1179 = vrsqrt.pop %v1175
  %v1180 = vmul.f32 %v1179, %v1175
  %v1181 = vmul.f32 %v1180, %v1179
  %v1182 = vmul.f32 0.5, %v1181
  %v1183 = vsub.f32 1.5, %v1182
  %v1184 = vmul.f32 %v1179, %v1183
  %vm1185 = vweird.f32 %v1175
  %vm1186 = vweird.f32 %v1179
  %vm1187 = vmor %vm1185, %vm1186
  %v1188 = vsel %vm1187, %v1179, %v1184
  %v1189 = vrsqrt.pop %v1176
  %v1190 = vmul.f32 %v1189, %v1176
  %v1191 = vmul.f32 %v1190, %v1189
  %v1192 = vmul.f32 0.5, %v1191
  %v1193 = vsub.f32 1.5, %v1192
  %v1194 = vmul.f32 %v1189, %v1193
  %vm1195 = vweird.f32 %v1176
  %vm1196 = vweird.f32 %v1189
  %vm1197 = vmor %vm1195, %vm1196
  %v1198 = vsel %vm1197, %v1189, %v1194
  %v1199 = vrsqrt.pop %v1177
  %v1200 = vmul.f32 %v1199, %v1177
  %v1201 = vmul.f32 %v1200, %v1199
  %v1202 = vmul.f32 0.5, %v1201
  %v1203 = vsub.f32 1.5, %v1202
  %v1204 = vmul.f32 %v1199, %v1203
  %vm1205 = vweird.f32 %v1177
  %vm1206 = vweird.f32 %v1199
  %vm1207 = vmor %vm1205, %vm1206
  %v1208 = vsel %vm1207, %v1199, %v1204
  %v1209 = vrsqrt.pop %v1178
  %v1210 = vmul.f32 %v1209, %v1178
  %v1211 = vmul.f32 %v1210, %v1209
  %v1212 = vmul.f32 0.5, %v1211
  %v1213 = vsub.f32 1.5, %v1212
  %v1214 = vmul.f32 %v1209, %v1213
  %vm1215 = vweird.f32 %v1178
  %vm1216 = vweird.f32 %v1209
  %vm1217 = vmor %vm1215, %vm1216
  %v1218 = vsel %vm1217, %v1209, %v1214
  %v1219 = vmul.f32 %v1135, %v1188
  %v1220 = vmul.f32 %v1136, %v1198
  %v1221 = vmul.f32 %v1137, %v1208
  %v1222 = vmul.f32 %v1138, %v1218
  %v1223 = vld [vmem:[%s7 + $0xc] sm:$0x1]
  %v1224 = vperm.slane %v1223, 0
  %1226 = vrot.lane.b32.xlu0 %v1224, 32
  %v1227 = vpop.permute.xlu0 %1226
  %v1229 = vmul.f32 %v1219, %v1227
  %v1230 = vmul.f32 %v1220, %v1227
  %v1231 = vmul.f32 %v1221, %v1227
  %v1232 = vmul.f32 %v1222, %v1227
  %v1233 = vld [vmem:[%s7 + $0xd] sm:$0x1]
  %v1234 = vperm.slane %v1233, 0
  %1236 = vrot.lane.b32.xlu0 %v1234, 32
  %v1237 = vpop.permute.xlu0 %1236
  %v1239 = vadd.f32 %v1229, %v1237
  %v1240 = vadd.f32 %v1230, %v1237
  %v1241 = vadd.f32 %v1231, %v1237
  %v1242 = vadd.f32 %v1232, %v1237
  %s1243 = scalar_lea.vmem %s5, 32
  %v1244 = vld [vmem:[%s1243] sm:$0xff]
  %v1245 = vld [vmem:[%s1243 + $0x8] sm:$0xff]
  %v1246 = vld [vmem:[%s1243 + $0x10] sm:$0xff]
  %v1247 = vld [vmem:[%s1243 + $0x18] sm:$0xff]
  %1252 = vrot.lane.b32.xlu0 %v1239, 96
  %v1253 = vpop.permute.xlu0 %1252
  %1254 = vrot.lane.b32.xlu0 %v1240, 96
  %v1255 = vpop.permute.xlu0 %1254
  %1256 = vrot.lane.b32.xlu0 %v1241, 96
  %v1257 = vpop.permute.xlu0 %1256
  %1258 = vrot.lane.b32.xlu0 %v1242, 96
  %v1259 = vpop.permute.xlu0 %1258
  %v1260 = vsel %vm201, %v1253, 0
  %v1262 = vsel %vm201, %v1255, 0
  %v1264 = vsel %vm201, %v1257, 0
  %v1266 = vsel %vm201, %v1259, 0
  %1268 = vmatpush.msra.mxu0 0.0
  %1269 = vmatpush.msra.mxu0 0.0
  %1270 = vmatpush.msra.mxu0 0.0
  %1271 = vmatpush.msra.mxu0 0.0
  %1272 = vmatpush.msra.mxu0 0.0
  %1273 = vmatpush.msra.mxu0 0.0
  %1274 = vmatpush.msra.mxu0 0.0
  %1275 = vmatpush.msra.mxu0 0.0
  %1276 = vmatpush.msra.mxu0 0.0
  %1277 = vmatpush.msra.mxu0 0.0
  %1278 = vmatpush.msra.mxu0 0.0
  %1279 = vmatpush.msra.mxu0 0.0
  %1280 = vmatpush.msra.mxu0 %v1247
  %1281 = vmatpush.msra.mxu0 %v1246
  %1282 = vmatpush.msra.mxu0 %v1245
  %1283 = vmatpush.msra.mxu0 %v1244
  %1284 = vmatmul.f32.gmra.mxu0 %v1260
  %v1285 = vpop.f32.mrf.mxu0
  %v1286 = vadd.f32 0.0, %v1285
  %1287 = vmatmul.f32.gmra.mxu0 %v1262
  %v1288 = vpop.f32.mrf.mxu0
  %v1289 = vadd.f32 0.0, %v1288
  %1290 = vmatmul.f32.gmra.mxu0 %v1264
  %v1291 = vpop.f32.mrf.mxu0
  %v1292 = vadd.f32 0.0, %v1291
  %1293 = vmatmul.f32.gmra.mxu0 %v1266
  %v1294 = vpop.f32.mrf.mxu0
  %v1295 = vadd.f32 0.0, %v1294
  %1296 = vdwg.mxu0
  %v1297 = vld [vmem:[%s7 + $0x8] sm:$0x1]
  %v1298 = vperm.slane %v1297, 0
  %v1299 = vadd.f32 %v1286, %v1298
  %v1300 = vadd.f32 %v1289, %v1298
  %v1301 = vadd.f32 %v1292, %v1298
  %v1302 = vadd.f32 %v1295, %v1298
  %v1303 = vld [vmem:[%s7 + $0x9] sm:$0x1]
  %v1304 = vperm.slane %v1303, 0
  %1306 = vrot.lane.b32.xlu0 %v1304, 32
  %v1307 = vpop.permute.xlu0 %1306
  %v1309 = vadd.f32 %v1286, %v1307
  %v1310 = vadd.f32 %v1289, %v1307
  %v1311 = vadd.f32 %v1292, %v1307
  %v1312 = vadd.f32 %v1295, %v1307
  %1313 = vrot.lane.b32.xlu0 %v296, 64
  %v1314 = vpop.permute.xlu0 %1313
  %1315 = vrot.lane.b32.xlu0 %v297, 64
  %v1316 = vpop.permute.xlu0 %1315
  %1317 = vrot.lane.b32.xlu0 %v298, 64
  %v1318 = vpop.permute.xlu0 %1317
  %1319 = vrot.lane.b32.xlu0 %v299, 64
  %v1320 = vpop.permute.xlu0 %1319
  %v1325 = vmul.f32 %v290, %v1314
  %v1326 = vmul.f32 %v291, %v1314
  %v1327 = vmul.f32 %v290, %v1316
  %v1328 = vmul.f32 %v291, %v1316
  %v1329 = vmul.f32 %v290, %v1318
  %v1330 = vmul.f32 %v291, %v1318
  %v1331 = vmul.f32 %v290, %v1320
  %v1332 = vmul.f32 %v291, %v1320
  %1341 = vrot.lane.b32.xlu0 %v1325, 64
  %v1342 = vpop.permute.xlu0 %1341
  %1343 = vrot.lane.b32.xlu0 %v1326, 64
  %v1344 = vpop.permute.xlu0 %1343
  %1345 = vrot.lane.b32.xlu0 %v1327, 64
  %v1346 = vpop.permute.xlu0 %1345
  %1347 = vrot.lane.b32.xlu0 %v1328, 64
  %v1348 = vpop.permute.xlu0 %1347
  %1349 = vrot.lane.b32.xlu0 %v1329, 64
  %v1350 = vpop.permute.xlu0 %1349
  %1351 = vrot.lane.b32.xlu0 %v1330, 64
  %v1352 = vpop.permute.xlu0 %1351
  %1353 = vrot.lane.b32.xlu0 %v1331, 64
  %v1354 = vpop.permute.xlu0 %1353
  %1355 = vrot.lane.b32.xlu0 %v1332, 64
  %v1356 = vpop.permute.xlu0 %1355
  %v1357 = vsel %vm201, %v1342, 0
  %v1359 = vsel %vm201, %v1344, 0
  %v1361 = vsel %vm201, %v1346, 0
  %v1363 = vsel %vm201, %v1348, 0
  %v1365 = vsel %vm201, %v1350, 0
  %v1367 = vsel %vm201, %v1352, 0
  %v1369 = vsel %vm201, %v1354, 0
  %v1371 = vsel %vm201, %v1356, 0
  %v1374 = vsel %vm201, %v1299, 0
  %v1377 = vsel %vm201, %v1300, 0
  %v1380 = vsel %vm201, %v1301, 0
  %v1383 = vsel %vm201, %v1302, 0
  %1385 = vmatpush.xpose.msra.mxu0 0.0
  %1386 = vmatpush.xpose.msra.mxu0 0.0
  %1387 = vmatpush.xpose.msra.mxu0 0.0
  %1388 = vmatpush.xpose.msra.mxu0 0.0
  %1389 = vmatpush.xpose.msra.mxu0 0.0
  %1390 = vmatpush.xpose.msra.mxu0 0.0
  %1391 = vmatpush.xpose.msra.mxu0 0.0
  %1392 = vmatpush.xpose.msra.mxu0 0.0
  %1393 = vmatpush.xpose.msra.mxu0 0.0
  %1394 = vmatpush.xpose.msra.mxu0 0.0
  %1395 = vmatpush.xpose.msra.mxu0 0.0
  %1396 = vmatpush.xpose.msra.mxu0 0.0
  %1397 = vmatpush.xpose.msra.mxu0 %v1383
  %1398 = vmatpush.xpose.msra.mxu0 %v1380
  %1399 = vmatpush.xpose.msra.mxu0 %v1377
  %1400 = vmatpush.xpose.msra.mxu0 %v1374
  %1401 = vmatmul.f32.gmra.mxu0 %v1357
  %v1402 = vpop.f32.mrf.mxu0
  %v1403 = vadd.f32 0.0, %v1402
  %1404 = vmatmul.f32.gmra.mxu0 %v1359
  %v1405 = vpop.f32.mrf.mxu0
  %v1406 = vadd.f32 0.0, %v1405
  %1407 = vmatmul.f32.gmra.mxu0 %v1361
  %v1408 = vpop.f32.mrf.mxu0
  %v1409 = vadd.f32 0.0, %v1408
  %1410 = vmatmul.f32.gmra.mxu0 %v1363
  %v1411 = vpop.f32.mrf.mxu0
  %v1412 = vadd.f32 0.0, %v1411
  %1413 = vmatmul.f32.gmra.mxu0 %v1365
  %v1414 = vpop.f32.mrf.mxu0
  %v1415 = vadd.f32 0.0, %v1414
  %1416 = vmatmul.f32.gmra.mxu0 %v1367
  %v1417 = vpop.f32.mrf.mxu0
  %v1418 = vadd.f32 0.0, %v1417
  %1419 = vmatmul.f32.gmra.mxu0 %v1369
  %v1420 = vpop.f32.mrf.mxu0
  %v1421 = vadd.f32 0.0, %v1420
  %1422 = vmatmul.f32.gmra.mxu0 %v1371
  %v1423 = vpop.f32.mrf.mxu0
  %v1424 = vadd.f32 0.0, %v1423
  %1425 = vdwg.mxu0
  %v1426 = vmul.f32 %v1403, 0.35355338
  %v1427 = vmul.f32 %v1406, 0.35355338
  %v1428 = vmul.f32 %v1409, 0.35355338
  %v1429 = vmul.f32 %v1412, 0.35355338
  %v1430 = vmul.f32 %v1415, 0.35355338
  %v1431 = vmul.f32 %v1418, 0.35355338
  %v1432 = vmul.f32 %v1421, 0.35355338
  %v1433 = vmul.f32 %v1424, 0.35355338
  %v1434 = vadd.f32 %v1426, %v54
  %v1435 = vadd.f32 %v1427, %v55
  %v1436 = vadd.f32 %v1428, %v56
  %v1437 = vadd.f32 %v1429, %v57
  %v1438 = vadd.f32 %v1430, %v58
  %v1439 = vadd.f32 %v1431, %v59
  %v1440 = vadd.f32 %v1432, %v60
  %v1441 = vadd.f32 %v1433, %v61
  %v1442 = vsel %vm201, %v1434, -inf
  %1443 = vmax.xlane.f32.xlu0 %v1442
  %v1444 = vpop.xlane.xlu0 %1443
  %v1445 = vsel %vm201, %v1435, -inf
  %1446 = vmax.xlane.f32.xlu0 %v1445
  %v1447 = vpop.xlane.xlu0 %1446
  %v1448 = vsel %vm201, %v1436, -inf
  %1449 = vmax.xlane.f32.xlu0 %v1448
  %v1450 = vpop.xlane.xlu0 %1449
  %v1451 = vsel %vm201, %v1437, -inf
  %1452 = vmax.xlane.f32.xlu0 %v1451
  %v1453 = vpop.xlane.xlu0 %1452
  %v1454 = vsel %vm201, %v1438, -inf
  %1455 = vmax.xlane.f32.xlu0 %v1454
  %v1456 = vpop.xlane.xlu0 %1455
  %v1457 = vsel %vm201, %v1439, -inf
  %1458 = vmax.xlane.f32.xlu0 %v1457
  %v1459 = vpop.xlane.xlu0 %1458
  %v1460 = vsel %vm201, %v1440, -inf
  %1461 = vmax.xlane.f32.xlu0 %v1460
  %v1462 = vpop.xlane.xlu0 %1461
  %v1463 = vsel %vm201, %v1441, -inf
  %1464 = vmax.xlane.f32.xlu0 %v1463
  %v1465 = vpop.xlane.xlu0 %1464
  %v1466 = vsub.f32 %v1434, %v1444
  %v1467 = vsub.f32 %v1435, %v1447
  %v1468 = vsub.f32 %v1436, %v1450
  %v1469 = vsub.f32 %v1437, %v1453
  %v1470 = vsub.f32 %v1438, %v1456
  %v1471 = vsub.f32 %v1439, %v1459
  %v1472 = vsub.f32 %v1440, %v1462
  %v1473 = vsub.f32 %v1441, %v1465
  %v1474 = vmul.f32 %v1466, 1.442695
  %v1475 = vpow.pop %v1474
  %v1476 = vmul.f32 %v1467, 1.442695
  %v1477 = vpow.pop %v1476
  %v1478 = vmul.f32 %v1468, 1.442695
  %v1479 = vpow.pop %v1478
  %v1480 = vmul.f32 %v1469, 1.442695
  %v1481 = vpow.pop %v1480
  %v1482 = vmul.f32 %v1470, 1.442695
  %v1483 = vpow.pop %v1482
  %v1484 = vmul.f32 %v1471, 1.442695
  %v1485 = vpow.pop %v1484
  %v1486 = vmul.f32 %v1472, 1.442695
  %v1487 = vpow.pop %v1486
  %v1488 = vmul.f32 %v1473, 1.442695
  %v1489 = vpow.pop %v1488
  %v1490 = vsel %vm201, %v1475, 0.0
  %1491 = vadd.xlane.f32.xlu0 %v1490
  %v1492 = vpop.xlane.xlu0 %1491
  %v1493 = vsel %vm201, %v1477, 0.0
  %1494 = vadd.xlane.f32.xlu0 %v1493
  %v1495 = vpop.xlane.xlu0 %1494
  %v1496 = vsel %vm201, %v1479, 0.0
  %1497 = vadd.xlane.f32.xlu0 %v1496
  %v1498 = vpop.xlane.xlu0 %1497
  %v1499 = vsel %vm201, %v1481, 0.0
  %1500 = vadd.xlane.f32.xlu0 %v1499
  %v1501 = vpop.xlane.xlu0 %1500
  %v1502 = vsel %vm201, %v1483, 0.0
  %1503 = vadd.xlane.f32.xlu0 %v1502
  %v1504 = vpop.xlane.xlu0 %1503
  %v1505 = vsel %vm201, %v1485, 0.0
  %1506 = vadd.xlane.f32.xlu0 %v1505
  %v1507 = vpop.xlane.xlu0 %1506
  %v1508 = vsel %vm201, %v1487, 0.0
  %1509 = vadd.xlane.f32.xlu0 %v1508
  %v1510 = vpop.xlane.xlu0 %1509
  %v1511 = vsel %vm201, %v1489, 0.0
  %1512 = vadd.xlane.f32.xlu0 %v1511
  %v1513 = vpop.xlane.xlu0 %1512
  %v1514 = vrcp.pop %v1492
  %v1515 = vmul.f32 %v1492, %v1514
  %v1516 = vsub.f32 1.0, %v1515
  %v1517 = vmul.f32 %v1514, %v1516
  %v1518 = vadd.f32 %v1514, %v1517
  %vm1519 = vweird.f32 %v1492
  %vm1520 = vweird.f32 %v1514
  %vm1521 = vmor %vm1519, %vm1520
  %v1522 = vsel %vm1521, %v1514, %v1518
  %v1523 = vand.u32 2147483647, %v1492
  %vm1524 = vcmp.eq.f32.partialorder %v1523, 8.507059e+37
  %v1525 = vand.u32 %v1492, 2147483648
  %v1526 = vor.u32 1.1754944e-38, %v1525
  %v1527 = vsel %vm1524, %v1526, %v1522
  %v1528 = vmul.f32 %v1475, %v1527
  %v1529 = vrcp.pop %v1495
  %v1530 = vmul.f32 %v1495, %v1529
  %v1531 = vsub.f32 1.0, %v1530
  %v1532 = vmul.f32 %v1529, %v1531
  %v1533 = vadd.f32 %v1529, %v1532
  %vm1534 = vweird.f32 %v1495
  %vm1535 = vweird.f32 %v1529
  %vm1536 = vmor %vm1534, %vm1535
  %v1537 = vsel %vm1536, %v1529, %v1533
  %v1538 = vand.u32 2147483647, %v1495
  %vm1539 = vcmp.eq.f32.partialorder %v1538, 8.507059e+37
  %v1540 = vand.u32 %v1495, 2147483648
  %v1541 = vor.u32 1.1754944e-38, %v1540
  %v1542 = vsel %vm1539, %v1541, %v1537
  %v1543 = vmul.f32 %v1477, %v1542
  %v1544 = vrcp.pop %v1498
  %v1545 = vmul.f32 %v1498, %v1544
  %v1546 = vsub.f32 1.0, %v1545
  %v1547 = vmul.f32 %v1544, %v1546
  %v1548 = vadd.f32 %v1544, %v1547
  %vm1549 = vweird.f32 %v1498
  %vm1550 = vweird.f32 %v1544
  %vm1551 = vmor %vm1549, %vm1550
  %v1552 = vsel %vm1551, %v1544, %v1548
  %v1553 = vand.u32 2147483647, %v1498
  %vm1554 = vcmp.eq.f32.partialorder %v1553, 8.507059e+37
  %v1555 = vand.u32 %v1498, 2147483648
  %v1556 = vor.u32 1.1754944e-38, %v1555
  %v1557 = vsel %vm1554, %v1556, %v1552
  %v1558 = vmul.f32 %v1479, %v1557
  %v1559 = vrcp.pop %v1501
  %v1560 = vmul.f32 %v1501, %v1559
  %v1561 = vsub.f32 1.0, %v1560
  %v1562 = vmul.f32 %v1559, %v1561
  %v1563 = vadd.f32 %v1559, %v1562
  %vm1564 = vweird.f32 %v1501
  %vm1565 = vweird.f32 %v1559
  %vm1566 = vmor %vm1564, %vm1565
  %v1567 = vsel %vm1566, %v1559, %v1563
  %v1568 = vand.u32 2147483647, %v1501
  %vm1569 = vcmp.eq.f32.partialorder %v1568, 8.507059e+37
  %v1570 = vand.u32 %v1501, 2147483648
  %v1571 = vor.u32 1.1754944e-38, %v1570
  %v1572 = vsel %vm1569, %v1571, %v1567
  %v1573 = vmul.f32 %v1481, %v1572
  %v1574 = vrcp.pop %v1504
  %v1575 = vmul.f32 %v1504, %v1574
  %v1576 = vsub.f32 1.0, %v1575
  %v1577 = vmul.f32 %v1574, %v1576
  %v1578 = vadd.f32 %v1574, %v1577
  %vm1579 = vweird.f32 %v1504
  %vm1580 = vweird.f32 %v1574
  %vm1581 = vmor %vm1579, %vm1580
  %v1582 = vsel %vm1581, %v1574, %v1578
  %v1583 = vand.u32 2147483647, %v1504
  %vm1584 = vcmp.eq.f32.partialorder %v1583, 8.507059e+37
  %v1585 = vand.u32 %v1504, 2147483648
  %v1586 = vor.u32 1.1754944e-38, %v1585
  %v1587 = vsel %vm1584, %v1586, %v1582
  %v1588 = vmul.f32 %v1483, %v1587
  %v1589 = vrcp.pop %v1507
  %v1590 = vmul.f32 %v1507, %v1589
  %v1591 = vsub.f32 1.0, %v1590
  %v1592 = vmul.f32 %v1589, %v1591
  %v1593 = vadd.f32 %v1589, %v1592
  %vm1594 = vweird.f32 %v1507
  %vm1595 = vweird.f32 %v1589
  %vm1596 = vmor %vm1594, %vm1595
  %v1597 = vsel %vm1596, %v1589, %v1593
  %v1598 = vand.u32 2147483647, %v1507
  %vm1599 = vcmp.eq.f32.partialorder %v1598, 8.507059e+37
  %v1600 = vand.u32 %v1507, 2147483648
  %v1601 = vor.u32 1.1754944e-38, %v1600
  %v1602 = vsel %vm1599, %v1601, %v1597
  %v1603 = vmul.f32 %v1485, %v1602
  %v1604 = vrcp.pop %v1510
  %v1605 = vmul.f32 %v1510, %v1604
  %v1606 = vsub.f32 1.0, %v1605
  %v1607 = vmul.f32 %v1604, %v1606
  %v1608 = vadd.f32 %v1604, %v1607
  %vm1609 = vweird.f32 %v1510
  %vm1610 = vweird.f32 %v1604
  %vm1611 = vmor %vm1609, %vm1610
  %v1612 = vsel %vm1611, %v1604, %v1608
  %v1613 = vand.u32 2147483647, %v1510
  %vm1614 = vcmp.eq.f32.partialorder %v1613, 8.507059e+37
  %v1615 = vand.u32 %v1510, 2147483648
  %v1616 = vor.u32 1.1754944e-38, %v1615
  %v1617 = vsel %vm1614, %v1616, %v1612
  %v1618 = vmul.f32 %v1487, %v1617
  %v1619 = vrcp.pop %v1513
  %v1620 = vmul.f32 %v1513, %v1619
  %v1621 = vsub.f32 1.0, %v1620
  %v1622 = vmul.f32 %v1619, %v1621
  %v1623 = vadd.f32 %v1619, %v1622
  %vm1624 = vweird.f32 %v1513
  %vm1625 = vweird.f32 %v1619
  %vm1626 = vmor %vm1624, %vm1625
  %v1627 = vsel %vm1626, %v1619, %v1623
  %v1628 = vand.u32 2147483647, %v1513
  %vm1629 = vcmp.eq.f32.partialorder %v1628, 8.507059e+37
  %v1630 = vand.u32 %v1513, 2147483648
  %v1631 = vor.u32 1.1754944e-38, %v1630
  %v1632 = vsel %vm1629, %v1631, %v1627
  %v1633 = vmul.f32 %v1489, %v1632
  %1638 = vrot.lane.b32.xlu0 %v1309, 96
  %v1639 = vpop.permute.xlu0 %1638
  %1640 = vrot.lane.b32.xlu0 %v1310, 96
  %v1641 = vpop.permute.xlu0 %1640
  %1642 = vrot.lane.b32.xlu0 %v1311, 96
  %v1643 = vpop.permute.xlu0 %1642
  %1644 = vrot.lane.b32.xlu0 %v1312, 96
  %v1645 = vpop.permute.xlu0 %1644
  %v1651 = vsel %vm201, %v1528, 0
  %v1654 = vsel %vm201, %v1543, 0
  %v1657 = vsel %vm201, %v1558, 0
  %v1660 = vsel %vm201, %v1573, 0
  %v1663 = vsel %vm201, %v1588, 0
  %v1666 = vsel %vm201, %v1603, 0
  %v1669 = vsel %vm201, %v1618, 0
  %v1672 = vsel %vm201, %v1633, 0
  %1674 = vmatpush.msra.mxu0 0.0
  %1675 = vmatpush.msra.mxu0 0.0
  %1676 = vmatpush.msra.mxu0 0.0
  %1677 = vmatpush.msra.mxu0 0.0
  %1678 = vmatpush.msra.mxu0 0.0
  %1679 = vmatpush.msra.mxu0 0.0
  %1680 = vmatpush.msra.mxu0 0.0
  %1681 = vmatpush.msra.mxu0 0.0
  %1682 = vmatpush.msra.mxu0 0.0
  %1683 = vmatpush.msra.mxu0 0.0
  %1684 = vmatpush.msra.mxu0 0.0
  %1685 = vmatpush.msra.mxu0 0.0
  %1686 = vmatpush.msra.mxu0 %v1645
  %1687 = vmatpush.msra.mxu0 %v1643
  %1688 = vmatpush.msra.mxu0 %v1641
  %1689 = vmatpush.msra.mxu0 %v1639
  %1690 = vmatmul.f32.gmra.mxu0 %v1651
  %v1691 = vpop.f32.mrf.mxu0
  %v1692 = vadd.f32 0.0, %v1691
  %1693 = vmatmul.f32.gmra.mxu0 %v1654
  %v1694 = vpop.f32.mrf.mxu0
  %v1695 = vadd.f32 0.0, %v1694
  %1696 = vmatmul.f32.gmra.mxu0 %v1657
  %v1697 = vpop.f32.mrf.mxu0
  %v1698 = vadd.f32 0.0, %v1697
  %1699 = vmatmul.f32.gmra.mxu0 %v1660
  %v1700 = vpop.f32.mrf.mxu0
  %v1701 = vadd.f32 0.0, %v1700
  %1702 = vmatmul.f32.gmra.mxu0 %v1663
  %v1703 = vpop.f32.mrf.mxu0
  %v1704 = vadd.f32 0.0, %v1703
  %1705 = vmatmul.f32.gmra.mxu0 %v1666
  %v1706 = vpop.f32.mrf.mxu0
  %v1707 = vadd.f32 0.0, %v1706
  %1708 = vmatmul.f32.gmra.mxu0 %v1669
  %v1709 = vpop.f32.mrf.mxu0
  %v1710 = vadd.f32 0.0, %v1709
  %1711 = vmatmul.f32.gmra.mxu0 %v1672
  %v1712 = vpop.f32.mrf.mxu0
  %v1713 = vadd.f32 0.0, %v1712
  %1714 = vdwg.mxu0
  %v1715 = vmul.f32 %v1692, %v296
  %v1716 = vmul.f32 %v1695, %v296
  %v1717 = vmul.f32 %v1698, %v297
  %v1718 = vmul.f32 %v1701, %v297
  %v1719 = vmul.f32 %v1704, %v298
  %v1720 = vmul.f32 %v1707, %v298
  %v1721 = vmul.f32 %v1710, %v299
  %v1722 = vmul.f32 %v1713, %v299
  %v1723 = vsel %vm201, %v1715, 0.0
  %v1724 = vsel %vm201, %v1717, 0.0
  %v1725 = vadd.f32 %v1723, %v1724
  %v1726 = vsel %vm201, %v1719, 0.0
  %v1727 = vadd.f32 %v1725, %v1726
  %v1728 = vsel %vm201, %v1721, 0.0
  %v1729 = vadd.f32 %v1727, %v1728
  %v1730 = vsel %vm201, %v1716, 0.0
  %v1731 = vsel %vm201, %v1718, 0.0
  %v1732 = vadd.f32 %v1730, %v1731
  %v1733 = vsel %vm201, %v1720, 0.0
  %v1734 = vadd.f32 %v1732, %v1733
  %v1735 = vsel %vm201, %v1722, 0.0
  %v1736 = vadd.f32 %v1734, %v1735
  %s1737 = scalar_lea.vmem %s4, 64
  %v1738 = vld [vmem:[%s1737] sm:$0xff]
  %v1739 = vld [vmem:[%s1737 + $0x8] sm:$0xff]
  %v1740 = vld [vmem:[%s1737 + $0x10] sm:$0xff]
  %v1741 = vld [vmem:[%s1737 + $0x18] sm:$0xff]
  %v1743 = vsel %vm201, %v1729, 0
  %v1746 = vsel %vm201, %v1736, 0
  %1748 = vmatpush.msra.mxu0 0.0
  %1749 = vmatpush.msra.mxu0 0.0
  %1750 = vmatpush.msra.mxu0 0.0
  %1751 = vmatpush.msra.mxu0 0.0
  %1752 = vmatpush.msra.mxu0 0.0
  %1753 = vmatpush.msra.mxu0 0.0
  %1754 = vmatpush.msra.mxu0 0.0
  %1755 = vmatpush.msra.mxu0 0.0
  %1756 = vmatpush.msra.mxu0 0.0
  %1757 = vmatpush.msra.mxu0 0.0
  %1758 = vmatpush.msra.mxu0 0.0
  %1759 = vmatpush.msra.mxu0 0.0
  %1760 = vmatpush.msra.mxu0 %v1741
  %1761 = vmatpush.msra.mxu0 %v1740
  %1762 = vmatpush.msra.mxu0 %v1739
  %1763 = vmatpush.msra.mxu0 %v1738
  %1764 = vmatmul.f32.gmra.mxu0 %v1743
  %v1765 = vpop.f32.mrf.mxu0
  %v1766 = vadd.f32 0.0, %v1765
  %1767 = vmatmul.f32.gmra.mxu0 %v1746
  %v1768 = vpop.f32.mrf.mxu0
  %v1769 = vadd.f32 0.0, %v1768
  %1770 = vdwg.mxu0
  %v1771 = vadd.f32 %v163, %v1766
  %v1772 = vadd.f32 %v174, %v1769
  %v1773 = vld [vmem:[%s7 + $0xb] sm:$0x1]
  %v1774 = vperm.slane %v1773, 0
  %v1775 = vadd.f32 %v1771, %v1774
  %v1776 = vadd.f32 %v1772, %v1774
  %v1777 = vsel %vm201, %v1775, 0.0
  %1778 = vadd.xlane.f32.xlu0 %v1777
  %v1779 = vpop.xlane.xlu0 %1778
  %v1780 = vsel %vm201, %v1776, 0.0
  %1781 = vadd.xlane.f32.xlu0 %v1780
  %v1782 = vpop.xlane.xlu0 %1781
  %v1783 = vmul.f32 %v1779, %v1130
  %v1784 = vmul.f32 %v1782, %v1130
  %v1785 = vsub.f32 %v1775, %v1783
  %v1786 = vsub.f32 %v1776, %v1784
  %v1787 = vmul.f32 %v1785, %v1785
  %v1788 = vmul.f32 %v1786, %v1786
  %v1789 = vsel %vm201, %v1787, 0.0
  %1790 = vadd.xlane.f32.xlu0 %v1789
  %v1791 = vpop.xlane.xlu0 %1790
  %v1792 = vsel %vm201, %v1788, 0.0
  %1793 = vadd.xlane.f32.xlu0 %v1792
  %v1794 = vpop.xlane.xlu0 %1793
  %v1795 = vmul.f32 %v1791, %v1130
  %v1796 = vmul.f32 %v1794, %v1130
  %v1797 = vadd.f32 %v1795, 1e-05
  %v1798 = vadd.f32 %v1796, 1e-05
  %v1799 = vrsqrt.pop %v1797
  %v1800 = vmul.f32 %v1799, %v1797
  %v1801 = vmul.f32 %v1800, %v1799
  %v1802 = vmul.f32 0.5, %v1801
  %v1803 = vsub.f32 1.5, %v1802
  %v1804 = vmul.f32 %v1799, %v1803
  %vm1805 = vweird.f32 %v1797
  %vm1806 = vweird.f32 %v1799
  %vm1807 = vmor %vm1805, %vm1806
  %v1808 = vsel %vm1807, %v1799, %v1804
  %v1809 = vrsqrt.pop %v1798
  %v1810 = vmul.f32 %v1809, %v1798
  %v1811 = vmul.f32 %v1810, %v1809
  %v1812 = vmul.f32 0.5, %v1811
  %v1813 = vsub.f32 1.5, %v1812
  %v1814 = vmul.f32 %v1809, %v1813
  %vm1815 = vweird.f32 %v1798
  %vm1816 = vweird.f32 %v1809
  %vm1817 = vmor %vm1815, %vm1816
  %v1818 = vsel %vm1817, %v1809, %v1814
  %v1819 = vmul.f32 %v1785, %v1808
  %v1820 = vmul.f32 %v1786, %v1818
  %v1821 = vld [vmem:[%s7 + $0xe] sm:$0x1]
  %v1822 = vperm.slane %v1821, 0
  %v1823 = vmul.f32 %v1819, %v1822
  %v1824 = vmul.f32 %v1820, %v1822
  %v1825 = vld [vmem:[%s7 + $0xf] sm:$0x1]
  %v1826 = vperm.slane %v1825, 0
  %v1827 = vadd.f32 %v1823, %v1826
  %v1828 = vadd.f32 %v1824, %v1826
  %s1829 = scalar_lea.vmem %s4, 96
  %v1830 = vld [vmem:[%s1829] sm:$0xff]
  %v1831 = vld [vmem:[%s1829 + $0x8] sm:$0xff]
  %v1832 = vld [vmem:[%s1829 + $0x10] sm:$0xff]
  %v1833 = vld [vmem:[%s1829 + $0x18] sm:$0xff]
  %v1834 = vld [vmem:[%s7 + $0x10] sm:$0x1]
  %v1835 = vperm.slane %v1834, 0
  %1836 = vmatpush.msra.mxu0 0.0
  %1837 = vmatpush.msra.mxu0 0.0
  %1838 = vmatpush.msra.mxu0 0.0
  %1839 = vmatpush.msra.mxu0 0.0
  %1840 = vmatpush.msra.mxu0 0.0
  %1841 = vmatpush.msra.mxu0 0.0
  %1842 = vmatpush.msra.mxu0 0.0
  %1843 = vmatpush.msra.mxu0 0.0
  %1844 = vmatpush.msra.mxu0 0.0
  %1845 = vmatpush.msra.mxu0 0.0
  %1846 = vmatpush.msra.mxu0 0.0
  %1847 = vmatpush.msra.mxu0 0.0
  %1848 = vmatpush.msra.mxu0 %v1833
  %1849 = vmatpush.msra.mxu0 %v1832
  %1850 = vmatpush.msra.mxu0 %v1831
  %1851 = vmatpush.msra.mxu0 %v1830
  %1852 = vmatmul.f32.gmra.mxu0 %v1260
  %v1853 = vpop.f32.mrf.mxu0
  %v1854 = vadd.f32 %v1835, %v1853
  %1855 = vmatmul.f32.gmra.mxu0 %v1262
  %v1856 = vpop.f32.mrf.mxu0
  %v1857 = vadd.f32 %v1835, %v1856
  %1858 = vmatmul.f32.gmra.mxu0 %v1264
  %v1859 = vpop.f32.mrf.mxu0
  %v1860 = vadd.f32 %v1835, %v1859
  %1861 = vmatmul.f32.gmra.mxu0 %v1266
  %v1862 = vpop.f32.mrf.mxu0
  %v1863 = vadd.f32 %v1835, %v1862
  %1864 = vdwg.mxu0
  %s1865 = scalar_lea.vmem %s5, 64
  %v1866 = vld [vmem:[%s1865] sm:$0xff]
  %v1867 = vld [vmem:[%s1865 + $0x8] sm:$0xff]
  %v1868 = vld [vmem:[%s1865 + $0x10] sm:$0xff]
  %v1869 = vld [vmem:[%s1865 + $0x18] sm:$0xff]
  %v1871 = vsel %vm201, %v1827, 0
  %v1874 = vsel %vm201, %v1828, 0
  %1876 = vmatpush.msra.mxu0 0.0
  %1877 = vmatpush.msra.mxu0 0.0
  %1878 = vmatpush.msra.mxu0 0.0
  %1879 = vmatpush.msra.mxu0 0.0
  %1880 = vmatpush.msra.mxu0 0.0
  %1881 = vmatpush.msra.mxu0 0.0
  %1882 = vmatpush.msra.mxu0 0.0
  %1883 = vmatpush.msra.mxu0 0.0
  %1884 = vmatpush.msra.mxu0 0.0
  %1885 = vmatpush.msra.mxu0 0.0
  %1886 = vmatpush.msra.mxu0 0.0
  %1887 = vmatpush.msra.mxu0 0.0
  %1888 = vmatpush.msra.mxu0 %v1869
  %1889 = vmatpush.msra.mxu0 %v1868
  %1890 = vmatpush.msra.mxu0 %v1867
  %1891 = vmatpush.msra.mxu0 %v1866
  %1892 = vmatmul.f32.gmra.mxu0 %v1871
  %v1893 = vpop.f32.mrf.mxu0
  %v1894 = vadd.f32 0.0, %v1893
  %1895 = vmatmul.f32.gmra.mxu0 %v1874
  %v1896 = vpop.f32.mrf.mxu0
  %v1897 = vadd.f32 0.0, %v1896
  %1898 = vdwg.mxu0
  %v1899 = vld [vmem:[%s7 + $0x11] sm:$0x1]
  %v1900 = vperm.slane %v1899, 0
  %v1901 = vadd.f32 %v1894, %v1900
  %v1902 = vadd.f32 %v1897, %v1900
  %v1903 = vld [vmem:[%s7 + $0x12] sm:$0x1]
  %v1904 = vperm.slane %v1903, 0
  %1906 = vrot.lane.b32.xlu0 %v1904, 32
  %v1907 = vpop.permute.xlu0 %1906
  %v1909 = vadd.f32 %v1894, %v1907
  %v1910 = vadd.f32 %v1897, %v1907
  %v1911 = vld [vmem:[%s7 + $0x13] sm:$0x1]
  %v1912 = vperm.slane %v1911, 0
  %1914 = vrot.lane.b32.xlu0 %v1912, 64
  %v1915 = vpop.permute.xlu0 %1914
  %v1917 = vadd.f32 %v1894, %v1915
  %v1918 = vadd.f32 %v1897, %v1915
  %v1919 = vmul.f32 %v1854, %v296
  %v1920 = vmul.f32 %v1857, %v296
  %v1921 = vmul.f32 %v1860, %v296
  %v1922 = vmul.f32 %v1863, %v296
  %v1923 = vmul.f32 %v1854, %v297
  %v1924 = vmul.f32 %v1857, %v297
  %v1925 = vmul.f32 %v1860, %v297
  %v1926 = vmul.f32 %v1863, %v297
  %v1927 = vmul.f32 %v1854, %v298
  %v1928 = vmul.f32 %v1857, %v298
  %v1929 = vmul.f32 %v1860, %v298
  %v1930 = vmul.f32 %v1863, %v298
  %v1931 = vmul.f32 %v1854, %v299
  %v1932 = vmul.f32 %v1857, %v299
  %v1933 = vmul.f32 %v1860, %v299
  %v1934 = vmul.f32 %v1863, %v299
  %v1936 = vsel %vm201, %v1919, 0
  %v1939 = vsel %vm201, %v1920, 0
  %v1942 = vsel %vm201, %v1921, 0
  %v1945 = vsel %vm201, %v1922, 0
  %v1948 = vsel %vm201, %v1923, 0
  %v1951 = vsel %vm201, %v1924, 0
  %v1954 = vsel %vm201, %v1925, 0
  %v1957 = vsel %vm201, %v1926, 0
  %v1960 = vsel %vm201, %v1927, 0
  %v1963 = vsel %vm201, %v1928, 0
  %v1966 = vsel %vm201, %v1929, 0
  %v1969 = vsel %vm201, %v1930, 0
  %v1972 = vsel %vm201, %v1931, 0
  %v1975 = vsel %vm201, %v1932, 0
  %v1978 = vsel %vm201, %v1933, 0
  %v1981 = vsel %vm201, %v1934, 0
  %v1984 = vsel %vm201, %v1901, 0
  %v1987 = vsel %vm201, %v1902, 0
  %1989 = vmatpush.xpose.msra.mxu0 0.0
  %1990 = vmatpush.xpose.msra.mxu0 0.0
  %1991 = vmatpush.xpose.msra.mxu0 0.0
  %1992 = vmatpush.xpose.msra.mxu0 0.0
  %1993 = vmatpush.xpose.msra.mxu0 0.0
  %1994 = vmatpush.xpose.msra.mxu0 0.0
  %1995 = vmatpush.xpose.msra.mxu0 0.0
  %1996 = vmatpush.xpose.msra.mxu0 0.0
  %1997 = vmatpush.xpose.msra.mxu0 0.0
  %1998 = vmatpush.xpose.msra.mxu0 0.0
  %1999 = vmatpush.xpose.msra.mxu0 0.0
  %2000 = vmatpush.xpose.msra.mxu0 0.0
  %2001 = vmatpush.xpose.msra.mxu0 0.0
  %2002 = vmatpush.xpose.msra.mxu0 0.0
  %2003 = vmatpush.xpose.msra.mxu0 %v1987
  %2004 = vmatpush.xpose.msra.mxu0 %v1984
  %2005 = vmatmul.f32.gmra.mxu0 %v1936
  %v2006 = vpop.f32.mrf.mxu0
  %v2007 = vadd.f32 0.0, %v2006
  %2008 = vmatmul.f32.gmra.mxu0 %v1939
  %v2009 = vpop.f32.mrf.mxu0
  %v2010 = vadd.f32 0.0, %v2009
  %2011 = vmatmul.f32.gmra.mxu0 %v1942
  %v2012 = vpop.f32.mrf.mxu0
  %v2013 = vadd.f32 0.0, %v2012
  %2014 = vmatmul.f32.gmra.mxu0 %v1945
  %v2015 = vpop.f32.mrf.mxu0
  %v2016 = vadd.f32 0.0, %v2015
  %2017 = vmatmul.f32.gmra.mxu0 %v1948
  %v2018 = vpop.f32.mrf.mxu0
  %v2019 = vadd.f32 0.0, %v2018
  %2020 = vmatmul.f32.gmra.mxu0 %v1951
  %v2021 = vpop.f32.mrf.mxu0
  %v2022 = vadd.f32 0.0, %v2021
  %2023 = vmatmul.f32.gmra.mxu0 %v1954
  %v2024 = vpop.f32.mrf.mxu0
  %v2025 = vadd.f32 0.0, %v2024
  %2026 = vmatmul.f32.gmra.mxu0 %v1957
  %v2027 = vpop.f32.mrf.mxu0
  %v2028 = vadd.f32 0.0, %v2027
  %2029 = vmatmul.f32.gmra.mxu0 %v1960
  %v2030 = vpop.f32.mrf.mxu0
  %v2031 = vadd.f32 0.0, %v2030
  %2032 = vmatmul.f32.gmra.mxu0 %v1963
  %v2033 = vpop.f32.mrf.mxu0
  %v2034 = vadd.f32 0.0, %v2033
  %2035 = vmatmul.f32.gmra.mxu0 %v1966
  %v2036 = vpop.f32.mrf.mxu0
  %v2037 = vadd.f32 0.0, %v2036
  %2038 = vmatmul.f32.gmra.mxu0 %v1969
  %v2039 = vpop.f32.mrf.mxu0
  %v2040 = vadd.f32 0.0, %v2039
  %2041 = vmatmul.f32.gmra.mxu0 %v1972
  %v2042 = vpop.f32.mrf.mxu0
  %v2043 = vadd.f32 0.0, %v2042
  %2044 = vmatmul.f32.gmra.mxu0 %v1975
  %v2045 = vpop.f32.mrf.mxu0
  %v2046 = vadd.f32 0.0, %v2045
  %2047 = vmatmul.f32.gmra.mxu0 %v1978
  %v2048 = vpop.f32.mrf.mxu0
  %v2049 = vadd.f32 0.0, %v2048
  %2050 = vmatmul.f32.gmra.mxu0 %v1981
  %v2051 = vpop.f32.mrf.mxu0
  %v2052 = vadd.f32 0.0, %v2051
  %2053 = vdwg.mxu0
  %v2054 = vmul.f32 %v2007, 0.35355338
  %v2055 = vmul.f32 %v2010, 0.35355338
  %v2056 = vmul.f32 %v2013, 0.35355338
  %v2057 = vmul.f32 %v2016, 0.35355338
  %v2058 = vmul.f32 %v2019, 0.35355338
  %v2059 = vmul.f32 %v2022, 0.35355338
  %v2060 = vmul.f32 %v2025, 0.35355338
  %v2061 = vmul.f32 %v2028, 0.35355338
  %v2062 = vmul.f32 %v2031, 0.35355338
  %v2063 = vmul.f32 %v2034, 0.35355338
  %v2064 = vmul.f32 %v2037, 0.35355338
  %v2065 = vmul.f32 %v2040, 0.35355338
  %v2066 = vmul.f32 %v2043, 0.35355338
  %v2067 = vmul.f32 %v2046, 0.35355338
  %v2068 = vmul.f32 %v2049, 0.35355338
  %v2069 = vmul.f32 %v2052, 0.35355338
  %v2070 = vadd.f32 %v2054, %v38
  %v2071 = vadd.f32 %v2055, %v39
  %v2072 = vadd.f32 %v2056, %v40
  %v2073 = vadd.f32 %v2057, %v41
  %v2074 = vadd.f32 %v2058, %v42
  %v2075 = vadd.f32 %v2059, %v43
  %v2076 = vadd.f32 %v2060, %v44
  %v2077 = vadd.f32 %v2061, %v45
  %v2078 = vadd.f32 %v2062, %v46
  %v2079 = vadd.f32 %v2063, %v47
  %v2080 = vadd.f32 %v2064, %v48
  %v2081 = vadd.f32 %v2065, %v49
  %v2082 = vadd.f32 %v2066, %v50
  %v2083 = vadd.f32 %v2067, %v51
  %v2084 = vadd.f32 %v2068, %v52
  %v2085 = vadd.f32 %v2069, %v53
  %v2086 = vsel %vm85, %v2070, -inf
  %2087 = vmax.xlane.f32.xlu0 %v2086
  %v2088 = vpop.xlane.xlu0 %2087
  %v2089 = vsel %vm85, %v2071, -inf
  %2090 = vmax.xlane.f32.xlu0 %v2089
  %v2091 = vpop.xlane.xlu0 %2090
  %v2092 = vsel %vm85, %v2072, -inf
  %2093 = vmax.xlane.f32.xlu0 %v2092
  %v2094 = vpop.xlane.xlu0 %2093
  %v2095 = vsel %vm85, %v2073, -inf
  %2096 = vmax.xlane.f32.xlu0 %v2095
  %v2097 = vpop.xlane.xlu0 %2096
  %v2098 = vsel %vm85, %v2074, -inf
  %2099 = vmax.xlane.f32.xlu0 %v2098
  %v2100 = vpop.xlane.xlu0 %2099
  %v2101 = vsel %vm85, %v2075, -inf
  %2102 = vmax.xlane.f32.xlu0 %v2101
  %v2103 = vpop.xlane.xlu0 %2102
  %v2104 = vsel %vm85, %v2076, -inf
  %2105 = vmax.xlane.f32.xlu0 %v2104
  %v2106 = vpop.xlane.xlu0 %2105
  %v2107 = vsel %vm85, %v2077, -inf
  %2108 = vmax.xlane.f32.xlu0 %v2107
  %v2109 = vpop.xlane.xlu0 %2108
  %v2110 = vsel %vm85, %v2078, -inf
  %2111 = vmax.xlane.f32.xlu0 %v2110
  %v2112 = vpop.xlane.xlu0 %2111
  %v2113 = vsel %vm85, %v2079, -inf
  %2114 = vmax.xlane.f32.xlu0 %v2113
  %v2115 = vpop.xlane.xlu0 %2114
  %v2116 = vsel %vm85, %v2080, -inf
  %2117 = vmax.xlane.f32.xlu0 %v2116
  %v2118 = vpop.xlane.xlu0 %2117
  %v2119 = vsel %vm85, %v2081, -inf
  %2120 = vmax.xlane.f32.xlu0 %v2119
  %v2121 = vpop.xlane.xlu0 %2120
  %v2122 = vsel %vm85, %v2082, -inf
  %2123 = vmax.xlane.f32.xlu0 %v2122
  %v2124 = vpop.xlane.xlu0 %2123
  %v2125 = vsel %vm85, %v2083, -inf
  %2126 = vmax.xlane.f32.xlu0 %v2125
  %v2127 = vpop.xlane.xlu0 %2126
  %v2128 = vsel %vm85, %v2084, -inf
  %2129 = vmax.xlane.f32.xlu0 %v2128
  %v2130 = vpop.xlane.xlu0 %2129
  %v2131 = vsel %vm85, %v2085, -inf
  %2132 = vmax.xlane.f32.xlu0 %v2131
  %v2133 = vpop.xlane.xlu0 %2132
  %v2134 = vsub.f32 %v2070, %v2088
  %v2135 = vsub.f32 %v2071, %v2091
  %v2136 = vsub.f32 %v2072, %v2094
  %v2137 = vsub.f32 %v2073, %v2097
  %v2138 = vsub.f32 %v2074, %v2100
  %v2139 = vsub.f32 %v2075, %v2103
  %v2140 = vsub.f32 %v2076, %v2106
  %v2141 = vsub.f32 %v2077, %v2109
  %v2142 = vsub.f32 %v2078, %v2112
  %v2143 = vsub.f32 %v2079, %v2115
  %v2144 = vsub.f32 %v2080, %v2118
  %v2145 = vsub.f32 %v2081, %v2121
  %v2146 = vsub.f32 %v2082, %v2124
  %v2147 = vsub.f32 %v2083, %v2127
  %v2148 = vsub.f32 %v2084, %v2130
  %v2149 = vsub.f32 %v2085, %v2133
  %v2150 = vmul.f32 %v2134, 1.442695
  %v2151 = vpow.pop %v2150
  %v2152 = vmul.f32 %v2135, 1.442695
  %v2153 = vpow.pop %v2152
  %v2154 = vmul.f32 %v2136, 1.442695
  %v2155 = vpow.pop %v2154
  %v2156 = vmul.f32 %v2137, 1.442695
  %v2157 = vpow.pop %v2156
  %v2158 = vmul.f32 %v2138, 1.442695
  %v2159 = vpow.pop %v2158
  %v2160 = vmul.f32 %v2139, 1.442695
  %v2161 = vpow.pop %v2160
  %v2162 = vmul.f32 %v2140, 1.442695
  %v2163 = vpow.pop %v2162
  %v2164 = vmul.f32 %v2141, 1.442695
  %v2165 = vpow.pop %v2164
  %v2166 = vmul.f32 %v2142, 1.442695
  %v2167 = vpow.pop %v2166
  %v2168 = vmul.f32 %v2143, 1.442695
  %v2169 = vpow.pop %v2168
  %v2170 = vmul.f32 %v2144, 1.442695
  %v2171 = vpow.pop %v2170
  %v2172 = vmul.f32 %v2145, 1.442695
  %v2173 = vpow.pop %v2172
  %v2174 = vmul.f32 %v2146, 1.442695
  %v2175 = vpow.pop %v2174
  %v2176 = vmul.f32 %v2147, 1.442695
  %v2177 = vpow.pop %v2176
  %v2178 = vmul.f32 %v2148, 1.442695
  %v2179 = vpow.pop %v2178
  %v2180 = vmul.f32 %v2149, 1.442695
  %v2181 = vpow.pop %v2180
  %v2182 = vsel %vm85, %v2151, 0.0
  %2183 = vadd.xlane.f32.xlu0 %v2182
  %v2184 = vpop.xlane.xlu0 %2183
  %v2185 = vsel %vm85, %v2153, 0.0
  %2186 = vadd.xlane.f32.xlu0 %v2185
  %v2187 = vpop.xlane.xlu0 %2186
  %v2188 = vsel %vm85, %v2155, 0.0
  %2189 = vadd.xlane.f32.xlu0 %v2188
  %v2190 = vpop.xlane.xlu0 %2189
  %v2191 = vsel %vm85, %v2157, 0.0
  %2192 = vadd.xlane.f32.xlu0 %v2191
  %v2193 = vpop.xlane.xlu0 %2192
  %v2194 = vsel %vm85, %v2159, 0.0
  %2195 = vadd.xlane.f32.xlu0 %v2194
  %v2196 = vpop.xlane.xlu0 %2195
  %v2197 = vsel %vm85, %v2161, 0.0
  %2198 = vadd.xlane.f32.xlu0 %v2197
  %v2199 = vpop.xlane.xlu0 %2198
  %v2200 = vsel %vm85, %v2163, 0.0
  %2201 = vadd.xlane.f32.xlu0 %v2200
  %v2202 = vpop.xlane.xlu0 %2201
  %v2203 = vsel %vm85, %v2165, 0.0
  %2204 = vadd.xlane.f32.xlu0 %v2203
  %v2205 = vpop.xlane.xlu0 %2204
  %v2206 = vsel %vm85, %v2167, 0.0
  %2207 = vadd.xlane.f32.xlu0 %v2206
  %v2208 = vpop.xlane.xlu0 %2207
  %v2209 = vsel %vm85, %v2169, 0.0
  %2210 = vadd.xlane.f32.xlu0 %v2209
  %v2211 = vpop.xlane.xlu0 %2210
  %v2212 = vsel %vm85, %v2171, 0.0
  %2213 = vadd.xlane.f32.xlu0 %v2212
  %v2214 = vpop.xlane.xlu0 %2213
  %v2215 = vsel %vm85, %v2173, 0.0
  %2216 = vadd.xlane.f32.xlu0 %v2215
  %v2217 = vpop.xlane.xlu0 %2216
  %v2218 = vsel %vm85, %v2175, 0.0
  %2219 = vadd.xlane.f32.xlu0 %v2218
  %v2220 = vpop.xlane.xlu0 %2219
  %v2221 = vsel %vm85, %v2177, 0.0
  %2222 = vadd.xlane.f32.xlu0 %v2221
  %v2223 = vpop.xlane.xlu0 %2222
  %v2224 = vsel %vm85, %v2179, 0.0
  %2225 = vadd.xlane.f32.xlu0 %v2224
  %v2226 = vpop.xlane.xlu0 %2225
  %v2227 = vsel %vm85, %v2181, 0.0
  %2228 = vadd.xlane.f32.xlu0 %v2227
  %v2229 = vpop.xlane.xlu0 %2228
  %v2230 = vrcp.pop %v2184
  %v2231 = vmul.f32 %v2184, %v2230
  %v2232 = vsub.f32 1.0, %v2231
  %v2233 = vmul.f32 %v2230, %v2232
  %v2234 = vadd.f32 %v2230, %v2233
  %vm2235 = vweird.f32 %v2184
  %vm2236 = vweird.f32 %v2230
  %vm2237 = vmor %vm2235, %vm2236
  %v2238 = vsel %vm2237, %v2230, %v2234
  %v2239 = vand.u32 2147483647, %v2184
  %vm2240 = vcmp.eq.f32.partialorder %v2239, 8.507059e+37
  %v2241 = vand.u32 %v2184, 2147483648
  %v2242 = vor.u32 1.1754944e-38, %v2241
  %v2243 = vsel %vm2240, %v2242, %v2238
  %v2244 = vmul.f32 %v2151, %v2243
  %v2245 = vrcp.pop %v2187
  %v2246 = vmul.f32 %v2187, %v2245
  %v2247 = vsub.f32 1.0, %v2246
  %v2248 = vmul.f32 %v2245, %v2247
  %v2249 = vadd.f32 %v2245, %v2248
  %vm2250 = vweird.f32 %v2187
  %vm2251 = vweird.f32 %v2245
  %vm2252 = vmor %vm2250, %vm2251
  %v2253 = vsel %vm2252, %v2245, %v2249
  %v2254 = vand.u32 2147483647, %v2187
  %vm2255 = vcmp.eq.f32.partialorder %v2254, 8.507059e+37
  %v2256 = vand.u32 %v2187, 2147483648
  %v2257 = vor.u32 1.1754944e-38, %v2256
  %v2258 = vsel %vm2255, %v2257, %v2253
  %v2259 = vmul.f32 %v2153, %v2258
  %v2260 = vrcp.pop %v2190
  %v2261 = vmul.f32 %v2190, %v2260
  %v2262 = vsub.f32 1.0, %v2261
  %v2263 = vmul.f32 %v2260, %v2262
  %v2264 = vadd.f32 %v2260, %v2263
  %vm2265 = vweird.f32 %v2190
  %vm2266 = vweird.f32 %v2260
  %vm2267 = vmor %vm2265, %vm2266
  %v2268 = vsel %vm2267, %v2260, %v2264
  %v2269 = vand.u32 2147483647, %v2190
  %vm2270 = vcmp.eq.f32.partialorder %v2269, 8.507059e+37
  %v2271 = vand.u32 %v2190, 2147483648
  %v2272 = vor.u32 1.1754944e-38, %v2271
  %v2273 = vsel %vm2270, %v2272, %v2268
  %v2274 = vmul.f32 %v2155, %v2273
  %v2275 = vrcp.pop %v2193
  %v2276 = vmul.f32 %v2193, %v2275
  %v2277 = vsub.f32 1.0, %v2276
  %v2278 = vmul.f32 %v2275, %v2277
  %v2279 = vadd.f32 %v2275, %v2278
  %vm2280 = vweird.f32 %v2193
  %vm2281 = vweird.f32 %v2275
  %vm2282 = vmor %vm2280, %vm2281
  %v2283 = vsel %vm2282, %v2275, %v2279
  %v2284 = vand.u32 2147483647, %v2193
  %vm2285 = vcmp.eq.f32.partialorder %v2284, 8.507059e+37
  %v2286 = vand.u32 %v2193, 2147483648
  %v2287 = vor.u32 1.1754944e-38, %v2286
  %v2288 = vsel %vm2285, %v2287, %v2283
  %v2289 = vmul.f32 %v2157, %v2288
  %v2290 = vrcp.pop %v2196
  %v2291 = vmul.f32 %v2196, %v2290
  %v2292 = vsub.f32 1.0, %v2291
  %v2293 = vmul.f32 %v2290, %v2292
  %v2294 = vadd.f32 %v2290, %v2293
  %vm2295 = vweird.f32 %v2196
  %vm2296 = vweird.f32 %v2290
  %vm2297 = vmor %vm2295, %vm2296
  %v2298 = vsel %vm2297, %v2290, %v2294
  %v2299 = vand.u32 2147483647, %v2196
  %vm2300 = vcmp.eq.f32.partialorder %v2299, 8.507059e+37
  %v2301 = vand.u32 %v2196, 2147483648
  %v2302 = vor.u32 1.1754944e-38, %v2301
  %v2303 = vsel %vm2300, %v2302, %v2298
  %v2304 = vmul.f32 %v2159, %v2303
  %v2305 = vrcp.pop %v2199
  %v2306 = vmul.f32 %v2199, %v2305
  %v2307 = vsub.f32 1.0, %v2306
  %v2308 = vmul.f32 %v2305, %v2307
  %v2309 = vadd.f32 %v2305, %v2308
  %vm2310 = vweird.f32 %v2199
  %vm2311 = vweird.f32 %v2305
  %vm2312 = vmor %vm2310, %vm2311
  %v2313 = vsel %vm2312, %v2305, %v2309
  %v2314 = vand.u32 2147483647, %v2199
  %vm2315 = vcmp.eq.f32.partialorder %v2314, 8.507059e+37
  %v2316 = vand.u32 %v2199, 2147483648
  %v2317 = vor.u32 1.1754944e-38, %v2316
  %v2318 = vsel %vm2315, %v2317, %v2313
  %v2319 = vmul.f32 %v2161, %v2318
  %v2320 = vrcp.pop %v2202
  %v2321 = vmul.f32 %v2202, %v2320
  %v2322 = vsub.f32 1.0, %v2321
  %v2323 = vmul.f32 %v2320, %v2322
  %v2324 = vadd.f32 %v2320, %v2323
  %vm2325 = vweird.f32 %v2202
  %vm2326 = vweird.f32 %v2320
  %vm2327 = vmor %vm2325, %vm2326
  %v2328 = vsel %vm2327, %v2320, %v2324
  %v2329 = vand.u32 2147483647, %v2202
  %vm2330 = vcmp.eq.f32.partialorder %v2329, 8.507059e+37
  %v2331 = vand.u32 %v2202, 2147483648
  %v2332 = vor.u32 1.1754944e-38, %v2331
  %v2333 = vsel %vm2330, %v2332, %v2328
  %v2334 = vmul.f32 %v2163, %v2333
  %v2335 = vrcp.pop %v2205
  %v2336 = vmul.f32 %v2205, %v2335
  %v2337 = vsub.f32 1.0, %v2336
  %v2338 = vmul.f32 %v2335, %v2337
  %v2339 = vadd.f32 %v2335, %v2338
  %vm2340 = vweird.f32 %v2205
  %vm2341 = vweird.f32 %v2335
  %vm2342 = vmor %vm2340, %vm2341
  %v2343 = vsel %vm2342, %v2335, %v2339
  %v2344 = vand.u32 2147483647, %v2205
  %vm2345 = vcmp.eq.f32.partialorder %v2344, 8.507059e+37
  %v2346 = vand.u32 %v2205, 2147483648
  %v2347 = vor.u32 1.1754944e-38, %v2346
  %v2348 = vsel %vm2345, %v2347, %v2343
  %v2349 = vmul.f32 %v2165, %v2348
  %v2350 = vrcp.pop %v2208
  %v2351 = vmul.f32 %v2208, %v2350
  %v2352 = vsub.f32 1.0, %v2351
  %v2353 = vmul.f32 %v2350, %v2352
  %v2354 = vadd.f32 %v2350, %v2353
  %vm2355 = vweird.f32 %v2208
  %vm2356 = vweird.f32 %v2350
  %vm2357 = vmor %vm2355, %vm2356
  %v2358 = vsel %vm2357, %v2350, %v2354
  %v2359 = vand.u32 2147483647, %v2208
  %vm2360 = vcmp.eq.f32.partialorder %v2359, 8.507059e+37
  %v2361 = vand.u32 %v2208, 2147483648
  %v2362 = vor.u32 1.1754944e-38, %v2361
  %v2363 = vsel %vm2360, %v2362, %v2358
  %v2364 = vmul.f32 %v2167, %v2363
  %v2365 = vrcp.pop %v2211
  %v2366 = vmul.f32 %v2211, %v2365
  %v2367 = vsub.f32 1.0, %v2366
  %v2368 = vmul.f32 %v2365, %v2367
  %v2369 = vadd.f32 %v2365, %v2368
  %vm2370 = vweird.f32 %v2211
  %vm2371 = vweird.f32 %v2365
  %vm2372 = vmor %vm2370, %vm2371
  %v2373 = vsel %vm2372, %v2365, %v2369
  %v2374 = vand.u32 2147483647, %v2211
  %vm2375 = vcmp.eq.f32.partialorder %v2374, 8.507059e+37
  %v2376 = vand.u32 %v2211, 2147483648
  %v2377 = vor.u32 1.1754944e-38, %v2376
  %v2378 = vsel %vm2375, %v2377, %v2373
  %v2379 = vmul.f32 %v2169, %v2378
  %v2380 = vrcp.pop %v2214
  %v2381 = vmul.f32 %v2214, %v2380
  %v2382 = vsub.f32 1.0, %v2381
  %v2383 = vmul.f32 %v2380, %v2382
  %v2384 = vadd.f32 %v2380, %v2383
  %vm2385 = vweird.f32 %v2214
  %vm2386 = vweird.f32 %v2380
  %vm2387 = vmor %vm2385, %vm2386
  %v2388 = vsel %vm2387, %v2380, %v2384
  %v2389 = vand.u32 2147483647, %v2214
  %vm2390 = vcmp.eq.f32.partialorder %v2389, 8.507059e+37
  %v2391 = vand.u32 %v2214, 2147483648
  %v2392 = vor.u32 1.1754944e-38, %v2391
  %v2393 = vsel %vm2390, %v2392, %v2388
  %v2394 = vmul.f32 %v2171, %v2393
  %v2395 = vrcp.pop %v2217
  %v2396 = vmul.f32 %v2217, %v2395
  %v2397 = vsub.f32 1.0, %v2396
  %v2398 = vmul.f32 %v2395, %v2397
  %v2399 = vadd.f32 %v2395, %v2398
  %vm2400 = vweird.f32 %v2217
  %vm2401 = vweird.f32 %v2395
  %vm2402 = vmor %vm2400, %vm2401
  %v2403 = vsel %vm2402, %v2395, %v2399
  %v2404 = vand.u32 2147483647, %v2217
  %vm2405 = vcmp.eq.f32.partialorder %v2404, 8.507059e+37
  %v2406 = vand.u32 %v2217, 2147483648
  %v2407 = vor.u32 1.1754944e-38, %v2406
  %v2408 = vsel %vm2405, %v2407, %v2403
  %v2409 = vmul.f32 %v2173, %v2408
  %v2410 = vrcp.pop %v2220
  %v2411 = vmul.f32 %v2220, %v2410
  %v2412 = vsub.f32 1.0, %v2411
  %v2413 = vmul.f32 %v2410, %v2412
  %v2414 = vadd.f32 %v2410, %v2413
  %vm2415 = vweird.f32 %v2220
  %vm2416 = vweird.f32 %v2410
  %vm2417 = vmor %vm2415, %vm2416
  %v2418 = vsel %vm2417, %v2410, %v2414
  %v2419 = vand.u32 2147483647, %v2220
  %vm2420 = vcmp.eq.f32.partialorder %v2419, 8.507059e+37
  %v2421 = vand.u32 %v2220, 2147483648
  %v2422 = vor.u32 1.1754944e-38, %v2421
  %v2423 = vsel %vm2420, %v2422, %v2418
  %v2424 = vmul.f32 %v2175, %v2423
  %v2425 = vrcp.pop %v2223
  %v2426 = vmul.f32 %v2223, %v2425
  %v2427 = vsub.f32 1.0, %v2426
  %v2428 = vmul.f32 %v2425, %v2427
  %v2429 = vadd.f32 %v2425, %v2428
  %vm2430 = vweird.f32 %v2223
  %vm2431 = vweird.f32 %v2425
  %vm2432 = vmor %vm2430, %vm2431
  %v2433 = vsel %vm2432, %v2425, %v2429
  %v2434 = vand.u32 2147483647, %v2223
  %vm2435 = vcmp.eq.f32.partialorder %v2434, 8.507059e+37
  %v2436 = vand.u32 %v2223, 2147483648
  %v2437 = vor.u32 1.1754944e-38, %v2436
  %v2438 = vsel %vm2435, %v2437, %v2433
  %v2439 = vmul.f32 %v2177, %v2438
  %v2440 = vrcp.pop %v2226
  %v2441 = vmul.f32 %v2226, %v2440
  %v2442 = vsub.f32 1.0, %v2441
  %v2443 = vmul.f32 %v2440, %v2442
  %v2444 = vadd.f32 %v2440, %v2443
  %vm2445 = vweird.f32 %v2226
  %vm2446 = vweird.f32 %v2440
  %vm2447 = vmor %vm2445, %vm2446
  %v2448 = vsel %vm2447, %v2440, %v2444
  %v2449 = vand.u32 2147483647, %v2226
  %vm2450 = vcmp.eq.f32.partialorder %v2449, 8.507059e+37
  %v2451 = vand.u32 %v2226, 2147483648
  %v2452 = vor.u32 1.1754944e-38, %v2451
  %v2453 = vsel %vm2450, %v2452, %v2448
  %v2454 = vmul.f32 %v2179, %v2453
  %v2455 = vrcp.pop %v2229
  %v2456 = vmul.f32 %v2229, %v2455
  %v2457 = vsub.f32 1.0, %v2456
  %v2458 = vmul.f32 %v2455, %v2457
  %v2459 = vadd.f32 %v2455, %v2458
  %vm2460 = vweird.f32 %v2229
  %vm2461 = vweird.f32 %v2455
  %vm2462 = vmor %vm2460, %vm2461
  %v2463 = vsel %vm2462, %v2455, %v2459
  %v2464 = vand.u32 2147483647, %v2229
  %vm2465 = vcmp.eq.f32.partialorder %v2464, 8.507059e+37
  %v2466 = vand.u32 %v2229, 2147483648
  %v2467 = vor.u32 1.1754944e-38, %v2466
  %v2468 = vsel %vm2465, %v2467, %v2463
  %v2469 = vmul.f32 %v2181, %v2468
  %2472 = vrot.lane.b32.xlu0 %v1909, 96
  %v2473 = vpop.permute.xlu0 %2472
  %2474 = vrot.lane.b32.xlu0 %v1910, 96
  %v2475 = vpop.permute.xlu0 %2474
  %v2479 = vsel %vm85, %v2244, 0
  %v2482 = vsel %vm85, %v2259, 0
  %v2485 = vsel %vm85, %v2274, 0
  %v2488 = vsel %vm85, %v2289, 0
  %v2491 = vsel %vm85, %v2304, 0
  %v2494 = vsel %vm85, %v2319, 0
  %v2497 = vsel %vm85, %v2334, 0
  %v2500 = vsel %vm85, %v2349, 0
  %v2503 = vsel %vm85, %v2364, 0
  %v2506 = vsel %vm85, %v2379, 0
  %v2509 = vsel %vm85, %v2394, 0
  %v2512 = vsel %vm85, %v2409, 0
  %v2515 = vsel %vm85, %v2424, 0
  %v2518 = vsel %vm85, %v2439, 0
  %v2521 = vsel %vm85, %v2454, 0
  %v2524 = vsel %vm85, %v2469, 0
  %2526 = vmatpush.msra.mxu0 0.0
  %2527 = vmatpush.msra.mxu0 0.0
  %2528 = vmatpush.msra.mxu0 0.0
  %2529 = vmatpush.msra.mxu0 0.0
  %2530 = vmatpush.msra.mxu0 0.0
  %2531 = vmatpush.msra.mxu0 0.0
  %2532 = vmatpush.msra.mxu0 0.0
  %2533 = vmatpush.msra.mxu0 0.0
  %2534 = vmatpush.msra.mxu0 0.0
  %2535 = vmatpush.msra.mxu0 0.0
  %2536 = vmatpush.msra.mxu0 0.0
  %2537 = vmatpush.msra.mxu0 0.0
  %2538 = vmatpush.msra.mxu0 0.0
  %2539 = vmatpush.msra.mxu0 0.0
  %2540 = vmatpush.msra.mxu0 %v2475
  %2541 = vmatpush.msra.mxu0 %v2473
  %2542 = vmatmul.f32.gmra.mxu0 %v2479
  %v2543 = vpop.f32.mrf.mxu0
  %v2544 = vadd.f32 0.0, %v2543
  %2545 = vmatmul.f32.gmra.mxu0 %v2482
  %v2546 = vpop.f32.mrf.mxu0
  %v2547 = vadd.f32 0.0, %v2546
  %2548 = vmatmul.f32.gmra.mxu0 %v2485
  %v2549 = vpop.f32.mrf.mxu0
  %v2550 = vadd.f32 0.0, %v2549
  %2551 = vmatmul.f32.gmra.mxu0 %v2488
  %v2552 = vpop.f32.mrf.mxu0
  %v2553 = vadd.f32 0.0, %v2552
  %2554 = vmatmul.f32.gmra.mxu0 %v2491
  %v2555 = vpop.f32.mrf.mxu0
  %v2556 = vadd.f32 0.0, %v2555
  %2557 = vmatmul.f32.gmra.mxu0 %v2494
  %v2558 = vpop.f32.mrf.mxu0
  %v2559 = vadd.f32 0.0, %v2558
  %2560 = vmatmul.f32.gmra.mxu0 %v2497
  %v2561 = vpop.f32.mrf.mxu0
  %v2562 = vadd.f32 0.0, %v2561
  %2563 = vmatmul.f32.gmra.mxu0 %v2500
  %v2564 = vpop.f32.mrf.mxu0
  %v2565 = vadd.f32 0.0, %v2564
  %2566 = vmatmul.f32.gmra.mxu0 %v2503
  %v2567 = vpop.f32.mrf.mxu0
  %v2568 = vadd.f32 0.0, %v2567
  %2569 = vmatmul.f32.gmra.mxu0 %v2506
  %v2570 = vpop.f32.mrf.mxu0
  %v2571 = vadd.f32 0.0, %v2570
  %2572 = vmatmul.f32.gmra.mxu0 %v2509
  %v2573 = vpop.f32.mrf.mxu0
  %v2574 = vadd.f32 0.0, %v2573
  %2575 = vmatmul.f32.gmra.mxu0 %v2512
  %v2576 = vpop.f32.mrf.mxu0
  %v2577 = vadd.f32 0.0, %v2576
  %2578 = vmatmul.f32.gmra.mxu0 %v2515
  %v2579 = vpop.f32.mrf.mxu0
  %v2580 = vadd.f32 0.0, %v2579
  %2581 = vmatmul.f32.gmra.mxu0 %v2518
  %v2582 = vpop.f32.mrf.mxu0
  %v2583 = vadd.f32 0.0, %v2582
  %2584 = vmatmul.f32.gmra.mxu0 %v2521
  %v2585 = vpop.f32.mrf.mxu0
  %v2586 = vadd.f32 0.0, %v2585
  %2587 = vmatmul.f32.gmra.mxu0 %v2524
  %v2588 = vpop.f32.mrf.mxu0
  %v2589 = vadd.f32 0.0, %v2588
  %2590 = vdwg.mxu0
  %v2591 = vmul.f32 %v2544, %v296
  %v2592 = vmul.f32 %v2547, %v296
  %v2593 = vmul.f32 %v2550, %v296
  %v2594 = vmul.f32 %v2553, %v296
  %v2595 = vmul.f32 %v2556, %v297
  %v2596 = vmul.f32 %v2559, %v297
  %v2597 = vmul.f32 %v2562, %v297
  %v2598 = vmul.f32 %v2565, %v297
  %v2599 = vmul.f32 %v2568, %v298
  %v2600 = vmul.f32 %v2571, %v298
  %v2601 = vmul.f32 %v2574, %v298
  %v2602 = vmul.f32 %v2577, %v298
  %v2603 = vmul.f32 %v2580, %v299
  %v2604 = vmul.f32 %v2583, %v299
  %v2605 = vmul.f32 %v2586, %v299
  %v2606 = vmul.f32 %v2589, %v299
  %v2607 = vsel %vm201, %v2591, 0.0
  %v2608 = vsel %vm201, %v2595, 0.0
  %v2609 = vadd.f32 %v2607, %v2608
  %v2610 = vsel %vm201, %v2599, 0.0
  %v2611 = vadd.f32 %v2609, %v2610
  %v2612 = vsel %vm201, %v2603, 0.0
  %v2613 = vadd.f32 %v2611, %v2612
  %v2614 = vsel %vm201, %v2592, 0.0
  %v2615 = vsel %vm201, %v2596, 0.0
  %v2616 = vadd.f32 %v2614, %v2615
  %v2617 = vsel %vm201, %v2600, 0.0
  %v2618 = vadd.f32 %v2616, %v2617
  %v2619 = vsel %vm201, %v2604, 0.0
  %v2620 = vadd.f32 %v2618, %v2619
  %v2621 = vsel %vm201, %v2593, 0.0
  %v2622 = vsel %vm201, %v2597, 0.0
  %v2623 = vadd.f32 %v2621, %v2622
  %v2624 = vsel %vm201, %v2601, 0.0
  %v2625 = vadd.f32 %v2623, %v2624
  %v2626 = vsel %vm201, %v2605, 0.0
  %v2627 = vadd.f32 %v2625, %v2626
  %v2628 = vsel %vm201, %v2594, 0.0
  %v2629 = vsel %vm201, %v2598, 0.0
  %v2630 = vadd.f32 %v2628, %v2629
  %v2631 = vsel %vm201, %v2602, 0.0
  %v2632 = vadd.f32 %v2630, %v2631
  %v2633 = vsel %vm201, %v2606, 0.0
  %v2634 = vadd.f32 %v2632, %v2633
  %s2635 = scalar_lea.vmem %s4, 128
  %v2636 = vld [vmem:[%s2635] sm:$0xff]
  %v2637 = vld [vmem:[%s2635 + $0x8] sm:$0xff]
  %v2638 = vld [vmem:[%s2635 + $0x10] sm:$0xff]
  %v2639 = vld [vmem:[%s2635 + $0x18] sm:$0xff]
  %v2641 = vsel %vm201, %v2613, 0
  %v2644 = vsel %vm201, %v2620, 0
  %v2647 = vsel %vm201, %v2627, 0
  %v2650 = vsel %vm201, %v2634, 0
  %2652 = vmatpush.msra.mxu0 0.0
  %2653 = vmatpush.msra.mxu0 0.0
  %2654 = vmatpush.msra.mxu0 0.0
  %2655 = vmatpush.msra.mxu0 0.0
  %2656 = vmatpush.msra.mxu0 0.0
  %2657 = vmatpush.msra.mxu0 0.0
  %2658 = vmatpush.msra.mxu0 0.0
  %2659 = vmatpush.msra.mxu0 0.0
  %2660 = vmatpush.msra.mxu0 0.0
  %2661 = vmatpush.msra.mxu0 0.0
  %2662 = vmatpush.msra.mxu0 0.0
  %2663 = vmatpush.msra.mxu0 0.0
  %2664 = vmatpush.msra.mxu0 %v2639
  %2665 = vmatpush.msra.mxu0 %v2638
  %2666 = vmatpush.msra.mxu0 %v2637
  %2667 = vmatpush.msra.mxu0 %v2636
  %2668 = vmatmul.f32.gmra.mxu0 %v2641
  %v2669 = vpop.f32.mrf.mxu0
  %v2670 = vadd.f32 0.0, %v2669
  %2671 = vmatmul.f32.gmra.mxu0 %v2644
  %v2672 = vpop.f32.mrf.mxu0
  %v2673 = vadd.f32 0.0, %v2672
  %2674 = vmatmul.f32.gmra.mxu0 %v2647
  %v2675 = vpop.f32.mrf.mxu0
  %v2676 = vadd.f32 0.0, %v2675
  %2677 = vmatmul.f32.gmra.mxu0 %v2650
  %v2678 = vpop.f32.mrf.mxu0
  %v2679 = vadd.f32 0.0, %v2678
  %2680 = vdwg.mxu0
  %2685 = vrot.lane.b32.xlu0 %v2670, 32
  %v2686 = vpop.permute.xlu0 %2685
  %2687 = vrot.lane.b32.xlu0 %v2673, 32
  %v2688 = vpop.permute.xlu0 %2687
  %2689 = vrot.lane.b32.xlu0 %v2676, 32
  %v2690 = vpop.permute.xlu0 %2689
  %2691 = vrot.lane.b32.xlu0 %v2679, 32
  %v2692 = vpop.permute.xlu0 %2691
  %v2697 = vadd.f32 %v1239, %v2686
  %v2698 = vadd.f32 %v1240, %v2688
  %v2699 = vadd.f32 %v1241, %v2690
  %v2700 = vadd.f32 %v1242, %v2692
  %v2701 = vld [vmem:[%s7 + $0x16] sm:$0x1]
  %v2702 = vperm.slane %v2701, 0
  %2704 = vrot.lane.b32.xlu0 %v2702, 32
  %v2705 = vpop.permute.xlu0 %2704
  %v2707 = vadd.f32 %v2697, %v2705
  %v2708 = vadd.f32 %v2698, %v2705
  %v2709 = vadd.f32 %v2699, %v2705
  %v2710 = vadd.f32 %v2700, %v2705
  %2715 = vrot.lane.b32.xlu0 %v2707, 96
  %v2716 = vpop.permute.xlu0 %2715
  %2717 = vrot.lane.b32.xlu0 %v2708, 96
  %v2718 = vpop.permute.xlu0 %2717
  %2719 = vrot.lane.b32.xlu0 %v2709, 96
  %v2720 = vpop.permute.xlu0 %2719
  %2721 = vrot.lane.b32.xlu0 %v2710, 96
  %v2722 = vpop.permute.xlu0 %2721
  %v2727 = vsel %vm201, %v2716, 0.0
  %2728 = vadd.xlane.f32.xlu0 %v2727
  %v2729 = vpop.xlane.xlu0 %2728
  %v2730 = vsel %vm201, %v2718, 0.0
  %2731 = vadd.xlane.f32.xlu0 %v2730
  %v2732 = vpop.xlane.xlu0 %2731
  %v2733 = vsel %vm201, %v2720, 0.0
  %2734 = vadd.xlane.f32.xlu0 %v2733
  %v2735 = vpop.xlane.xlu0 %2734
  %v2736 = vsel %vm201, %v2722, 0.0
  %2737 = vadd.xlane.f32.xlu0 %v2736
  %v2738 = vpop.xlane.xlu0 %2737
  %v2739 = vmul.f32 %v2729, %v1130
  %v2740 = vmul.f32 %v2732, %v1130
  %v2741 = vmul.f32 %v2735, %v1130
  %v2742 = vmul.f32 %v2738, %v1130
  %v2743 = vsub.f32 %v2707, %v2739
  %v2744 = vsub.f32 %v2708, %v2740
  %v2745 = vsub.f32 %v2709, %v2741
  %v2746 = vsub.f32 %v2710, %v2742
  %v2747 = vmul.f32 %v2743, %v2743
  %v2748 = vmul.f32 %v2744, %v2744
  %v2749 = vmul.f32 %v2745, %v2745
  %v2750 = vmul.f32 %v2746, %v2746
  %2755 = vrot.lane.b32.xlu0 %v2747, 96
  %v2756 = vpop.permute.xlu0 %2755
  %2757 = vrot.lane.b32.xlu0 %v2748, 96
  %v2758 = vpop.permute.xlu0 %2757
  %2759 = vrot.lane.b32.xlu0 %v2749, 96
  %v2760 = vpop.permute.xlu0 %2759
  %2761 = vrot.lane.b32.xlu0 %v2750, 96
  %v2762 = vpop.permute.xlu0 %2761
  %v2767 = vsel %vm201, %v2756, 0.0
  %2768 = vadd.xlane.f32.xlu0 %v2767
  %v2769 = vpop.xlane.xlu0 %2768
  %v2770 = vsel %vm201, %v2758, 0.0
  %2771 = vadd.xlane.f32.xlu0 %v2770
  %v2772 = vpop.xlane.xlu0 %2771
  %v2773 = vsel %vm201, %v2760, 0.0
  %2774 = vadd.xlane.f32.xlu0 %v2773
  %v2775 = vpop.xlane.xlu0 %2774
  %v2776 = vsel %vm201, %v2762, 0.0
  %2777 = vadd.xlane.f32.xlu0 %v2776
  %v2778 = vpop.xlane.xlu0 %2777
  %v2779 = vmul.f32 %v2769, %v1130
  %v2780 = vmul.f32 %v2772, %v1130
  %v2781 = vmul.f32 %v2775, %v1130
  %v2782 = vmul.f32 %v2778, %v1130
  %v2783 = vadd.f32 %v2779, 1e-05
  %v2784 = vadd.f32 %v2780, 1e-05
  %v2785 = vadd.f32 %v2781, 1e-05
  %v2786 = vadd.f32 %v2782, 1e-05
  %v2787 = vrsqrt.pop %v2783
  %v2788 = vmul.f32 %v2787, %v2783
  %v2789 = vmul.f32 %v2788, %v2787
  %v2790 = vmul.f32 0.5, %v2789
  %v2791 = vsub.f32 1.5, %v2790
  %v2792 = vmul.f32 %v2787, %v2791
  %vm2793 = vweird.f32 %v2783
  %vm2794 = vweird.f32 %v2787
  %vm2795 = vmor %vm2793, %vm2794
  %v2796 = vsel %vm2795, %v2787, %v2792
  %v2797 = vrsqrt.pop %v2784
  %v2798 = vmul.f32 %v2797, %v2784
  %v2799 = vmul.f32 %v2798, %v2797
  %v2800 = vmul.f32 0.5, %v2799
  %v2801 = vsub.f32 1.5, %v2800
  %v2802 = vmul.f32 %v2797, %v2801
  %vm2803 = vweird.f32 %v2784
  %vm2804 = vweird.f32 %v2797
  %vm2805 = vmor %vm2803, %vm2804
  %v2806 = vsel %vm2805, %v2797, %v2802
  %v2807 = vrsqrt.pop %v2785
  %v2808 = vmul.f32 %v2807, %v2785
  %v2809 = vmul.f32 %v2808, %v2807
  %v2810 = vmul.f32 0.5, %v2809
  %v2811 = vsub.f32 1.5, %v2810
  %v2812 = vmul.f32 %v2807, %v2811
  %vm2813 = vweird.f32 %v2785
  %vm2814 = vweird.f32 %v2807
  %vm2815 = vmor %vm2813, %vm2814
  %v2816 = vsel %vm2815, %v2807, %v2812
  %v2817 = vrsqrt.pop %v2786
  %v2818 = vmul.f32 %v2817, %v2786
  %v2819 = vmul.f32 %v2818, %v2817
  %v2820 = vmul.f32 0.5, %v2819
  %v2821 = vsub.f32 1.5, %v2820
  %v2822 = vmul.f32 %v2817, %v2821
  %vm2823 = vweird.f32 %v2786
  %vm2824 = vweird.f32 %v2817
  %vm2825 = vmor %vm2823, %vm2824
  %v2826 = vsel %vm2825, %v2817, %v2822
  %v2827 = vmul.f32 %v2743, %v2796
  %v2828 = vmul.f32 %v2744, %v2806
  %v2829 = vmul.f32 %v2745, %v2816
  %v2830 = vmul.f32 %v2746, %v2826
  %v2831 = vld [vmem:[%s7 + $0x18] sm:$0x1]
  %v2832 = vperm.slane %v2831, 0
  %2834 = vrot.lane.b32.xlu0 %v2832, 32
  %v2835 = vpop.permute.xlu0 %2834
  %v2837 = vmul.f32 %v2827, %v2835
  %v2838 = vmul.f32 %v2828, %v2835
  %v2839 = vmul.f32 %v2829, %v2835
  %v2840 = vmul.f32 %v2830, %v2835
  %v2841 = vld [vmem:[%s7 + $0x19] sm:$0x1]
  %v2842 = vperm.slane %v2841, 0
  %2844 = vrot.lane.b32.xlu0 %v2842, 32
  %v2845 = vpop.permute.xlu0 %2844
  %v2847 = vadd.f32 %v2837, %v2845
  %v2848 = vadd.f32 %v2838, %v2845
  %v2849 = vadd.f32 %v2839, %v2845
  %v2850 = vadd.f32 %v2840, %v2845
  %s2851 = scalar_lea.vmem %s5, 96
  %v2852 = vld [vmem:[%s2851] sm:$0xff]
  %v2853 = vld [vmem:[%s2851 + $0x8] sm:$0xff]
  %v2854 = vld [vmem:[%s2851 + $0x10] sm:$0xff]
  %v2855 = vld [vmem:[%s2851 + $0x18] sm:$0xff]
  %2860 = vrot.lane.b32.xlu0 %v2847, 96
  %v2861 = vpop.permute.xlu0 %2860
  %2862 = vrot.lane.b32.xlu0 %v2848, 96
  %v2863 = vpop.permute.xlu0 %2862
  %2864 = vrot.lane.b32.xlu0 %v2849, 96
  %v2865 = vpop.permute.xlu0 %2864
  %2866 = vrot.lane.b32.xlu0 %v2850, 96
  %v2867 = vpop.permute.xlu0 %2866
  %v2868 = vsel %vm201, %v2861, 0
  %v2870 = vsel %vm201, %v2863, 0
  %v2872 = vsel %vm201, %v2865, 0
  %v2874 = vsel %vm201, %v2867, 0
  %2876 = vmatpush.msra.mxu0 0.0
  %2877 = vmatpush.msra.mxu0 0.0
  %2878 = vmatpush.msra.mxu0 0.0
  %2879 = vmatpush.msra.mxu0 0.0
  %2880 = vmatpush.msra.mxu0 0.0
  %2881 = vmatpush.msra.mxu0 0.0
  %2882 = vmatpush.msra.mxu0 0.0
  %2883 = vmatpush.msra.mxu0 0.0
  %2884 = vmatpush.msra.mxu0 0.0
  %2885 = vmatpush.msra.mxu0 0.0
  %2886 = vmatpush.msra.mxu0 0.0
  %2887 = vmatpush.msra.mxu0 0.0
  %2888 = vmatpush.msra.mxu0 %v2855
  %2889 = vmatpush.msra.mxu0 %v2854
  %2890 = vmatpush.msra.mxu0 %v2853
  %2891 = vmatpush.msra.mxu0 %v2852
  %2892 = vmatmul.f32.gmra.mxu0 %v2868
  %v2893 = vpop.f32.mrf.mxu0
  %v2894 = vadd.f32 0.0, %v2893
  %2895 = vmatmul.f32.gmra.mxu0 %v2870
  %v2896 = vpop.f32.mrf.mxu0
  %v2897 = vadd.f32 0.0, %v2896
  %2898 = vmatmul.f32.gmra.mxu0 %v2872
  %v2899 = vpop.f32.mrf.mxu0
  %v2900 = vadd.f32 0.0, %v2899
  %2901 = vmatmul.f32.gmra.mxu0 %v2874
  %v2902 = vpop.f32.mrf.mxu0
  %v2903 = vadd.f32 0.0, %v2902
  %2904 = vdwg.mxu0
  %v2905 = vld [vmem:[%s7 + $0x14] sm:$0x1]
  %v2906 = vperm.slane %v2905, 0
  %v2907 = vadd.f32 %v2894, %v2906
  %v2908 = vadd.f32 %v2897, %v2906
  %v2909 = vadd.f32 %v2900, %v2906
  %v2910 = vadd.f32 %v2903, %v2906
  %v2911 = vld [vmem:[%s7 + $0x15] sm:$0x1]
  %v2912 = vperm.slane %v2911, 0
  %2914 = vrot.lane.b32.xlu0 %v2912, 32
  %v2915 = vpop.permute.xlu0 %2914
  %v2917 = vadd.f32 %v2894, %v2915
  %v2918 = vadd.f32 %v2897, %v2915
  %v2919 = vadd.f32 %v2900, %v2915
  %v2920 = vadd.f32 %v2903, %v2915
  %v2921 = vmul.f32 %v1917, %v1314
  %v2922 = vmul.f32 %v1918, %v1314
  %v2923 = vmul.f32 %v1917, %v1316
  %v2924 = vmul.f32 %v1918, %v1316
  %v2925 = vmul.f32 %v1917, %v1318
  %v2926 = vmul.f32 %v1918, %v1318
  %v2927 = vmul.f32 %v1917, %v1320
  %v2928 = vmul.f32 %v1918, %v1320
  %2937 = vrot.lane.b32.xlu0 %v2921, 64
  %v2938 = vpop.permute.xlu0 %2937
  %2939 = vrot.lane.b32.xlu0 %v2922, 64
  %v2940 = vpop.permute.xlu0 %2939
  %2941 = vrot.lane.b32.xlu0 %v2923, 64
  %v2942 = vpop.permute.xlu0 %2941
  %2943 = vrot.lane.b32.xlu0 %v2924, 64
  %v2944 = vpop.permute.xlu0 %2943
  %2945 = vrot.lane.b32.xlu0 %v2925, 64
  %v2946 = vpop.permute.xlu0 %2945
  %2947 = vrot.lane.b32.xlu0 %v2926, 64
  %v2948 = vpop.permute.xlu0 %2947
  %2949 = vrot.lane.b32.xlu0 %v2927, 64
  %v2950 = vpop.permute.xlu0 %2949
  %2951 = vrot.lane.b32.xlu0 %v2928, 64
  %v2952 = vpop.permute.xlu0 %2951
  %v2953 = vsel %vm201, %v2938, 0
  %v2955 = vsel %vm201, %v2940, 0
  %v2957 = vsel %vm201, %v2942, 0
  %v2959 = vsel %vm201, %v2944, 0
  %v2961 = vsel %vm201, %v2946, 0
  %v2963 = vsel %vm201, %v2948, 0
  %v2965 = vsel %vm201, %v2950, 0
  %v2967 = vsel %vm201, %v2952, 0
  %v2970 = vsel %vm201, %v2907, 0
  %v2973 = vsel %vm201, %v2908, 0
  %v2976 = vsel %vm201, %v2909, 0
  %v2979 = vsel %vm201, %v2910, 0
  %2981 = vmatpush.xpose.msra.mxu0 0.0
  %2982 = vmatpush.xpose.msra.mxu0 0.0
  %2983 = vmatpush.xpose.msra.mxu0 0.0
  %2984 = vmatpush.xpose.msra.mxu0 0.0
  %2985 = vmatpush.xpose.msra.mxu0 0.0
  %2986 = vmatpush.xpose.msra.mxu0 0.0
  %2987 = vmatpush.xpose.msra.mxu0 0.0
  %2988 = vmatpush.xpose.msra.mxu0 0.0
  %2989 = vmatpush.xpose.msra.mxu0 0.0
  %2990 = vmatpush.xpose.msra.mxu0 0.0
  %2991 = vmatpush.xpose.msra.mxu0 0.0
  %2992 = vmatpush.xpose.msra.mxu0 0.0
  %2993 = vmatpush.xpose.msra.mxu0 %v2979
  %2994 = vmatpush.xpose.msra.mxu0 %v2976
  %2995 = vmatpush.xpose.msra.mxu0 %v2973
  %2996 = vmatpush.xpose.msra.mxu0 %v2970
  %2997 = vmatmul.f32.gmra.mxu0 %v2953
  %v2998 = vpop.f32.mrf.mxu0
  %v2999 = vadd.f32 0.0, %v2998
  %3000 = vmatmul.f32.gmra.mxu0 %v2955
  %v3001 = vpop.f32.mrf.mxu0
  %v3002 = vadd.f32 0.0, %v3001
  %3003 = vmatmul.f32.gmra.mxu0 %v2957
  %v3004 = vpop.f32.mrf.mxu0
  %v3005 = vadd.f32 0.0, %v3004
  %3006 = vmatmul.f32.gmra.mxu0 %v2959
  %v3007 = vpop.f32.mrf.mxu0
  %v3008 = vadd.f32 0.0, %v3007
  %3009 = vmatmul.f32.gmra.mxu0 %v2961
  %v3010 = vpop.f32.mrf.mxu0
  %v3011 = vadd.f32 0.0, %v3010
  %3012 = vmatmul.f32.gmra.mxu0 %v2963
  %v3013 = vpop.f32.mrf.mxu0
  %v3014 = vadd.f32 0.0, %v3013
  %3015 = vmatmul.f32.gmra.mxu0 %v2965
  %v3016 = vpop.f32.mrf.mxu0
  %v3017 = vadd.f32 0.0, %v3016
  %3018 = vmatmul.f32.gmra.mxu0 %v2967
  %v3019 = vpop.f32.mrf.mxu0
  %v3020 = vadd.f32 0.0, %v3019
  %3021 = vdwg.mxu0
  %v3022 = vmul.f32 %v2999, 0.35355338
  %v3023 = vmul.f32 %v3002, 0.35355338
  %v3024 = vmul.f32 %v3005, 0.35355338
  %v3025 = vmul.f32 %v3008, 0.35355338
  %v3026 = vmul.f32 %v3011, 0.35355338
  %v3027 = vmul.f32 %v3014, 0.35355338
  %v3028 = vmul.f32 %v3017, 0.35355338
  %v3029 = vmul.f32 %v3020, 0.35355338
  %v3030 = vadd.f32 %v3022, %v54
  %v3031 = vadd.f32 %v3023, %v55
  %v3032 = vadd.f32 %v3024, %v56
  %v3033 = vadd.f32 %v3025, %v57
  %v3034 = vadd.f32 %v3026, %v58
  %v3035 = vadd.f32 %v3027, %v59
  %v3036 = vadd.f32 %v3028, %v60
  %v3037 = vadd.f32 %v3029, %v61
  %v3038 = vsel %vm201, %v3030, -inf
  %3039 = vmax.xlane.f32.xlu0 %v3038
  %v3040 = vpop.xlane.xlu0 %3039
  %v3041 = vsel %vm201, %v3031, -inf
  %3042 = vmax.xlane.f32.xlu0 %v3041
  %v3043 = vpop.xlane.xlu0 %3042
  %v3044 = vsel %vm201, %v3032, -inf
  %3045 = vmax.xlane.f32.xlu0 %v3044
  %v3046 = vpop.xlane.xlu0 %3045
  %v3047 = vsel %vm201, %v3033, -inf
  %3048 = vmax.xlane.f32.xlu0 %v3047
  %v3049 = vpop.xlane.xlu0 %3048
  %v3050 = vsel %vm201, %v3034, -inf
  %3051 = vmax.xlane.f32.xlu0 %v3050
  %v3052 = vpop.xlane.xlu0 %3051
  %v3053 = vsel %vm201, %v3035, -inf
  %3054 = vmax.xlane.f32.xlu0 %v3053
  %v3055 = vpop.xlane.xlu0 %3054
  %v3056 = vsel %vm201, %v3036, -inf
  %3057 = vmax.xlane.f32.xlu0 %v3056
  %v3058 = vpop.xlane.xlu0 %3057
  %v3059 = vsel %vm201, %v3037, -inf
  %3060 = vmax.xlane.f32.xlu0 %v3059
  %v3061 = vpop.xlane.xlu0 %3060
  %v3062 = vsub.f32 %v3030, %v3040
  %v3063 = vsub.f32 %v3031, %v3043
  %v3064 = vsub.f32 %v3032, %v3046
  %v3065 = vsub.f32 %v3033, %v3049
  %v3066 = vsub.f32 %v3034, %v3052
  %v3067 = vsub.f32 %v3035, %v3055
  %v3068 = vsub.f32 %v3036, %v3058
  %v3069 = vsub.f32 %v3037, %v3061
  %v3070 = vmul.f32 %v3062, 1.442695
  %v3071 = vpow.pop %v3070
  %v3072 = vmul.f32 %v3063, 1.442695
  %v3073 = vpow.pop %v3072
  %v3074 = vmul.f32 %v3064, 1.442695
  %v3075 = vpow.pop %v3074
  %v3076 = vmul.f32 %v3065, 1.442695
  %v3077 = vpow.pop %v3076
  %v3078 = vmul.f32 %v3066, 1.442695
  %v3079 = vpow.pop %v3078
  %v3080 = vmul.f32 %v3067, 1.442695
  %v3081 = vpow.pop %v3080
  %v3082 = vmul.f32 %v3068, 1.442695
  %v3083 = vpow.pop %v3082
  %v3084 = vmul.f32 %v3069, 1.442695
  %v3085 = vpow.pop %v3084
  %v3086 = vsel %vm201, %v3071, 0.0
  %3087 = vadd.xlane.f32.xlu0 %v3086
  %v3088 = vpop.xlane.xlu0 %3087
  %v3089 = vsel %vm201, %v3073, 0.0
  %3090 = vadd.xlane.f32.xlu0 %v3089
  %v3091 = vpop.xlane.xlu0 %3090
  %v3092 = vsel %vm201, %v3075, 0.0
  %3093 = vadd.xlane.f32.xlu0 %v3092
  %v3094 = vpop.xlane.xlu0 %3093
  %v3095 = vsel %vm201, %v3077, 0.0
  %3096 = vadd.xlane.f32.xlu0 %v3095
  %v3097 = vpop.xlane.xlu0 %3096
  %v3098 = vsel %vm201, %v3079, 0.0
  %3099 = vadd.xlane.f32.xlu0 %v3098
  %v3100 = vpop.xlane.xlu0 %3099
  %v3101 = vsel %vm201, %v3081, 0.0
  %3102 = vadd.xlane.f32.xlu0 %v3101
  %v3103 = vpop.xlane.xlu0 %3102
  %v3104 = vsel %vm201, %v3083, 0.0
  %3105 = vadd.xlane.f32.xlu0 %v3104
  %v3106 = vpop.xlane.xlu0 %3105
  %v3107 = vsel %vm201, %v3085, 0.0
  %3108 = vadd.xlane.f32.xlu0 %v3107
  %v3109 = vpop.xlane.xlu0 %3108
  %v3110 = vrcp.pop %v3088
  %v3111 = vmul.f32 %v3088, %v3110
  %v3112 = vsub.f32 1.0, %v3111
  %v3113 = vmul.f32 %v3110, %v3112
  %v3114 = vadd.f32 %v3110, %v3113
  %vm3115 = vweird.f32 %v3088
  %vm3116 = vweird.f32 %v3110
  %vm3117 = vmor %vm3115, %vm3116
  %v3118 = vsel %vm3117, %v3110, %v3114
  %v3119 = vand.u32 2147483647, %v3088
  %vm3120 = vcmp.eq.f32.partialorder %v3119, 8.507059e+37
  %v3121 = vand.u32 %v3088, 2147483648
  %v3122 = vor.u32 1.1754944e-38, %v3121
  %v3123 = vsel %vm3120, %v3122, %v3118
  %v3124 = vmul.f32 %v3071, %v3123
  %v3125 = vrcp.pop %v3091
  %v3126 = vmul.f32 %v3091, %v3125
  %v3127 = vsub.f32 1.0, %v3126
  %v3128 = vmul.f32 %v3125, %v3127
  %v3129 = vadd.f32 %v3125, %v3128
  %vm3130 = vweird.f32 %v3091
  %vm3131 = vweird.f32 %v3125
  %vm3132 = vmor %vm3130, %vm3131
  %v3133 = vsel %vm3132, %v3125, %v3129
  %v3134 = vand.u32 2147483647, %v3091
  %vm3135 = vcmp.eq.f32.partialorder %v3134, 8.507059e+37
  %v3136 = vand.u32 %v3091, 2147483648
  %v3137 = vor.u32 1.1754944e-38, %v3136
  %v3138 = vsel %vm3135, %v3137, %v3133
  %v3139 = vmul.f32 %v3073, %v3138
  %v3140 = vrcp.pop %v3094
  %v3141 = vmul.f32 %v3094, %v3140
  %v3142 = vsub.f32 1.0, %v3141
  %v3143 = vmul.f32 %v3140, %v3142
  %v3144 = vadd.f32 %v3140, %v3143
  %vm3145 = vweird.f32 %v3094
  %vm3146 = vweird.f32 %v3140
  %vm3147 = vmor %vm3145, %vm3146
  %v3148 = vsel %vm3147, %v3140, %v3144
  %v3149 = vand.u32 2147483647, %v3094
  %vm3150 = vcmp.eq.f32.partialorder %v3149, 8.507059e+37
  %v3151 = vand.u32 %v3094, 2147483648
  %v3152 = vor.u32 1.1754944e-38, %v3151
  %v3153 = vsel %vm3150, %v3152, %v3148
  %v3154 = vmul.f32 %v3075, %v3153
  %v3155 = vrcp.pop %v3097
  %v3156 = vmul.f32 %v3097, %v3155
  %v3157 = vsub.f32 1.0, %v3156
  %v3158 = vmul.f32 %v3155, %v3157
  %v3159 = vadd.f32 %v3155, %v3158
  %vm3160 = vweird.f32 %v3097
  %vm3161 = vweird.f32 %v3155
  %vm3162 = vmor %vm3160, %vm3161
  %v3163 = vsel %vm3162, %v3155, %v3159
  %v3164 = vand.u32 2147483647, %v3097
  %vm3165 = vcmp.eq.f32.partialorder %v3164, 8.507059e+37
  %v3166 = vand.u32 %v3097, 2147483648
  %v3167 = vor.u32 1.1754944e-38, %v3166
  %v3168 = vsel %vm3165, %v3167, %v3163
  %v3169 = vmul.f32 %v3077, %v3168
  %v3170 = vrcp.pop %v3100
  %v3171 = vmul.f32 %v3100, %v3170
  %v3172 = vsub.f32 1.0, %v3171
  %v3173 = vmul.f32 %v3170, %v3172
  %v3174 = vadd.f32 %v3170, %v3173
  %vm3175 = vweird.f32 %v3100
  %vm3176 = vweird.f32 %v3170
  %vm3177 = vmor %vm3175, %vm3176
  %v3178 = vsel %vm3177, %v3170, %v3174
  %v3179 = vand.u32 2147483647, %v3100
  %vm3180 = vcmp.eq.f32.partialorder %v3179, 8.507059e+37
  %v3181 = vand.u32 %v3100, 2147483648
  %v3182 = vor.u32 1.1754944e-38, %v3181
  %v3183 = vsel %vm3180, %v3182, %v3178
  %v3184 = vmul.f32 %v3079, %v3183
  %v3185 = vrcp.pop %v3103
  %v3186 = vmul.f32 %v3103, %v3185
  %v3187 = vsub.f32 1.0, %v3186
  %v3188 = vmul.f32 %v3185, %v3187
  %v3189 = vadd.f32 %v3185, %v3188
  %vm3190 = vweird.f32 %v3103
  %vm3191 = vweird.f32 %v3185
  %vm3192 = vmor %vm3190, %vm3191
  %v3193 = vsel %vm3192, %v3185, %v3189
  %v3194 = vand.u32 2147483647, %v3103
  %vm3195 = vcmp.eq.f32.partialorder %v3194, 8.507059e+37
  %v3196 = vand.u32 %v3103, 2147483648
  %v3197 = vor.u32 1.1754944e-38, %v3196
  %v3198 = vsel %vm3195, %v3197, %v3193
  %v3199 = vmul.f32 %v3081, %v3198
  %v3200 = vrcp.pop %v3106
  %v3201 = vmul.f32 %v3106, %v3200
  %v3202 = vsub.f32 1.0, %v3201
  %v3203 = vmul.f32 %v3200, %v3202
  %v3204 = vadd.f32 %v3200, %v3203
  %vm3205 = vweird.f32 %v3106
  %vm3206 = vweird.f32 %v3200
  %vm3207 = vmor %vm3205, %vm3206
  %v3208 = vsel %vm3207, %v3200, %v3204
  %v3209 = vand.u32 2147483647, %v3106
  %vm3210 = vcmp.eq.f32.partialorder %v3209, 8.507059e+37
  %v3211 = vand.u32 %v3106, 2147483648
  %v3212 = vor.u32 1.1754944e-38, %v3211
  %v3213 = vsel %vm3210, %v3212, %v3208
  %v3214 = vmul.f32 %v3083, %v3213
  %v3215 = vrcp.pop %v3109
  %v3216 = vmul.f32 %v3109, %v3215
  %v3217 = vsub.f32 1.0, %v3216
  %v3218 = vmul.f32 %v3215, %v3217
  %v3219 = vadd.f32 %v3215, %v3218
  %vm3220 = vweird.f32 %v3109
  %vm3221 = vweird.f32 %v3215
  %vm3222 = vmor %vm3220, %vm3221
  %v3223 = vsel %vm3222, %v3215, %v3219
  %v3224 = vand.u32 2147483647, %v3109
  %vm3225 = vcmp.eq.f32.partialorder %v3224, 8.507059e+37
  %v3226 = vand.u32 %v3109, 2147483648
  %v3227 = vor.u32 1.1754944e-38, %v3226
  %v3228 = vsel %vm3225, %v3227, %v3223
  %v3229 = vmul.f32 %v3085, %v3228
  %3234 = vrot.lane.b32.xlu0 %v2917, 96
  %v3235 = vpop.permute.xlu0 %3234
  %3236 = vrot.lane.b32.xlu0 %v2918, 96
  %v3237 = vpop.permute.xlu0 %3236
  %3238 = vrot.lane.b32.xlu0 %v2919, 96
  %v3239 = vpop.permute.xlu0 %3238
  %3240 = vrot.lane.b32.xlu0 %v2920, 96
  %v3241 = vpop.permute.xlu0 %3240
  %v3247 = vsel %vm201, %v3124, 0
  %v3250 = vsel %vm201, %v3139, 0
  %v3253 = vsel %vm201, %v3154, 0
  %v3256 = vsel %vm201, %v3169, 0
  %v3259 = vsel %vm201, %v3184, 0
  %v3262 = vsel %vm201, %v3199, 0
  %v3265 = vsel %vm201, %v3214, 0
  %v3268 = vsel %vm201, %v3229, 0
  %3270 = vmatpush.msra.mxu0 0.0
  %3271 = vmatpush.msra.mxu0 0.0
  %3272 = vmatpush.msra.mxu0 0.0
  %3273 = vmatpush.msra.mxu0 0.0
  %3274 = vmatpush.msra.mxu0 0.0
  %3275 = vmatpush.msra.mxu0 0.0
  %3276 = vmatpush.msra.mxu0 0.0
  %3277 = vmatpush.msra.mxu0 0.0
  %3278 = vmatpush.msra.mxu0 0.0
  %3279 = vmatpush.msra.mxu0 0.0
  %3280 = vmatpush.msra.mxu0 0.0
  %3281 = vmatpush.msra.mxu0 0.0
  %3282 = vmatpush.msra.mxu0 %v3241
  %3283 = vmatpush.msra.mxu0 %v3239
  %3284 = vmatpush.msra.mxu0 %v3237
  %3285 = vmatpush.msra.mxu0 %v3235
  %3286 = vmatmul.f32.gmra.mxu0 %v3247
  %v3287 = vpop.f32.mrf.mxu0
  %v3288 = vadd.f32 0.0, %v3287
  %3289 = vmatmul.f32.gmra.mxu0 %v3250
  %v3290 = vpop.f32.mrf.mxu0
  %v3291 = vadd.f32 0.0, %v3290
  %3292 = vmatmul.f32.gmra.mxu0 %v3253
  %v3293 = vpop.f32.mrf.mxu0
  %v3294 = vadd.f32 0.0, %v3293
  %3295 = vmatmul.f32.gmra.mxu0 %v3256
  %v3296 = vpop.f32.mrf.mxu0
  %v3297 = vadd.f32 0.0, %v3296
  %3298 = vmatmul.f32.gmra.mxu0 %v3259
  %v3299 = vpop.f32.mrf.mxu0
  %v3300 = vadd.f32 0.0, %v3299
  %3301 = vmatmul.f32.gmra.mxu0 %v3262
  %v3302 = vpop.f32.mrf.mxu0
  %v3303 = vadd.f32 0.0, %v3302
  %3304 = vmatmul.f32.gmra.mxu0 %v3265
  %v3305 = vpop.f32.mrf.mxu0
  %v3306 = vadd.f32 0.0, %v3305
  %3307 = vmatmul.f32.gmra.mxu0 %v3268
  %v3308 = vpop.f32.mrf.mxu0
  %v3309 = vadd.f32 0.0, %v3308
  %3310 = vdwg.mxu0
  %v3311 = vmul.f32 %v3288, %v296
  %v3312 = vmul.f32 %v3291, %v296
  %v3313 = vmul.f32 %v3294, %v297
  %v3314 = vmul.f32 %v3297, %v297
  %v3315 = vmul.f32 %v3300, %v298
  %v3316 = vmul.f32 %v3303, %v298
  %v3317 = vmul.f32 %v3306, %v299
  %v3318 = vmul.f32 %v3309, %v299
  %v3319 = vsel %vm201, %v3311, 0.0
  %v3320 = vsel %vm201, %v3313, 0.0
  %v3321 = vadd.f32 %v3319, %v3320
  %v3322 = vsel %vm201, %v3315, 0.0
  %v3323 = vadd.f32 %v3321, %v3322
  %v3324 = vsel %vm201, %v3317, 0.0
  %v3325 = vadd.f32 %v3323, %v3324
  %v3326 = vsel %vm201, %v3312, 0.0
  %v3327 = vsel %vm201, %v3314, 0.0
  %v3328 = vadd.f32 %v3326, %v3327
  %v3329 = vsel %vm201, %v3316, 0.0
  %v3330 = vadd.f32 %v3328, %v3329
  %v3331 = vsel %vm201, %v3318, 0.0
  %v3332 = vadd.f32 %v3330, %v3331
  %s3333 = scalar_lea.vmem %s4, 160
  %v3334 = vld [vmem:[%s3333] sm:$0xff]
  %v3335 = vld [vmem:[%s3333 + $0x8] sm:$0xff]
  %v3336 = vld [vmem:[%s3333 + $0x10] sm:$0xff]
  %v3337 = vld [vmem:[%s3333 + $0x18] sm:$0xff]
  %v3339 = vsel %vm201, %v3325, 0
  %v3342 = vsel %vm201, %v3332, 0
  %3344 = vmatpush.msra.mxu0 0.0
  %3345 = vmatpush.msra.mxu0 0.0
  %3346 = vmatpush.msra.mxu0 0.0
  %3347 = vmatpush.msra.mxu0 0.0
  %3348 = vmatpush.msra.mxu0 0.0
  %3349 = vmatpush.msra.mxu0 0.0
  %3350 = vmatpush.msra.mxu0 0.0
  %3351 = vmatpush.msra.mxu0 0.0
  %3352 = vmatpush.msra.mxu0 0.0
  %3353 = vmatpush.msra.mxu0 0.0
  %3354 = vmatpush.msra.mxu0 0.0
  %3355 = vmatpush.msra.mxu0 0.0
  %3356 = vmatpush.msra.mxu0 %v3337
  %3357 = vmatpush.msra.mxu0 %v3336
  %3358 = vmatpush.msra.mxu0 %v3335
  %3359 = vmatpush.msra.mxu0 %v3334
  %3360 = vmatmul.f32.gmra.mxu0 %v3339
  %v3361 = vpop.f32.mrf.mxu0
  %v3362 = vadd.f32 0.0, %v3361
  %3363 = vmatmul.f32.gmra.mxu0 %v3342
  %v3364 = vpop.f32.mrf.mxu0
  %v3365 = vadd.f32 0.0, %v3364
  %3366 = vdwg.mxu0
  %v3367 = vadd.f32 %v1827, %v3362
  %v3368 = vadd.f32 %v1828, %v3365
  %v3369 = vld [vmem:[%s7 + $0x17] sm:$0x1]
  %v3370 = vperm.slane %v3369, 0
  %v3371 = vadd.f32 %v3367, %v3370
  %v3372 = vadd.f32 %v3368, %v3370
  %v3373 = vsel %vm201, %v3371, 0.0
  %3374 = vadd.xlane.f32.xlu0 %v3373
  %v3375 = vpop.xlane.xlu0 %3374
  %v3376 = vsel %vm201, %v3372, 0.0
  %3377 = vadd.xlane.f32.xlu0 %v3376
  %v3378 = vpop.xlane.xlu0 %3377
  %v3379 = vmul.f32 %v3375, %v1130
  %v3380 = vmul.f32 %v3378, %v1130
  %v3381 = vsub.f32 %v3371, %v3379
  %v3382 = vsub.f32 %v3372, %v3380
  %v3383 = vmul.f32 %v3381, %v3381
  %v3384 = vmul.f32 %v3382, %v3382
  %v3385 = vsel %vm201, %v3383, 0.0
  %3386 = vadd.xlane.f32.xlu0 %v3385
  %v3387 = vpop.xlane.xlu0 %3386
  %v3388 = vsel %vm201, %v3384, 0.0
  %3389 = vadd.xlane.f32.xlu0 %v3388
  %v3390 = vpop.xlane.xlu0 %3389
  %v3391 = vmul.f32 %v3387, %v1130
  %v3392 = vmul.f32 %v3390, %v1130
  %v3393 = vadd.f32 %v3391, 1e-05
  %v3394 = vadd.f32 %v3392, 1e-05
  %v3395 = vrsqrt.pop %v3393
  %v3396 = vmul.f32 %v3395, %v3393
  %v3397 = vmul.f32 %v3396, %v3395
  %v3398 = vmul.f32 0.5, %v3397
  %v3399 = vsub.f32 1.5, %v3398
  %v3400 = vmul.f32 %v3395, %v3399
  %vm3401 = vweird.f32 %v3393
  %vm3402 = vweird.f32 %v3395
  %vm3403 = vmor %vm3401, %vm3402
  %v3404 = vsel %vm3403, %v3395, %v3400
  %v3405 = vrsqrt.pop %v3394
  %v3406 = vmul.f32 %v3405, %v3394
  %v3407 = vmul.f32 %v3406, %v3405
  %v3408 = vmul.f32 0.5, %v3407
  %v3409 = vsub.f32 1.5, %v3408
  %v3410 = vmul.f32 %v3405, %v3409
  %vm3411 = vweird.f32 %v3394
  %vm3412 = vweird.f32 %v3405
  %vm3413 = vmor %vm3411, %vm3412
  %v3414 = vsel %vm3413, %v3405, %v3410
  %v3415 = vmul.f32 %v3381, %v3404
  %v3416 = vmul.f32 %v3382, %v3414
  %v3417 = vld [vmem:[%s7 + $0x1a] sm:$0x1]
  %v3418 = vperm.slane %v3417, 0
  %v3419 = vmul.f32 %v3415, %v3418
  %v3420 = vmul.f32 %v3416, %v3418
  %v3421 = vld [vmem:[%s7 + $0x1b] sm:$0x1]
  %v3422 = vperm.slane %v3421, 0
  %v3423 = vadd.f32 %v3419, %v3422
  %v3424 = vadd.f32 %v3420, %v3422
  %s3425 = scalar_lea.vmem %s4, 192
  %v3426 = vld [vmem:[%s3425] sm:$0xff]
  %v3427 = vld [vmem:[%s3425 + $0x8] sm:$0xff]
  %v3428 = vld [vmem:[%s3425 + $0x10] sm:$0xff]
  %v3429 = vld [vmem:[%s3425 + $0x18] sm:$0xff]
  %v3430 = vld [vmem:[%s7 + $0x1c] sm:$0x1]
  %v3431 = vperm.slane %v3430, 0
  %v3433 = vsel %vm201, %v3423, 0
  %v3436 = vsel %vm201, %v3424, 0
  %3438 = vmatpush.msra.mxu0 0.0
  %3439 = vmatpush.msra.mxu0 0.0
  %3440 = vmatpush.msra.mxu0 0.0
  %3441 = vmatpush.msra.mxu0 0.0
  %3442 = vmatpush.msra.mxu0 0.0
  %3443 = vmatpush.msra.mxu0 0.0
  %3444 = vmatpush.msra.mxu0 0.0
  %3445 = vmatpush.msra.mxu0 0.0
  %3446 = vmatpush.msra.mxu0 0.0
  %3447 = vmatpush.msra.mxu0 0.0
  %3448 = vmatpush.msra.mxu0 0.0
  %3449 = vmatpush.msra.mxu0 0.0
  %3450 = vmatpush.msra.mxu0 %v3429
  %3451 = vmatpush.msra.mxu0 %v3428
  %3452 = vmatpush.msra.mxu0 %v3427
  %3453 = vmatpush.msra.mxu0 %v3426
  %3454 = vmatmul.f32.gmra.mxu0 %v3433
  %v3455 = vpop.f32.mrf.mxu0
  %v3456 = vadd.f32 %v3431, %v3455
  %3457 = vmatmul.f32.gmra.mxu0 %v3436
  %v3458 = vpop.f32.mrf.mxu0
  %v3459 = vadd.f32 %v3431, %v3458
  %3460 = vdwg.mxu0
  %s3461 = scalar_lea.vmem %s4, 224
  %v3462 = vld [vmem:[%s3461] sm:$0xff]
  %v3463 = vld [vmem:[%s3461 + $0x8] sm:$0xff]
  %v3464 = vld [vmem:[%s3461 + $0x10] sm:$0xff]
  %v3465 = vld [vmem:[%s3461 + $0x18] sm:$0xff]
  %v3466 = vld [vmem:[%s7 + $0x1d] sm:$0x1]
  %v3467 = vperm.slane %v3466, 0
  %3468 = vmatpush.msra.mxu0 0.0
  %3469 = vmatpush.msra.mxu0 0.0
  %3470 = vmatpush.msra.mxu0 0.0
  %3471 = vmatpush.msra.mxu0 0.0
  %3472 = vmatpush.msra.mxu0 0.0
  %3473 = vmatpush.msra.mxu0 0.0
  %3474 = vmatpush.msra.mxu0 0.0
  %3475 = vmatpush.msra.mxu0 0.0
  %3476 = vmatpush.msra.mxu0 0.0
  %3477 = vmatpush.msra.mxu0 0.0
  %3478 = vmatpush.msra.mxu0 0.0
  %3479 = vmatpush.msra.mxu0 0.0
  %3480 = vmatpush.msra.mxu0 %v3465
  %3481 = vmatpush.msra.mxu0 %v3464
  %3482 = vmatpush.msra.mxu0 %v3463
  %3483 = vmatpush.msra.mxu0 %v3462
  %3484 = vmatmul.f32.gmra.mxu0 %v2868
  %v3485 = vpop.f32.mrf.mxu0
  %v3486 = vadd.f32 %v3467, %v3485
  %3487 = vmatmul.f32.gmra.mxu0 %v2870
  %v3488 = vpop.f32.mrf.mxu0
  %v3489 = vadd.f32 %v3467, %v3488
  %3490 = vmatmul.f32.gmra.mxu0 %v2872
  %v3491 = vpop.f32.mrf.mxu0
  %v3492 = vadd.f32 %v3467, %v3491
  %3493 = vmatmul.f32.gmra.mxu0 %v2874
  %v3494 = vpop.f32.mrf.mxu0
  %v3495 = vadd.f32 %v3467, %v3494
  %3496 = vdwg.mxu0
  %v3497 = vmul.f32 %v3456, %v296
  %v3498 = vmul.f32 %v3459, %v296
  %v3499 = vmul.f32 %v3456, %v297
  %v3500 = vmul.f32 %v3459, %v297
  %v3501 = vmul.f32 %v3456, %v298
  %v3502 = vmul.f32 %v3459, %v298
  %v3503 = vmul.f32 %v3456, %v299
  %v3504 = vmul.f32 %v3459, %v299
  %v3506 = vsel %vm201, %v3497, 0
  %v3509 = vsel %vm201, %v3498, 0
  %v3512 = vsel %vm201, %v3499, 0
  %v3515 = vsel %vm201, %v3500, 0
  %v3518 = vsel %vm201, %v3501, 0
  %v3521 = vsel %vm201, %v3502, 0
  %v3524 = vsel %vm201, %v3503, 0
  %v3527 = vsel %vm201, %v3504, 0
  %v3530 = vsel %vm201, %v3486, 0
  %v3533 = vsel %vm201, %v3489, 0
  %v3536 = vsel %vm201, %v3492, 0
  %v3539 = vsel %vm201, %v3495, 0
  %3541 = vmatpush.xpose.msra.mxu0 0.0
  %3542 = vmatpush.xpose.msra.mxu0 0.0
  %3543 = vmatpush.xpose.msra.mxu0 0.0
  %3544 = vmatpush.xpose.msra.mxu0 0.0
  %3545 = vmatpush.xpose.msra.mxu0 0.0
  %3546 = vmatpush.xpose.msra.mxu0 0.0
  %3547 = vmatpush.xpose.msra.mxu0 0.0
  %3548 = vmatpush.xpose.msra.mxu0 0.0
  %3549 = vmatpush.xpose.msra.mxu0 0.0
  %3550 = vmatpush.xpose.msra.mxu0 0.0
  %3551 = vmatpush.xpose.msra.mxu0 0.0
  %3552 = vmatpush.xpose.msra.mxu0 0.0
  %3553 = vmatpush.xpose.msra.mxu0 %v3539
  %3554 = vmatpush.xpose.msra.mxu0 %v3536
  %3555 = vmatpush.xpose.msra.mxu0 %v3533
  %3556 = vmatpush.xpose.msra.mxu0 %v3530
  %3557 = vmatmul.f32.gmra.mxu0 %v3506
  %v3558 = vpop.f32.mrf.mxu0
  %v3559 = vadd.f32 0.0, %v3558
  %3560 = vmatmul.f32.gmra.mxu0 %v3509
  %v3561 = vpop.f32.mrf.mxu0
  %v3562 = vadd.f32 0.0, %v3561
  %3563 = vmatmul.f32.gmra.mxu0 %v3512
  %v3564 = vpop.f32.mrf.mxu0
  %v3565 = vadd.f32 0.0, %v3564
  %3566 = vmatmul.f32.gmra.mxu0 %v3515
  %v3567 = vpop.f32.mrf.mxu0
  %v3568 = vadd.f32 0.0, %v3567
  %3569 = vmatmul.f32.gmra.mxu0 %v3518
  %v3570 = vpop.f32.mrf.mxu0
  %v3571 = vadd.f32 0.0, %v3570
  %3572 = vmatmul.f32.gmra.mxu0 %v3521
  %v3573 = vpop.f32.mrf.mxu0
  %v3574 = vadd.f32 0.0, %v3573
  %3575 = vmatmul.f32.gmra.mxu0 %v3524
  %v3576 = vpop.f32.mrf.mxu0
  %v3577 = vadd.f32 0.0, %v3576
  %3578 = vmatmul.f32.gmra.mxu0 %v3527
  %v3579 = vpop.f32.mrf.mxu0
  %v3580 = vadd.f32 0.0, %v3579
  %3581 = vdwg.mxu0
  %v3582 = vmul.f32 %v3559, 0.35355338
  %v3583 = vmul.f32 %v3562, 0.35355338
  %v3584 = vmul.f32 %v3565, 0.35355338
  %v3585 = vmul.f32 %v3568, 0.35355338
  %v3586 = vmul.f32 %v3571, 0.35355338
  %v3587 = vmul.f32 %v3574, 0.35355338
  %v3588 = vmul.f32 %v3577, 0.35355338
  %v3589 = vmul.f32 %v3580, 0.35355338
  %v3590 = vmul.f32 %v3582, %v72
  %v3591 = vmul.f32 %v3583, %v73
  %v3592 = vmul.f32 %v3584, %v74
  %v3593 = vmul.f32 %v3585, %v75
  %v3594 = vmul.f32 %v3586, %v76
  %v3595 = vmul.f32 %v3587, %v77
  %v3596 = vmul.f32 %v3588, %v78
  %v3597 = vmul.f32 %v3589, %v79
  %v3598 = vld [vmem:[%s6] sm:$0xff]
  %v3599 = vld [vmem:[%s6 + $0x8] sm:$0xff]
  %v3600 = vld [vmem:[%s7 + $0x1e] sm:$0x1]
  %v3601 = vperm.slane %v3600, 0
  %3602 = vmatpush.msra.mxu0 0.0
  %3603 = vmatpush.msra.mxu0 0.0
  %3604 = vmatpush.msra.mxu0 0.0
  %3605 = vmatpush.msra.mxu0 0.0
  %3606 = vmatpush.msra.mxu0 0.0
  %3607 = vmatpush.msra.mxu0 0.0
  %3608 = vmatpush.msra.mxu0 0.0
  %3609 = vmatpush.msra.mxu0 0.0
  %3610 = vmatpush.msra.mxu0 0.0
  %3611 = vmatpush.msra.mxu0 0.0
  %3612 = vmatpush.msra.mxu0 0.0
  %3613 = vmatpush.msra.mxu0 0.0
  %3614 = vmatpush.msra.mxu0 0.0
  %3615 = vmatpush.msra.mxu0 0.0
  %3616 = vmatpush.msra.mxu0 %v3599
  %3617 = vmatpush.msra.mxu0 %v3598
  %3618 = vmatmul.f32.gmra.mxu0 %v130
  %v3619 = vpop.f32.mrf.mxu0
  %v3620 = vadd.f32 %v3601, %v3619
  %3621 = vmatmul.f32.gmra.mxu0 %v133
  %v3622 = vpop.f32.mrf.mxu0
  %v3623 = vadd.f32 %v3601, %v3622
  %3624 = vdwg.mxu0
  %v3625 = vmax.f32 %v3620, 0.0
  %v3626 = vmax.f32 %v3623, 0.0
  %s3627 = scalar_lea.vmem %s6, 16
  %v3628 = vld [vmem:[%s3627] sm:$0xff]
  %v3629 = vld [vmem:[%s3627 + $0x8] sm:$0xff]
  %v3630 = vld [vmem:[%s7 + $0x1f] sm:$0x1]
  %v3631 = vperm.slane %v3630, 0
  %v3633 = vsel %vm85, %v3625, 0
  %v3636 = vsel %vm85, %v3626, 0
  %3638 = vmatpush.msra.mxu0 0.0
  %3639 = vmatpush.msra.mxu0 0.0
  %3640 = vmatpush.msra.mxu0 0.0
  %3641 = vmatpush.msra.mxu0 0.0
  %3642 = vmatpush.msra.mxu0 0.0
  %3643 = vmatpush.msra.mxu0 0.0
  %3644 = vmatpush.msra.mxu0 0.0
  %3645 = vmatpush.msra.mxu0 0.0
  %3646 = vmatpush.msra.mxu0 0.0
  %3647 = vmatpush.msra.mxu0 0.0
  %3648 = vmatpush.msra.mxu0 0.0
  %3649 = vmatpush.msra.mxu0 0.0
  %3650 = vmatpush.msra.mxu0 0.0
  %3651 = vmatpush.msra.mxu0 0.0
  %3652 = vmatpush.msra.mxu0 %v3629
  %3653 = vmatpush.msra.mxu0 %v3628
  %3654 = vmatmul.f32.gmra.mxu0 %v3633
  %v3655 = vpop.f32.mrf.mxu0
  %v3656 = vadd.f32 %v3631, %v3655
  %3657 = vmatmul.f32.gmra.mxu0 %v3636
  %v3658 = vpop.f32.mrf.mxu0
  %v3659 = vadd.f32 %v3631, %v3658
  %3660 = vdwg.mxu0
  %v3662 = vsel %vm85, %v3590, 0
  %v3665 = vsel %vm85, %v3591, 0
  %v3668 = vsel %vm85, %v3592, 0
  %v3671 = vsel %vm85, %v3593, 0
  %v3674 = vsel %vm85, %v3594, 0
  %v3677 = vsel %vm85, %v3595, 0
  %v3680 = vsel %vm85, %v3596, 0
  %v3683 = vsel %vm85, %v3597, 0
  %3685 = vmatpush.msra.mxu0 0.0
  %3686 = vmatpush.msra.mxu0 0.0
  %3687 = vmatpush.msra.mxu0 0.0
  %3688 = vmatpush.msra.mxu0 0.0
  %3689 = vmatpush.msra.mxu0 0.0
  %3690 = vmatpush.msra.mxu0 0.0
  %3691 = vmatpush.msra.mxu0 0.0
  %3692 = vmatpush.msra.mxu0 0.0
  %3693 = vmatpush.msra.mxu0 0.0
  %3694 = vmatpush.msra.mxu0 0.0
  %3695 = vmatpush.msra.mxu0 0.0
  %3696 = vmatpush.msra.mxu0 0.0
  %3697 = vmatpush.msra.mxu0 0.0
  %3698 = vmatpush.msra.mxu0 0.0
  %3699 = vmatpush.msra.mxu0 %v3659
  %3700 = vmatpush.msra.mxu0 %v3656
  %3701 = vmatmul.f32.gmra.mxu0 %v3662
  %v3702 = vpop.f32.mrf.mxu0
  %v3703 = vadd.f32 0.0, %v3702
  %3704 = vmatmul.f32.gmra.mxu0 %v3665
  %v3705 = vpop.f32.mrf.mxu0
  %3706 = vmatmul.f32.gmra.mxu0 %v3668
  %v3707 = vpop.f32.mrf.mxu0
  %v3708 = vadd.f32 0.0, %v3707
  %3709 = vmatmul.f32.gmra.mxu0 %v3671
  %v3710 = vpop.f32.mrf.mxu0
  %3711 = vmatmul.f32.gmra.mxu0 %v3674
  %v3712 = vpop.f32.mrf.mxu0
  %v3713 = vadd.f32 0.0, %v3712
  %3714 = vmatmul.f32.gmra.mxu0 %v3677
  %v3715 = vpop.f32.mrf.mxu0
  %3716 = vmatmul.f32.gmra.mxu0 %v3680
  %v3717 = vpop.f32.mrf.mxu0
  %v3718 = vadd.f32 0.0, %v3717
  %3719 = vmatmul.f32.gmra.mxu0 %v3683
  %v3720 = vpop.f32.mrf.mxu0
  %3721 = vdwg.mxu0
  %v3723 = vrot.slane %v63, 1
  %v3724 = vrot.slane %v63, 2
  %v3725 = vrot.slane %v63, 3
  %v3726 = vperm.slane %v63, 0
  %v3727 = vperm.slane %v3723, 0
  %v3728 = vperm.slane %v3724, 0
  %v3729 = vperm.slane %v3725, 0
  %v3734 = vmul.f32 %v3703, %v3726
  %v3735 = vmul.f32 %v3708, %v3727
  %v3736 = vmul.f32 %v3713, %v3728
  %v3737 = vmul.f32 %v3718, %v3729
  %v3738 = vsel %vm85, %v3734, 0.0
  %v3739 = vsel %vm85, %v3735, 0.0
  %v3740 = vadd.f32 %v3738, %v3739
  %v3741 = vsel %vm85, %v3736, 0.0
  %v3742 = vadd.f32 %v3740, %v3741
  %v3743 = vsel %vm85, %v3737, 0.0
  %v3744 = vadd.f32 %v3742, %v3743
  %s3745 = scalar_lea.vmem %s6, 32
  %v3746 = vld [vmem:[%s3745] sm:$0xff]
  %v3747 = vld [vmem:[%s3745 + $0x8] sm:$0xff]
  %v3748 = vld [vmem:[%s7 + $0x20] sm:$0x1]
  %v3749 = vperm.slane %v3748, 0
  %v3751 = vsel %vm85, %v3744, 0
  %3753 = vmatpush.msra.mxu0 0.0
  %3754 = vmatpush.msra.mxu0 0.0
  %3755 = vmatpush.msra.mxu0 0.0
  %3756 = vmatpush.msra.mxu0 0.0
  %3757 = vmatpush.msra.mxu0 0.0
  %3758 = vmatpush.msra.mxu0 0.0
  %3759 = vmatpush.msra.mxu0 0.0
  %3760 = vmatpush.msra.mxu0 0.0
  %3761 = vmatpush.msra.mxu0 0.0
  %3762 = vmatpush.msra.mxu0 0.0
  %3763 = vmatpush.msra.mxu0 0.0
  %3764 = vmatpush.msra.mxu0 0.0
  %3765 = vmatpush.msra.mxu0 0.0
  %3766 = vmatpush.msra.mxu0 0.0
  %3767 = vmatpush.msra.mxu0 %v3747
  %3768 = vmatpush.msra.mxu0 %v3746
  %3769 = vmatmul.f32.gmra.mxu0 %v3751
  %v3770 = vpop.f32.mrf.mxu0
  %v3771 = vadd.f32 %v3749, %v3770
  %3772 = vdwg.mxu0
  %v3773 = vmax.f32 %v3771, 0.0
  %s3774 = scalar_lea.vmem %s6, 48
  %v3775 = vld [vmem:[%s3774] sm:$0xff]
  %v3776 = vld [vmem:[%s3774 + $0x8] sm:$0xff]
  %v3777 = vld [vmem:[%s7 + $0x21] sm:$0x1]
  %v3778 = vperm.slane %v3777, 0
  %v3780 = vsel %vm85, %v3773, 0
  %3782 = vmatpush.msra.mxu0 0.0
  %3783 = vmatpush.msra.mxu0 0.0
  %3784 = vmatpush.msra.mxu0 0.0
  %3785 = vmatpush.msra.mxu0 0.0
  %3786 = vmatpush.msra.mxu0 0.0
  %3787 = vmatpush.msra.mxu0 0.0
  %3788 = vmatpush.msra.mxu0 0.0
  %3789 = vmatpush.msra.mxu0 0.0
  %3790 = vmatpush.msra.mxu0 0.0
  %3791 = vmatpush.msra.mxu0 0.0
  %3792 = vmatpush.msra.mxu0 0.0
  %3793 = vmatpush.msra.mxu0 0.0
  %3794 = vmatpush.msra.mxu0 0.0
  %3795 = vmatpush.msra.mxu0 0.0
  %3796 = vmatpush.msra.mxu0 %v3776
  %3797 = vmatpush.msra.mxu0 %v3775
  %3798 = vmatmul.f32.gmra.mxu0 %v3780
  %v3799 = vpop.f32.mrf.mxu0
  %v3800 = vadd.f32 %v3778, %v3799
  %3801 = vdwg.mxu0
  %3802 = vst.msk [vmem:[%s10] sm:$0xff] %vm85, %v3800
  %3803 = vst.msk [vmem:[%s11] sm:$0xff] %vm85, %v2244
  %3804 = vst.msk [vmem:[%s11 + $0x8] sm:$0xff] %vm85, %v2259
  %3805 = vst.msk [vmem:[%s11 + $0x10] sm:$0xff] %vm85, %v2274
  %3806 = vst.msk [vmem:[%s11 + $0x18] sm:$0xff] %vm85, %v2289
  %3807 = vst.msk [vmem:[%s11 + $0x20] sm:$0xff] %vm85, %v2304
  %3808 = vst.msk [vmem:[%s11 + $0x28] sm:$0xff] %vm85, %v2319
  %3809 = vst.msk [vmem:[%s11 + $0x30] sm:$0xff] %vm85, %v2334
  %3810 = vst.msk [vmem:[%s11 + $0x38] sm:$0xff] %vm85, %v2349
  %3811 = vst.msk [vmem:[%s11 + $0x40] sm:$0xff] %vm85, %v2364
  %3812 = vst.msk [vmem:[%s11 + $0x48] sm:$0xff] %vm85, %v2379
  %3813 = vst.msk [vmem:[%s11 + $0x50] sm:$0xff] %vm85, %v2394
  %3814 = vst.msk [vmem:[%s11 + $0x58] sm:$0xff] %vm85, %v2409
  %3815 = vst.msk [vmem:[%s11 + $0x60] sm:$0xff] %vm85, %v2424
  %3816 = vst.msk [vmem:[%s11 + $0x68] sm:$0xff] %vm85, %v2439
  %3817 = vst.msk [vmem:[%s11 + $0x70] sm:$0xff] %vm85, %v2454
  %3818 = vst.msk [vmem:[%s11 + $0x78] sm:$0xff] %vm85, %v2469
  %3819 = vrot.lane.b32.xlu0 %v3590, 32
  %v3820 = vpop.permute.xlu0 %3819
  %3821 = vrot.lane.b32.xlu0 %v3591, 32
  %v3822 = vpop.permute.xlu0 %3821
  %3823 = vrot.lane.b32.xlu0 %v3592, 32
  %v3824 = vpop.permute.xlu0 %3823
  %3825 = vrot.lane.b32.xlu0 %v3593, 32
  %v3826 = vpop.permute.xlu0 %3825
  %3827 = vrot.lane.b32.xlu0 %v3594, 32
  %v3828 = vpop.permute.xlu0 %3827
  %3829 = vrot.lane.b32.xlu0 %v3595, 32
  %v3830 = vpop.permute.xlu0 %3829
  %3831 = vrot.lane.b32.xlu0 %v3596, 32
  %v3832 = vpop.permute.xlu0 %3831
  %3833 = vrot.lane.b32.xlu0 %v3597, 32
  %v3834 = vpop.permute.xlu0 %3833
  %v3843 = vsel %vm201, %v3124, %v3820
  %v3844 = vsel %vm201, %v3139, %v3822
  %v3845 = vsel %vm201, %v3154, %v3824
  %v3846 = vsel %vm201, %v3169, %v3826
  %v3847 = vsel %vm201, %v3184, %v3828
  %v3848 = vsel %vm201, %v3199, %v3830
  %v3849 = vsel %vm201, %v3214, %v3832
  %v3850 = vsel %vm201, %v3229, %v3834
  %vm3851 = vcmask 523264
  %3852 = vst.msk [vmem:[%s12] sm:$0xff] %vm3851, %v3843
  %3853 = vst.msk [vmem:[%s12 + $0x8] sm:$0xff] %vm3851, %v3844
  %3854 = vst.msk [vmem:[%s12 + $0x10] sm:$0xff] %vm3851, %v3845
  %3855 = vst.msk [vmem:[%s12 + $0x18] sm:$0xff] %vm3851, %v3846
  %3856 = vst.msk [vmem:[%s12 + $0x20] sm:$0xff] %vm3851, %v3847
  %3857 = vst.msk [vmem:[%s12 + $0x28] sm:$0xff] %vm3851, %v3848
  %3858 = vst.msk [vmem:[%s12 + $0x30] sm:$0xff] %vm3851, %v3849
  %3859 = vst.msk [vmem:[%s12 + $0x38] sm:$0xff] %vm3851, %v3850
  // Predicated region
  $region42: #{basisformer_forward.1} parent=0 // pred_check
    _
  $region43: #{basisformer_forward.1} parent=0 // pred_check_branch
    %3861 = sbr.rel (0) target = $region45
  $region44: #{basisformer_forward.1} parent=0 // pred_region
    _
  $region45: #{basisformer_forward.1} parent=0 // pred_fallthru
    _
  // Predicated region
  $region46: #{basisformer_forward.1} parent=0 // pred_check
    _
  $region47: #{basisformer_forward.1} parent=0 // pred_check_branch
    %3863 = sbr.rel (0) target = $region49
  $region48: #{basisformer_forward.1} parent=0 // pred_region
    _
  $region49: #{basisformer_forward.1} parent=0 // pred_fallthru
    _
  // Predicated region
  $region50: #{basisformer_forward.1} parent=0 // pred_check
    _
  $region51: #{basisformer_forward.1} parent=0 // pred_check_branch
    %3865 = sbr.rel (0) target = $region53
  $region52: #{basisformer_forward.1} parent=0 // pred_region
    _
  $region53: #{basisformer_forward.1} parent=0 // pred_fallthru
    _
  // Predicated region
  $region54: #{basisformer_forward.1} parent=0 // pred_check
    _
  $region55: #{basisformer_forward.1} parent=0 // pred_check_branch
    %3867 = sbr.rel (0) target = $region57
  $region56: #{basisformer_forward.1} parent=0 // pred_region
    _
  $region57: #{basisformer_forward.1} parent=0 // pred_fallthru
    _
  // Predicated region
  $region58: #{basisformer_forward.1} parent=0 // pred_check
    _
  $region59: #{basisformer_forward.1} parent=0 // pred_check_branch
    %3869 = sbr.rel (0) target = $region61
  $region60: #{basisformer_forward.1} parent=0 // pred_region
    _
  $region61: #{basisformer_forward.1} parent=0 // pred_fallthru
    _
  // Predicated region
  $region62: #{basisformer_forward.1} parent=0 // pred_check
    _
  $region63: #{basisformer_forward.1} parent=0 // pred_check_branch
    %3871 = sbr.rel (0) target = $region65
  $region64: #{basisformer_forward.1} parent=0 // pred_region
    _
  $region65: #{basisformer_forward.1} parent=0 // pred_fallthru
    _

</llo_original>
